<compile_context>
chip_gen: v7x
topology: tpu7x:2x2x1
jax: 0.10.0
libtpu: 0.0.40
codegen_flags: <defaults>
</compile_context>

<pallas_src>
import functools

import jax
import jax.numpy as jnp
import numpy as np
from jax.experimental import pallas as pl
from jax.experimental.pallas import tpu as pltpu


# ---------------------------------------------------------------------------
# Kernel: one full encoder layer for one (batch, query-tile) grid point
# ---------------------------------------------------------------------------
def encoder_layer_kernel(xq_ref, xkv_ref, mask_ref,
                         wq_ref, bq_ref, wk_ref, bk_ref, wv_ref, bv_ref,
                         wo_ref, bo_ref, g1_ref, be1_ref,
                         w1_ref, b1_ref, w2_ref, b2_ref,
                         g2_ref, be2_ref,
                         out_ref, *, n_head, eps):
    xq = xq_ref[0]                      # (tq, D) f32 — query rows (also residual rows)
    xkv = xkv_ref[0]                    # (S,  D) f32 — full sequence for K/V
    mask = mask_ref[0]                  # (1,  S) f32, 1 = keep, 0 = masked
    tq, D = xq.shape
    dh = D // n_head
    scale = 1.0 / float(np.sqrt(dh))

    # Additive mask bias, hoisted out of the head loop (one add per head, no per-head
    # broadcast+compare+select).
    mask_bias = (mask - 1.0) * 10000.0  # (1, S): 0 where keep, -10000 where masked

    xq_b = xq.astype(jnp.bfloat16)
    xkv_b = xkv.astype(jnp.bfloat16)

    # ---- fused Q/K/V projections (full-width MXU matmuls, f32 accumulation) ----
    q = (jnp.dot(xq_b, wq_ref[...], preferred_element_type=jnp.float32)
         + bq_ref[...]) * scale                                        # scale folded into q
    k = jnp.dot(xkv_b, wk_ref[...], preferred_element_type=jnp.float32) + bk_ref[...]
    v = jnp.dot(xkv_b, wv_ref[...], preferred_element_type=jnp.float32) + bv_ref[...]

    q = q.astype(jnp.bfloat16)
    k = k.astype(jnp.bfloat16)
    v = v.astype(jnp.bfloat16)

    # ---- per-head attention via static lane slices, contexts concatenated ----
    ctx_parts = []
    for h in range(n_head):
        sl = slice(h * dh, (h + 1) * dh)
        s = jnp.dot(q[:, sl], k[:, sl].T, preferred_element_type=jnp.float32)  # (tq, S)
        s = s + mask_bias
        s = s - jnp.max(s, axis=-1, keepdims=True)
        p = jnp.exp(s)
        p = p * pl.reciprocal(jnp.sum(p, axis=-1, keepdims=True), approx=True)
        ctx_parts.append(jnp.dot(p.astype(jnp.bfloat16), v[:, sl],
                                 preferred_element_type=jnp.float32))           # (tq, dh)
    ctx = jnp.concatenate(ctx_parts, axis=-1)                                   # (tq, D)

    # ---- single fused output projection ----
    attn_out = jnp.dot(ctx.astype(jnp.bfloat16), wo_ref[...],
                       preferred_element_type=jnp.float32) + bo_ref[...]

    # TODO(synk): dropout1 / dropout2 are identity (eval mode), no RNG applied.

    # ---- residual + LayerNorm 1 (one-pass variance) ----
    h1 = xq + attn_out
    mu = jnp.mean(h1, axis=-1, keepdims=True)
    var = jnp.maximum(jnp.mean(h1 * h1, axis=-1, keepdims=True) - mu * mu, 0.0)
    h1 = (h1 - mu) * jax.lax.rsqrt(var + eps)
    h1 = h1 * g1_ref[...] + be1_ref[...]

    # ---- position-wise feed-forward (bf16 in, f32 accumulate) ----
    f = jnp.dot(h1.astype(jnp.bfloat16), w1_ref[...],
                preferred_element_type=jnp.float32) + b1_ref[...]
    f = jnp.maximum(f, 0.0)
    f = jnp.dot(f.astype(jnp.bfloat16), w2_ref[...],
                preferred_element_type=jnp.float32) + b2_ref[...]

    # ---- residual + LayerNorm 2 (one-pass variance) ----
    h2 = h1 + f
    mu2 = jnp.mean(h2, axis=-1, keepdims=True)
    var2 = jnp.maximum(jnp.mean(h2 * h2, axis=-1, keepdims=True) - mu2 * mu2, 0.0)
    h2 = (h2 - mu2) * jax.lax.rsqrt(var2 + eps)
    h2 = h2 * g2_ref[...] + be2_ref[...]

    out_ref[0] = h2.astype(out_ref.dtype)


# ---------------------------------------------------------------------------
# Wrappers
# ---------------------------------------------------------------------------
def embedding(token_ids, tok_table, pos_table):
    # Glue: embedding gather + positional add in plain JAX (XLA fuses them with
    # the gather); a standalone Pallas elementwise-add only adds an extra HBM
    # round-trip of the whole (B, S, D) activation.
    S = token_ids.shape[1]
    return jnp.take(tok_table, token_ids, axis=0) + pos_table[:S][None, :, :]


def _encoder_layer(x, mask3, p, n_head, *, buffered, q_tile=128, eps=1e-12):
    B, S, D = x.shape
    F = p["w1"].shape[1]
    # Query tiling: flash-style tiles over the query axis so the (tq, S) score block
    # (not (S, S)) is what lives in vregs/VMEM, and the grid has enough parallel
    # points for megacore sharding. For S <= 128 this degenerates to one tile.
    tq = q_tile if (S > q_tile and S % q_tile == 0) else S
    n_qt = S // tq

    def wspec(*shape):
        # Grid-invariant weights/biases: constant index_map; single-buffer them so
        # their VMEM footprint is not doubled by the default pipelining.
        idx = lambda b, qi, _n=len(shape): (0,) * _n
        if buffered:
            return pl.BlockSpec(shape, idx, pipeline_mode=pl.Buffered(1))
        return pl.BlockSpec(shape, idx)

    kern = functools.partial(encoder_layer_kernel, n_head=n_head, eps=eps)
    return pl.pallas_call(
        kern,
        out_shape=jax.ShapeDtypeStruct((B, S, D), jnp.float32),
        grid=(B, n_qt),
        in_specs=[
            pl.BlockSpec((1, tq, D), lambda b, qi: (b, qi, 0)),   # x (query rows / residual)
            pl.BlockSpec((1, S, D), lambda b, qi: (b, 0, 0)),     # x (full seq for K/V)
            pl.BlockSpec((1, 1, S), lambda b, qi: (b, 0, 0)),     # mask
            wspec(D, D), wspec(1, D),                             # wq, bq
            wspec(D, D), wspec(1, D),                             # wk, bk
            wspec(D, D), wspec(1, D),                             # wv, bv
            wspec(D, D), wspec(1, D),                             # wo, bo
            wspec(1, D), wspec(1, D),                             # gamma1, beta1
            wspec(D, F), wspec(1, F),                             # w1, b1
            wspec(F, D), wspec(1, D),                             # w2, b2
            wspec(1, D), wspec(1, D),                             # gamma2, beta2
        ],
        out_specs=pl.BlockSpec((1, tq, D), lambda b, qi: (b, qi, 0)),
        compiler_params=pltpu.CompilerParams(
            dimension_semantics=("parallel", "parallel"),
            vmem_limit_bytes=32 * 1024 * 1024),
    )(x, x, mask3,
      p["wq"], p["bq"], p["wk"], p["bk"], p["wv"], p["bv"],
      p["wo"], p["bo"], p["g1"], p["be1"],
      p["w1"], p["b1"], p["w2"], p["b2"], p["g2"], p["be2"])


_BUFFERED_OK = [True]


def encoder_layer(x, mask3, p, n_head):
    if _BUFFERED_OK[0]:
        try:
            return _encoder_layer(x, mask3, p, n_head, buffered=True)
        except Exception:
            # This Pallas version rejects single-buffered pipeline_mode; fall back to
            # the default (double-buffered) weight specs.
            _BUFFERED_OK[0] = False
    return _encoder_layer(x, mask3, p, n_head, buffered=False)


def encoder_forward(token_ids, s_mask, params, n_head):
    x = embedding(token_ids, params["tok_emb"], params["pos_emb"])
    B, S = s_mask.shape
    mask3 = s_mask.reshape(B, 1, S).astype(jnp.float32)
    for lp in params["layers"]:
        x = encoder_layer(x, mask3, lp, n_head)
    return x


# ---------------------------------------------------------------------------
# Deterministic parameter construction
# ---------------------------------------------------------------------------
def sinusoidal_pe(max_len, d_model):
    pos = np.arange(max_len, dtype=np.float32)[:, None]
    i = np.arange(0, d_model, 2, dtype=np.float32)
    angle = pos / np.power(10000.0, i / d_model)
    pe = np.zeros((max_len, d_model), np.float32)
    pe[:, 0::2] = np.sin(angle)
    pe[:, 1::2] = np.cos(angle)
    return jnp.asarray(pe)


def init_layer_params(key, d_model, ffn_hidden, n_head):
    ks = jax.random.split(key, 9)
    std = 0.02

    def lin(k, din, dout):
        return jax.random.normal(k, (din, dout), jnp.float32) * std

    # Matmul weights stored in bf16 (MXU inputs); biases / LN params stay f32.
    return dict(
        wq=lin(ks[0], d_model, d_model).astype(jnp.bfloat16),
        wk=lin(ks[1], d_model, d_model).astype(jnp.bfloat16),
        wv=lin(ks[2], d_model, d_model).astype(jnp.bfloat16),
        wo=lin(ks[3], d_model, d_model).astype(jnp.bfloat16),
        bq=jax.random.normal(ks[4], (1, d_model), jnp.float32) * std,
        bk=jax.random.normal(ks[5], (1, d_model), jnp.float32) * std,
        bv=jax.random.normal(ks[6], (1, d_model), jnp.float32) * std,
        bo=jnp.zeros((1, d_model), jnp.float32),
        g1=jnp.ones((1, d_model), jnp.float32),
        be1=jnp.zeros((1, d_model), jnp.float32),
        w1=lin(ks[7], d_model, ffn_hidden).astype(jnp.bfloat16),
        b1=jnp.zeros((1, ffn_hidden), jnp.float32),
        w2=lin(ks[8], ffn_hidden, d_model).astype(jnp.bfloat16),
        b2=jnp.zeros((1, d_model), jnp.float32),
        g2=jnp.ones((1, d_model), jnp.float32),
        be2=jnp.zeros((1, d_model), jnp.float32),
    )


# ---------------------------------------------------------------------------
if __name__ == "__main__":
    B, S = 2, 8
    enc_voc_size, max_len = 100, 16
    d_model, ffn_hidden, n_head, n_layer = 32, 64, 4, 2

    key = jax.random.PRNGKey(0)
    k_tok, k_ids, *k_layers = jax.random.split(key, 2 + n_layer)

    params = {
        "tok_emb": jax.random.normal(k_tok, (enc_voc_size, d_model), jnp.float32) * 0.02,
        "pos_emb": sinusoidal_pe(max_len, d_model),
        "layers": [init_layer_params(k, d_model, ffn_hidden, n_head) for k in k_layers],
    }

    token_ids = jax.random.randint(k_ids, (B, S), 0, enc_voc_size, dtype=jnp.int32)
    s_mask = jnp.ones((B, S), jnp.float32)     # 1 = attend, 0 = masked

    out = encoder_forward(token_ids, s_mask, params, n_head)
    out = jax.block_until_ready(out)

    assert out.shape == (B, S, d_model), out.shape
    assert bool(jnp.all(jnp.isfinite(out)))
    print("KERNEL_OK")
</pallas_src>

<mosaic_0001>
module attributes {stable_mosaic.version = 11 : i64} {
  func.func @encoder_layer_kernel(%arg0: i32, %arg1: i32, %arg2: memref<1x8x32xf32, #tpu.memory_space<vmem>>, %arg3: memref<1x8x32xf32, #tpu.memory_space<vmem>>, %arg4: memref<1x1x8xf32, #tpu.memory_space<vmem>>, %arg5: memref<32x32xbf16, #tpu.memory_space<vmem>>, %arg6: memref<1x32xf32, #tpu.memory_space<vmem>>, %arg7: memref<32x32xbf16, #tpu.memory_space<vmem>>, %arg8: memref<1x32xf32, #tpu.memory_space<vmem>>, %arg9: memref<32x32xbf16, #tpu.memory_space<vmem>>, %arg10: memref<1x32xf32, #tpu.memory_space<vmem>>, %arg11: memref<32x32xbf16, #tpu.memory_space<vmem>>, %arg12: memref<1x32xf32, #tpu.memory_space<vmem>>, %arg13: memref<1x32xf32, #tpu.memory_space<vmem>>, %arg14: memref<1x32xf32, #tpu.memory_space<vmem>>, %arg15: memref<32x64xbf16, #tpu.memory_space<vmem>>, %arg16: memref<1x64xf32, #tpu.memory_space<vmem>>, %arg17: memref<64x32xbf16, #tpu.memory_space<vmem>>, %arg18: memref<1x32xf32, #tpu.memory_space<vmem>>, %arg19: memref<1x32xf32, #tpu.memory_space<vmem>>, %arg20: memref<1x32xf32, #tpu.memory_space<vmem>>, %arg21: memref<1x8x32xf32, #tpu.memory_space<vmem>>) attributes {dimension_semantics = [#tpu.dimension_semantics<parallel>, #tpu.dimension_semantics<parallel>], iteration_bounds = array<i64: 2, 1>, scalar_prefetch = 0 : i64, scratch_operands = 0 : i64, tpu.core_type = #tpu.core_type<tc>, window_params = [{transform_indices = @transform_0, window_bounds = array<i64: 1, 8, 32>}, {transform_indices = @transform_1, window_bounds = array<i64: 1, 8, 32>}, {transform_indices = @transform_2, window_bounds = array<i64: 1, 1, 8>}, {pipeline_mode = #tpu.pipeline_mode<synchronous>, transform_indices = @transform_3, window_bounds = array<i64: 32, 32>}, {pipeline_mode = #tpu.pipeline_mode<synchronous>, transform_indices = @transform_4, window_bounds = array<i64: 1, 32>}, {pipeline_mode = #tpu.pipeline_mode<synchronous>, transform_indices = @transform_5, window_bounds = array<i64: 32, 32>}, {pipeline_mode = #tpu.pipeline_mode<synchronous>, transform_indices = @transform_6, window_bounds = array<i64: 1, 32>}, {pipeline_mode = #tpu.pipeline_mode<synchronous>, transform_indices = @transform_7, window_bounds = array<i64: 32, 32>}, {pipeline_mode = #tpu.pipeline_mode<synchronous>, transform_indices = @transform_8, window_bounds = array<i64: 1, 32>}, {pipeline_mode = #tpu.pipeline_mode<synchronous>, transform_indices = @transform_9, window_bounds = array<i64: 32, 32>}, {pipeline_mode = #tpu.pipeline_mode<synchronous>, transform_indices = @transform_10, window_bounds = array<i64: 1, 32>}, {pipeline_mode = #tpu.pipeline_mode<synchronous>, transform_indices = @transform_11, window_bounds = array<i64: 1, 32>}, {pipeline_mode = #tpu.pipeline_mode<synchronous>, transform_indices = @transform_12, window_bounds = array<i64: 1, 32>}, {pipeline_mode = #tpu.pipeline_mode<synchronous>, transform_indices = @transform_13, window_bounds = array<i64: 32, 64>}, {pipeline_mode = #tpu.pipeline_mode<synchronous>, transform_indices = @transform_14, window_bounds = array<i64: 1, 64>}, {pipeline_mode = #tpu.pipeline_mode<synchronous>, transform_indices = @transform_15, window_bounds = array<i64: 64, 32>}, {pipeline_mode = #tpu.pipeline_mode<synchronous>, transform_indices = @transform_16, window_bounds = array<i64: 1, 32>}, {pipeline_mode = #tpu.pipeline_mode<synchronous>, transform_indices = @transform_17, window_bounds = array<i64: 1, 32>}, {pipeline_mode = #tpu.pipeline_mode<synchronous>, transform_indices = @transform_18, window_bounds = array<i64: 1, 32>}, {transform_indices = @transform_19, window_bounds = array<i64: 1, 8, 32>}]} {
    %c0 = arith.constant 0 : index
    %c0_0 = arith.constant 0 : index
    %c0_1 = arith.constant 0 : index
    %0 = vector.load %arg2[%c0, %c0_0, %c0_1] : memref<1x8x32xf32, #tpu.memory_space<vmem>>, vector<1x8x32xf32>
    %1 = vector.shape_cast %0 : vector<1x8x32xf32> to vector<8x32xf32>
    %c0_2 = arith.constant 0 : index
    %c0_3 = arith.constant 0 : index
    %c0_4 = arith.constant 0 : index
    %2 = vector.load %arg3[%c0_2, %c0_3, %c0_4] : memref<1x8x32xf32, #tpu.memory_space<vmem>>, vector<1x8x32xf32>
    %3 = vector.shape_cast %2 : vector<1x8x32xf32> to vector<8x32xf32>
    %c0_5 = arith.constant 0 : index
    %c0_6 = arith.constant 0 : index
    %c0_7 = arith.constant 0 : index
    %4 = vector.load %arg4[%c0_5, %c0_6, %c0_7] : memref<1x1x8xf32, #tpu.memory_space<vmem>>, vector<1x1x8xf32>
    %5 = vector.shape_cast %4 : vector<1x1x8xf32> to vector<1x8xf32>
    %cst = arith.constant 1.000000e+00 : f32
    %6 = vector.broadcast %cst : f32 to vector<1x8xf32>
    %7 = arith.subf %5, %6 : vector<1x8xf32>
    %cst_8 = arith.constant 1.000000e+04 : f32
    %8 = vector.broadcast %cst_8 : f32 to vector<1x8xf32>
    %9 = arith.mulf %7, %8 : vector<1x8xf32>
    %10 = arith.truncf %1 : vector<8x32xf32> to vector<8x32xbf16>
    %11 = arith.truncf %3 : vector<8x32xf32> to vector<8x32xbf16>
    %c0_9 = arith.constant 0 : index
    %c0_10 = arith.constant 0 : index
    %12 = vector.load %arg5[%c0_9, %c0_10] : memref<32x32xbf16, #tpu.memory_space<vmem>>, vector<32x32xbf16>
    %cst_11 = arith.constant dense<0.000000e+00> : vector<8x32xf32>
    %13 = tpu.matmul %10, %12, %cst_11 {dimension_numbers = #tpu.dot_dimension_numbers<[1], [0], [0], [1], [0, 0, 1, 1], [], []>} : vector<8x32xbf16>, vector<32x32xbf16>, vector<8x32xf32> -> vector<8x32xf32>
    %c0_12 = arith.constant 0 : index
    %c0_13 = arith.constant 0 : index
    %14 = vector.load %arg6[%c0_12, %c0_13] : memref<1x32xf32, #tpu.memory_space<vmem>>, vector<1x32xf32>
    %15 = vector.broadcast %14 : vector<1x32xf32> to vector<8x32xf32>
    %16 = arith.addf %13, %15 : vector<8x32xf32>
    %cst_14 = arith.constant 0.353553385 : f32
    %17 = vector.broadcast %cst_14 : f32 to vector<8x32xf32>
    %18 = arith.mulf %16, %17 : vector<8x32xf32>
    %c0_15 = arith.constant 0 : index
    %c0_16 = arith.constant 0 : index
    %19 = vector.load %arg7[%c0_15, %c0_16] : memref<32x32xbf16, #tpu.memory_space<vmem>>, vector<32x32xbf16>
    %cst_17 = arith.constant dense<0.000000e+00> : vector<8x32xf32>
    %20 = tpu.matmul %11, %19, %cst_17 {dimension_numbers = #tpu.dot_dimension_numbers<[1], [0], [0], [1], [0, 0, 1, 1], [], []>} : vector<8x32xbf16>, vector<32x32xbf16>, vector<8x32xf32> -> vector<8x32xf32>
    %c0_18 = arith.constant 0 : index
    %c0_19 = arith.constant 0 : index
    %21 = vector.load %arg8[%c0_18, %c0_19] : memref<1x32xf32, #tpu.memory_space<vmem>>, vector<1x32xf32>
    %22 = vector.broadcast %21 : vector<1x32xf32> to vector<8x32xf32>
    %23 = arith.addf %20, %22 : vector<8x32xf32>
    %c0_20 = arith.constant 0 : index
    %c0_21 = arith.constant 0 : index
    %24 = vector.load %arg9[%c0_20, %c0_21] : memref<32x32xbf16, #tpu.memory_space<vmem>>, vector<32x32xbf16>
    %cst_22 = arith.constant dense<0.000000e+00> : vector<8x32xf32>
    %25 = tpu.matmul %11, %24, %cst_22 {dimension_numbers = #tpu.dot_dimension_numbers<[1], [0], [0], [1], [0, 0, 1, 1], [], []>} : vector<8x32xbf16>, vector<32x32xbf16>, vector<8x32xf32> -> vector<8x32xf32>
    %c0_23 = arith.constant 0 : index
    %c0_24 = arith.constant 0 : index
    %26 = vector.load %arg10[%c0_23, %c0_24] : memref<1x32xf32, #tpu.memory_space<vmem>>, vector<1x32xf32>
    %27 = vector.broadcast %26 : vector<1x32xf32> to vector<8x32xf32>
    %28 = arith.addf %25, %27 : vector<8x32xf32>
    %29 = arith.truncf %18 : vector<8x32xf32> to vector<8x32xbf16>
    %30 = arith.truncf %23 : vector<8x32xf32> to vector<8x32xbf16>
    %31 = arith.truncf %28 : vector<8x32xf32> to vector<8x32xbf16>
    %32 = vector.extract_strided_slice %29 {offsets = [0, 0], sizes = [8, 8], strides = [1, 1]} : vector<8x32xbf16> to vector<8x8xbf16>
    %33 = vector.extract_strided_slice %30 {offsets = [0, 0], sizes = [8, 8], strides = [1, 1]} : vector<8x32xbf16> to vector<8x8xbf16>
    %34 = tpu.transpose %33, [1, 0] : vector<8x8xbf16> -> vector<8x8xbf16>
    %cst_25 = arith.constant dense<0.000000e+00> : vector<8x8xf32>
    %35 = tpu.matmul %32, %34, %cst_25 {dimension_numbers = #tpu.dot_dimension_numbers<[1], [0], [0], [1], [0, 0, 1, 1], [], []>} : vector<8x8xbf16>, vector<8x8xbf16>, vector<8x8xf32> -> vector<8x8xf32>
    %36 = vector.broadcast %9 : vector<1x8xf32> to vector<8x8xf32>
    %37 = arith.addf %35, %36 : vector<8x8xf32>
    %cst_26 = arith.constant dense<0xFF800000> : vector<8xf32>
    %38 = vector.multi_reduction <maximumf>, %37, %cst_26 [1] : vector<8x8xf32> to vector<8xf32>
    %39 = vector.shape_cast %38 : vector<8xf32> to vector<8x1xf32>
    %40 = vector.broadcast %39 : vector<8x1xf32> to vector<8x8xf32>
    %41 = arith.subf %37, %40 : vector<8x8xf32>
    %42 = math.exp %41 : vector<8x8xf32>
    %cst_27 = arith.constant dense<0.000000e+00> : vector<8xf32>
    %43 = vector.multi_reduction <add>, %42, %cst_27 [1] : vector<8x8xf32> to vector<8xf32>
    %44 = vector.shape_cast %43 : vector<8xf32> to vector<8x1xf32>
    %45 = tpu.reciprocal %44 {approx = true} : vector<8x1xf32> -> vector<8x1xf32>
    %46 = vector.broadcast %45 : vector<8x1xf32> to vector<8x8xf32>
    %47 = arith.mulf %42, %46 : vector<8x8xf32>
    %48 = arith.truncf %47 : vector<8x8xf32> to vector<8x8xbf16>
    %49 = vector.extract_strided_slice %31 {offsets = [0, 0], sizes = [8, 8], strides = [1, 1]} : vector<8x32xbf16> to vector<8x8xbf16>
    %cst_28 = arith.constant dense<0.000000e+00> : vector<8x8xf32>
    %50 = tpu.matmul %48, %49, %cst_28 {dimension_numbers = #tpu.dot_dimension_numbers<[1], [0], [0], [1], [0, 0, 1, 1], [], []>} : vector<8x8xbf16>, vector<8x8xbf16>, vector<8x8xf32> -> vector<8x8xf32>
    %51 = vector.extract_strided_slice %29 {offsets = [0, 8], sizes = [8, 8], strides = [1, 1]} : vector<8x32xbf16> to vector<8x8xbf16>
    %52 = vector.extract_strided_slice %30 {offsets = [0, 8], sizes = [8, 8], strides = [1, 1]} : vector<8x32xbf16> to vector<8x8xbf16>
    %53 = tpu.transpose %52, [1, 0] : vector<8x8xbf16> -> vector<8x8xbf16>
    %cst_29 = arith.constant dense<0.000000e+00> : vector<8x8xf32>
    %54 = tpu.matmul %51, %53, %cst_29 {dimension_numbers = #tpu.dot_dimension_numbers<[1], [0], [0], [1], [0, 0, 1, 1], [], []>} : vector<8x8xbf16>, vector<8x8xbf16>, vector<8x8xf32> -> vector<8x8xf32>
    %55 = vector.broadcast %9 : vector<1x8xf32> to vector<8x8xf32>
    %56 = arith.addf %54, %55 : vector<8x8xf32>
    %cst_30 = arith.constant dense<0xFF800000> : vector<8xf32>
    %57 = vector.multi_reduction <maximumf>, %56, %cst_30 [1] : vector<8x8xf32> to vector<8xf32>
    %58 = vector.shape_cast %57 : vector<8xf32> to vector<8x1xf32>
    %59 = vector.broadcast %58 : vector<8x1xf32> to vector<8x8xf32>
    %60 = arith.subf %56, %59 : vector<8x8xf32>
    %61 = math.exp %60 : vector<8x8xf32>
    %cst_31 = arith.constant dense<0.000000e+00> : vector<8xf32>
    %62 = vector.multi_reduction <add>, %61, %cst_31 [1] : vector<8x8xf32> to vector<8xf32>
    %63 = vector.shape_cast %62 : vector<8xf32> to vector<8x1xf32>
    %64 = tpu.reciprocal %63 {approx = true} : vector<8x1xf32> -> vector<8x1xf32>
    %65 = vector.broadcast %64 : vector<8x1xf32> to vector<8x8xf32>
    %66 = arith.mulf %61, %65 : vector<8x8xf32>
    %67 = arith.truncf %66 : vector<8x8xf32> to vector<8x8xbf16>
    %68 = vector.extract_strided_slice %31 {offsets = [0, 8], sizes = [8, 8], strides = [1, 1]} : vector<8x32xbf16> to vector<8x8xbf16>
    %cst_32 = arith.constant dense<0.000000e+00> : vector<8x8xf32>
    %69 = tpu.matmul %67, %68, %cst_32 {dimension_numbers = #tpu.dot_dimension_numbers<[1], [0], [0], [1], [0, 0, 1, 1], [], []>} : vector<8x8xbf16>, vector<8x8xbf16>, vector<8x8xf32> -> vector<8x8xf32>
    %70 = vector.extract_strided_slice %29 {offsets = [0, 16], sizes = [8, 8], strides = [1, 1]} : vector<8x32xbf16> to vector<8x8xbf16>
    %71 = vector.extract_strided_slice %30 {offsets = [0, 16], sizes = [8, 8], strides = [1, 1]} : vector<8x32xbf16> to vector<8x8xbf16>
    %72 = tpu.transpose %71, [1, 0] : vector<8x8xbf16> -> vector<8x8xbf16>
    %cst_33 = arith.constant dense<0.000000e+00> : vector<8x8xf32>
    %73 = tpu.matmul %70, %72, %cst_33 {dimension_numbers = #tpu.dot_dimension_numbers<[1], [0], [0], [1], [0, 0, 1, 1], [], []>} : vector<8x8xbf16>, vector<8x8xbf16>, vector<8x8xf32> -> vector<8x8xf32>
    %74 = vector.broadcast %9 : vector<1x8xf32> to vector<8x8xf32>
    %75 = arith.addf %73, %74 : vector<8x8xf32>
    %cst_34 = arith.constant dense<0xFF800000> : vector<8xf32>
    %76 = vector.multi_reduction <maximumf>, %75, %cst_34 [1] : vector<8x8xf32> to vector<8xf32>
    %77 = vector.shape_cast %76 : vector<8xf32> to vector<8x1xf32>
    %78 = vector.broadcast %77 : vector<8x1xf32> to vector<8x8xf32>
    %79 = arith.subf %75, %78 : vector<8x8xf32>
    %80 = math.exp %79 : vector<8x8xf32>
    %cst_35 = arith.constant dense<0.000000e+00> : vector<8xf32>
    %81 = vector.multi_reduction <add>, %80, %cst_35 [1] : vector<8x8xf32> to vector<8xf32>
    %82 = vector.shape_cast %81 : vector<8xf32> to vector<8x1xf32>
    %83 = tpu.reciprocal %82 {approx = true} : vector<8x1xf32> -> vector<8x1xf32>
    %84 = vector.broadcast %83 : vector<8x1xf32> to vector<8x8xf32>
    %85 = arith.mulf %80, %84 : vector<8x8xf32>
    %86 = arith.truncf %85 : vector<8x8xf32> to vector<8x8xbf16>
    %87 = vector.extract_strided_slice %31 {offsets = [0, 16], sizes = [8, 8], strides = [1, 1]} : vector<8x32xbf16> to vector<8x8xbf16>
    %cst_36 = arith.constant dense<0.000000e+00> : vector<8x8xf32>
    %88 = tpu.matmul %86, %87, %cst_36 {dimension_numbers = #tpu.dot_dimension_numbers<[1], [0], [0], [1], [0, 0, 1, 1], [], []>} : vector<8x8xbf16>, vector<8x8xbf16>, vector<8x8xf32> -> vector<8x8xf32>
    %89 = vector.extract_strided_slice %29 {offsets = [0, 24], sizes = [8, 8], strides = [1, 1]} : vector<8x32xbf16> to vector<8x8xbf16>
    %90 = vector.extract_strided_slice %30 {offsets = [0, 24], sizes = [8, 8], strides = [1, 1]} : vector<8x32xbf16> to vector<8x8xbf16>
    %91 = tpu.transpose %90, [1, 0] : vector<8x8xbf16> -> vector<8x8xbf16>
    %cst_37 = arith.constant dense<0.000000e+00> : vector<8x8xf32>
    %92 = tpu.matmul %89, %91, %cst_37 {dimension_numbers = #tpu.dot_dimension_numbers<[1], [0], [0], [1], [0, 0, 1, 1], [], []>} : vector<8x8xbf16>, vector<8x8xbf16>, vector<8x8xf32> -> vector<8x8xf32>
    %93 = vector.broadcast %9 : vector<1x8xf32> to vector<8x8xf32>
    %94 = arith.addf %92, %93 : vector<8x8xf32>
    %cst_38 = arith.constant dense<0xFF800000> : vector<8xf32>
    %95 = vector.multi_reduction <maximumf>, %94, %cst_38 [1] : vector<8x8xf32> to vector<8xf32>
    %96 = vector.shape_cast %95 : vector<8xf32> to vector<8x1xf32>
    %97 = vector.broadcast %96 : vector<8x1xf32> to vector<8x8xf32>
    %98 = arith.subf %94, %97 : vector<8x8xf32>
    %99 = math.exp %98 : vector<8x8xf32>
    %cst_39 = arith.constant dense<0.000000e+00> : vector<8xf32>
    %100 = vector.multi_reduction <add>, %99, %cst_39 [1] : vector<8x8xf32> to vector<8xf32>
    %101 = vector.shape_cast %100 : vector<8xf32> to vector<8x1xf32>
    %102 = tpu.reciprocal %101 {approx = true} : vector<8x1xf32> -> vector<8x1xf32>
    %103 = vector.broadcast %102 : vector<8x1xf32> to vector<8x8xf32>
    %104 = arith.mulf %99, %103 : vector<8x8xf32>
    %105 = arith.truncf %104 : vector<8x8xf32> to vector<8x8xbf16>
    %106 = vector.extract_strided_slice %31 {offsets = [0, 24], sizes = [8, 8], strides = [1, 1]} : vector<8x32xbf16> to vector<8x8xbf16>
    %cst_40 = arith.constant dense<0.000000e+00> : vector<8x8xf32>
    %107 = tpu.matmul %105, %106, %cst_40 {dimension_numbers = #tpu.dot_dimension_numbers<[1], [0], [0], [1], [0, 0, 1, 1], [], []>} : vector<8x8xbf16>, vector<8x8xbf16>, vector<8x8xf32> -> vector<8x8xf32>
    %108 = tpu.concatenate %50, %69, %88, %107 in 1 : vector<8x8xf32>, vector<8x8xf32>, vector<8x8xf32>, vector<8x8xf32> -> vector<8x32xf32>
    %109 = arith.truncf %108 : vector<8x32xf32> to vector<8x32xbf16>
    %c0_41 = arith.constant 0 : index
    %c0_42 = arith.constant 0 : index
    %110 = vector.load %arg11[%c0_41, %c0_42] : memref<32x32xbf16, #tpu.memory_space<vmem>>, vector<32x32xbf16>
    %cst_43 = arith.constant dense<0.000000e+00> : vector<8x32xf32>
    %111 = tpu.matmul %109, %110, %cst_43 {dimension_numbers = #tpu.dot_dimension_numbers<[1], [0], [0], [1], [0, 0, 1, 1], [], []>} : vector<8x32xbf16>, vector<32x32xbf16>, vector<8x32xf32> -> vector<8x32xf32>
    %c0_44 = arith.constant 0 : index
    %c0_45 = arith.constant 0 : index
    %112 = vector.load %arg12[%c0_44, %c0_45] : memref<1x32xf32, #tpu.memory_space<vmem>>, vector<1x32xf32>
    %113 = vector.broadcast %112 : vector<1x32xf32> to vector<8x32xf32>
    %114 = arith.addf %111, %113 : vector<8x32xf32>
    %115 = arith.addf %1, %114 : vector<8x32xf32>
    %cst_46 = arith.constant dense<0.000000e+00> : vector<8xf32>
    %116 = vector.multi_reduction <add>, %115, %cst_46 [1] : vector<8x32xf32> to vector<8xf32>
    %117 = vector.shape_cast %116 : vector<8xf32> to vector<8x1xf32>
    %cst_47 = arith.constant 3.200000e+01 : f32
    %118 = vector.broadcast %cst_47 : f32 to vector<8x1xf32>
    %119 = arith.divf %117, %118 : vector<8x1xf32>
    %120 = arith.mulf %115, %115 : vector<8x32xf32>
    %cst_48 = arith.constant dense<0.000000e+00> : vector<8xf32>
    %121 = vector.multi_reduction <add>, %120, %cst_48 [1] : vector<8x32xf32> to vector<8xf32>
    %122 = vector.shape_cast %121 : vector<8xf32> to vector<8x1xf32>
    %cst_49 = arith.constant 3.200000e+01 : f32
    %123 = vector.broadcast %cst_49 : f32 to vector<8x1xf32>
    %124 = arith.divf %122, %123 : vector<8x1xf32>
    %125 = arith.mulf %119, %119 : vector<8x1xf32>
    %126 = arith.subf %124, %125 : vector<8x1xf32>
    %cst_50 = arith.constant 0.000000e+00 : f32
    %127 = vector.broadcast %cst_50 : f32 to vector<8x1xf32>
    %128 = arith.maximumf %126, %127 : vector<8x1xf32>
    %129 = vector.broadcast %119 : vector<8x1xf32> to vector<8x32xf32>
    %130 = arith.subf %115, %129 : vector<8x32xf32>
    %cst_51 = arith.constant 9.99999996E-13 : f32
    %131 = vector.broadcast %cst_51 : f32 to vector<8x1xf32>
    %132 = arith.addf %128, %131 : vector<8x1xf32>
    %133 = math.rsqrt %132 : vector<8x1xf32>
    %134 = vector.broadcast %133 : vector<8x1xf32> to vector<8x32xf32>
    %135 = arith.mulf %130, %134 : vector<8x32xf32>
    %c0_52 = arith.constant 0 : index
    %c0_53 = arith.constant 0 : index
    %136 = vector.load %arg13[%c0_52, %c0_53] : memref<1x32xf32, #tpu.memory_space<vmem>>, vector<1x32xf32>
    %137 = vector.broadcast %136 : vector<1x32xf32> to vector<8x32xf32>
    %138 = arith.mulf %135, %137 : vector<8x32xf32>
    %c0_54 = arith.constant 0 : index
    %c0_55 = arith.constant 0 : index
    %139 = vector.load %arg14[%c0_54, %c0_55] : memref<1x32xf32, #tpu.memory_space<vmem>>, vector<1x32xf32>
    %140 = vector.broadcast %139 : vector<1x32xf32> to vector<8x32xf32>
    %141 = arith.addf %138, %140 : vector<8x32xf32>
    %142 = arith.truncf %141 : vector<8x32xf32> to vector<8x32xbf16>
    %c0_56 = arith.constant 0 : index
    %c0_57 = arith.constant 0 : index
    %143 = vector.load %arg15[%c0_56, %c0_57] : memref<32x64xbf16, #tpu.memory_space<vmem>>, vector<32x64xbf16>
    %cst_58 = arith.constant dense<0.000000e+00> : vector<8x64xf32>
    %144 = tpu.matmul %142, %143, %cst_58 {dimension_numbers = #tpu.dot_dimension_numbers<[1], [0], [0], [1], [0, 0, 1, 1], [], []>} : vector<8x32xbf16>, vector<32x64xbf16>, vector<8x64xf32> -> vector<8x64xf32>
    %c0_59 = arith.constant 0 : index
    %c0_60 = arith.constant 0 : index
    %145 = vector.load %arg16[%c0_59, %c0_60] : memref<1x64xf32, #tpu.memory_space<vmem>>, vector<1x64xf32>
    %146 = vector.broadcast %145 : vector<1x64xf32> to vector<8x64xf32>
    %147 = arith.addf %144, %146 : vector<8x64xf32>
    %cst_61 = arith.constant 0.000000e+00 : f32
    %148 = vector.broadcast %cst_61 : f32 to vector<8x64xf32>
    %149 = arith.maximumf %147, %148 : vector<8x64xf32>
    %150 = arith.truncf %149 : vector<8x64xf32> to vector<8x64xbf16>
    %c0_62 = arith.constant 0 : index
    %c0_63 = arith.constant 0 : index
    %151 = vector.load %arg17[%c0_62, %c0_63] : memref<64x32xbf16, #tpu.memory_space<vmem>>, vector<64x32xbf16>
    %cst_64 = arith.constant dense<0.000000e+00> : vector<8x32xf32>
    %152 = tpu.matmul %150, %151, %cst_64 {dimension_numbers = #tpu.dot_dimension_numbers<[1], [0], [0], [1], [0, 0, 1, 1], [], []>} : vector<8x64xbf16>, vector<64x32xbf16>, vector<8x32xf32> -> vector<8x32xf32>
    %c0_65 = arith.constant 0 : index
    %c0_66 = arith.constant 0 : index
    %153 = vector.load %arg18[%c0_65, %c0_66] : memref<1x32xf32, #tpu.memory_space<vmem>>, vector<1x32xf32>
    %154 = vector.broadcast %153 : vector<1x32xf32> to vector<8x32xf32>
    %155 = arith.addf %152, %154 : vector<8x32xf32>
    %156 = arith.addf %141, %155 : vector<8x32xf32>
    %cst_67 = arith.constant dense<0.000000e+00> : vector<8xf32>
    %157 = vector.multi_reduction <add>, %156, %cst_67 [1] : vector<8x32xf32> to vector<8xf32>
    %158 = vector.shape_cast %157 : vector<8xf32> to vector<8x1xf32>
    %cst_68 = arith.constant 3.200000e+01 : f32
    %159 = vector.broadcast %cst_68 : f32 to vector<8x1xf32>
    %160 = arith.divf %158, %159 : vector<8x1xf32>
    %161 = arith.mulf %156, %156 : vector<8x32xf32>
    %cst_69 = arith.constant dense<0.000000e+00> : vector<8xf32>
    %162 = vector.multi_reduction <add>, %161, %cst_69 [1] : vector<8x32xf32> to vector<8xf32>
    %163 = vector.shape_cast %162 : vector<8xf32> to vector<8x1xf32>
    %cst_70 = arith.constant 3.200000e+01 : f32
    %164 = vector.broadcast %cst_70 : f32 to vector<8x1xf32>
    %165 = arith.divf %163, %164 : vector<8x1xf32>
    %166 = arith.mulf %160, %160 : vector<8x1xf32>
    %167 = arith.subf %165, %166 : vector<8x1xf32>
    %cst_71 = arith.constant 0.000000e+00 : f32
    %168 = vector.broadcast %cst_71 : f32 to vector<8x1xf32>
    %169 = arith.maximumf %167, %168 : vector<8x1xf32>
    %170 = vector.broadcast %160 : vector<8x1xf32> to vector<8x32xf32>
    %171 = arith.subf %156, %170 : vector<8x32xf32>
    %cst_72 = arith.constant 9.99999996E-13 : f32
    %172 = vector.broadcast %cst_72 : f32 to vector<8x1xf32>
    %173 = arith.addf %169, %172 : vector<8x1xf32>
    %174 = math.rsqrt %173 : vector<8x1xf32>
    %175 = vector.broadcast %174 : vector<8x1xf32> to vector<8x32xf32>
    %176 = arith.mulf %171, %175 : vector<8x32xf32>
    %c0_73 = arith.constant 0 : index
    %c0_74 = arith.constant 0 : index
    %177 = vector.load %arg19[%c0_73, %c0_74] : memref<1x32xf32, #tpu.memory_space<vmem>>, vector<1x32xf32>
    %178 = vector.broadcast %177 : vector<1x32xf32> to vector<8x32xf32>
    %179 = arith.mulf %176, %178 : vector<8x32xf32>
    %c0_75 = arith.constant 0 : index
    %c0_76 = arith.constant 0 : index
    %180 = vector.load %arg20[%c0_75, %c0_76] : memref<1x32xf32, #tpu.memory_space<vmem>>, vector<1x32xf32>
    %181 = vector.broadcast %180 : vector<1x32xf32> to vector<8x32xf32>
    %182 = arith.addf %179, %181 : vector<8x32xf32>
    %c0_77 = arith.constant 0 : index
    %c0_78 = arith.constant 0 : index
    %c0_79 = arith.constant 0 : index
    %183 = vector.load %arg21[%c0_77, %c0_78, %c0_79] : memref<1x8x32xf32, #tpu.memory_space<vmem>>, vector<1x8x32xf32>
    %184 = vector.shape_cast %183 : vector<1x8x32xf32> to vector<8x32xf32>
    %185 = vector.shape_cast %182 : vector<8x32xf32> to vector<1x8x32xf32>
    tpu.vector_store %arg21[%c0_77, %c0_78, %c0_79], %185 {strides = array<i32>} : memref<1x8x32xf32, #tpu.memory_space<vmem>>, vector<1x8x32xf32>,
    return
  }
  func.func @transform_0(%arg0: i32, %arg1: i32) -> (i32, i32, i32) {
    %c0_i32 = arith.constant 0 : i32
    %c0_i32_0 = arith.constant 0 : i32
    return %arg0, %arg1, %c0_i32 : i32, i32, i32
  }
  func.func @transform_1(%arg0: i32, %arg1: i32) -> (i32, i32, i32) {
    %c0_i32 = arith.constant 0 : i32
    %c0_i32_0 = arith.constant 0 : i32
    %c0_i32_1 = arith.constant 0 : i32
    return %arg0, %c0_i32, %c0_i32_0 : i32, i32, i32
  }
  func.func @transform_2(%arg0: i32, %arg1: i32) -> (i32, i32, i32) {
    %c0_i32 = arith.constant 0 : i32
    %c0_i32_0 = arith.constant 0 : i32
    %c0_i32_1 = arith.constant 0 : i32
    return %arg0, %c0_i32, %c0_i32_0 : i32, i32, i32
  }
  func.func @transform_3(%arg0: i32, %arg1: i32) -> (i32, i32) {
    %c0_i32 = arith.constant 0 : i32
    %c0_i32_0 = arith.constant 0 : i32
    %c0_i32_1 = arith.constant 0 : i32
    return %c0_i32, %c0_i32_0 : i32, i32
  }
  func.func @transform_4(%arg0: i32, %arg1: i32) -> (i32, i32) {
    %c0_i32 = arith.constant 0 : i32
    %c0_i32_0 = arith.constant 0 : i32
    %c0_i32_1 = arith.constant 0 : i32
    return %c0_i32, %c0_i32_0 : i32, i32
  }
  func.func @transform_5(%arg0: i32, %arg1: i32) -> (i32, i32) {
    %c0_i32 = arith.constant 0 : i32
    %c0_i32_0 = arith.constant 0 : i32
    %c0_i32_1 = arith.constant 0 : i32
    return %c0_i32, %c0_i32_0 : i32, i32
  }
  func.func @transform_6(%arg0: i32, %arg1: i32) -> (i32, i32) {
    %c0_i32 = arith.constant 0 : i32
    %c0_i32_0 = arith.constant 0 : i32
    %c0_i32_1 = arith.constant 0 : i32
    return %c0_i32, %c0_i32_0 : i32, i32
  }
  func.func @transform_7(%arg0: i32, %arg1: i32) -> (i32, i32) {
    %c0_i32 = arith.constant 0 : i32
    %c0_i32_0 = arith.constant 0 : i32
    %c0_i32_1 = arith.constant 0 : i32
    return %c0_i32, %c0_i32_0 : i32, i32
  }
  func.func @transform_8(%arg0: i32, %arg1: i32) -> (i32, i32) {
    %c0_i32 = arith.constant 0 : i32
    %c0_i32_0 = arith.constant 0 : i32
    %c0_i32_1 = arith.constant 0 : i32
    return %c0_i32, %c0_i32_0 : i32, i32
  }
  func.func @transform_9(%arg0: i32, %arg1: i32) -> (i32, i32) {
    %c0_i32 = arith.constant 0 : i32
    %c0_i32_0 = arith.constant 0 : i32
    %c0_i32_1 = arith.constant 0 : i32
    return %c0_i32, %c0_i32_0 : i32, i32
  }
  func.func @transform_10(%arg0: i32, %arg1: i32) -> (i32, i32) {
    %c0_i32 = arith.constant 0 : i32
    %c0_i32_0 = arith.constant 0 : i32
    %c0_i32_1 = arith.constant 0 : i32
    return %c0_i32, %c0_i32_0 : i32, i32
  }
  func.func @transform_11(%arg0: i32, %arg1: i32) -> (i32, i32) {
    %c0_i32 = arith.constant 0 : i32
    %c0_i32_0 = arith.constant 0 : i32
    %c0_i32_1 = arith.constant 0 : i32
    return %c0_i32, %c0_i32_0 : i32, i32
  }
  func.func @transform_12(%arg0: i32, %arg1: i32) -> (i32, i32) {
    %c0_i32 = arith.constant 0 : i32
    %c0_i32_0 = arith.constant 0 : i32
    %c0_i32_1 = arith.constant 0 : i32
    return %c0_i32, %c0_i32_0 : i32, i32
  }
  func.func @transform_13(%arg0: i32, %arg1: i32) -> (i32, i32) {
    %c0_i32 = arith.constant 0 : i32
    %c0_i32_0 = arith.constant 0 : i32
    %c0_i32_1 = arith.constant 0 : i32
    return %c0_i32, %c0_i32_0 : i32, i32
  }
  func.func @transform_14(%arg0: i32, %arg1: i32) -> (i32, i32) {
    %c0_i32 = arith.constant 0 : i32
    %c0_i32_0 = arith.constant 0 : i32
    %c0_i32_1 = arith.constant 0 : i32
    return %c0_i32, %c0_i32_0 : i32, i32
  }
  func.func @transform_15(%arg0: i32, %arg1: i32) -> (i32, i32) {
    %c0_i32 = arith.constant 0 : i32
    %c0_i32_0 = arith.constant 0 : i32
    %c0_i32_1 = arith.constant 0 : i32
    return %c0_i32, %c0_i32_0 : i32, i32
  }
  func.func @transform_16(%arg0: i32, %arg1: i32) -> (i32, i32) {
    %c0_i32 = arith.constant 0 : i32
    %c0_i32_0 = arith.constant 0 : i32
    %c0_i32_1 = arith.constant 0 : i32
    return %c0_i32, %c0_i32_0 : i32, i32
  }
  func.func @transform_17(%arg0: i32, %arg1: i32) -> (i32, i32) {
    %c0_i32 = arith.constant 0 : i32
    %c0_i32_0 = arith.constant 0 : i32
    %c0_i32_1 = arith.constant 0 : i32
    return %c0_i32, %c0_i32_0 : i32, i32
  }
  func.func @transform_18(%arg0: i32, %arg1: i32) -> (i32, i32) {
    %c0_i32 = arith.constant 0 : i32
    %c0_i32_0 = arith.constant 0 : i32
    %c0_i32_1 = arith.constant 0 : i32
    return %c0_i32, %c0_i32_0 : i32, i32
  }
  func.func @transform_19(%arg0: i32, %arg1: i32) -> (i32, i32, i32) {
    %c0_i32 = arith.constant 0 : i32
    %c0_i32_0 = arith.constant 0 : i32
    return %arg0, %arg1, %c0_i32 : i32, i32, i32
  }
}

module attributes {stable_mosaic.version = 11 : i64} {
  func.func @encoder_layer_kernel(%arg0: i32, %arg1: i32, %arg2: memref<1x8x32xf32, #tpu.memory_space<vmem>>, %arg3: memref<1x8x32xf32, #tpu.memory_space<vmem>>, %arg4: memref<1x1x8xf32, #tpu.memory_space<vmem>>, %arg5: memref<32x32xbf16, #tpu.memory_space<vmem>>, %arg6: memref<1x32xf32, #tpu.memory_space<vmem>>, %arg7: memref<32x32xbf16, #tpu.memory_space<vmem>>, %arg8: memref<1x32xf32, #tpu.memory_space<vmem>>, %arg9: memref<32x32xbf16, #tpu.memory_space<vmem>>, %arg10: memref<1x32xf32, #tpu.memory_space<vmem>>, %arg11: memref<32x32xbf16, #tpu.memory_space<vmem>>, %arg12: memref<1x32xf32, #tpu.memory_space<vmem>>, %arg13: memref<1x32xf32, #tpu.memory_space<vmem>>, %arg14: memref<1x32xf32, #tpu.memory_space<vmem>>, %arg15: memref<32x64xbf16, #tpu.memory_space<vmem>>, %arg16: memref<1x64xf32, #tpu.memory_space<vmem>>, %arg17: memref<64x32xbf16, #tpu.memory_space<vmem>>, %arg18: memref<1x32xf32, #tpu.memory_space<vmem>>, %arg19: memref<1x32xf32, #tpu.memory_space<vmem>>, %arg20: memref<1x32xf32, #tpu.memory_space<vmem>>, %arg21: memref<1x8x32xf32, #tpu.memory_space<vmem>>) attributes {dimension_semantics = [#tpu.dimension_semantics<parallel>, #tpu.dimension_semantics<parallel>], iteration_bounds = array<i64: 2, 1>, scalar_prefetch = 0 : i64, scratch_operands = 0 : i64, tpu.core_type = #tpu.core_type<tc>, window_params = [{transform_indices = @transform_0, window_bounds = array<i64: 1, 8, 32>}, {transform_indices = @transform_1, window_bounds = array<i64: 1, 8, 32>}, {transform_indices = @transform_2, window_bounds = array<i64: 1, 1, 8>}, {pipeline_mode = #tpu.pipeline_mode<synchronous>, transform_indices = @transform_3, window_bounds = array<i64: 32, 32>}, {pipeline_mode = #tpu.pipeline_mode<synchronous>, transform_indices = @transform_4, window_bounds = array<i64: 1, 32>}, {pipeline_mode = #tpu.pipeline_mode<synchronous>, transform_indices = @transform_5, window_bounds = array<i64: 32, 32>}, {pipeline_mode = #tpu.pipeline_mode<synchronous>, transform_indices = @transform_6, window_bounds = array<i64: 1, 32>}, {pipeline_mode = #tpu.pipeline_mode<synchronous>, transform_indices = @transform_7, window_bounds = array<i64: 32, 32>}, {pipeline_mode = #tpu.pipeline_mode<synchronous>, transform_indices = @transform_8, window_bounds = array<i64: 1, 32>}, {pipeline_mode = #tpu.pipeline_mode<synchronous>, transform_indices = @transform_9, window_bounds = array<i64: 32, 32>}, {pipeline_mode = #tpu.pipeline_mode<synchronous>, transform_indices = @transform_10, window_bounds = array<i64: 1, 32>}, {pipeline_mode = #tpu.pipeline_mode<synchronous>, transform_indices = @transform_11, window_bounds = array<i64: 1, 32>}, {pipeline_mode = #tpu.pipeline_mode<synchronous>, transform_indices = @transform_12, window_bounds = array<i64: 1, 32>}, {pipeline_mode = #tpu.pipeline_mode<synchronous>, transform_indices = @transform_13, window_bounds = array<i64: 32, 64>}, {pipeline_mode = #tpu.pipeline_mode<synchronous>, transform_indices = @transform_14, window_bounds = array<i64: 1, 64>}, {pipeline_mode = #tpu.pipeline_mode<synchronous>, transform_indices = @transform_15, window_bounds = array<i64: 64, 32>}, {pipeline_mode = #tpu.pipeline_mode<synchronous>, transform_indices = @transform_16, window_bounds = array<i64: 1, 32>}, {pipeline_mode = #tpu.pipeline_mode<synchronous>, transform_indices = @transform_17, window_bounds = array<i64: 1, 32>}, {pipeline_mode = #tpu.pipeline_mode<synchronous>, transform_indices = @transform_18, window_bounds = array<i64: 1, 32>}, {transform_indices = @transform_19, window_bounds = array<i64: 1, 8, 32>}]} {
    %c0 = arith.constant 0 : index
    %c0_0 = arith.constant 0 : index
    %c0_1 = arith.constant 0 : index
    %0 = vector.load %arg2[%c0, %c0_0, %c0_1] : memref<1x8x32xf32, #tpu.memory_space<vmem>>, vector<1x8x32xf32>
    %1 = vector.shape_cast %0 : vector<1x8x32xf32> to vector<8x32xf32>
    %c0_2 = arith.constant 0 : index
    %c0_3 = arith.constant 0 : index
    %c0_4 = arith.constant 0 : index
    %2 = vector.load %arg3[%c0_2, %c0_3, %c0_4] : memref<1x8x32xf32, #tpu.memory_space<vmem>>, vector<1x8x32xf32>
    %3 = vector.shape_cast %2 : vector<1x8x32xf32> to vector<8x32xf32>
    %c0_5 = arith.constant 0 : index
    %c0_6 = arith.constant 0 : index
    %c0_7 = arith.constant 0 : index
    %4 = vector.load %arg4[%c0_5, %c0_6, %c0_7] : memref<1x1x8xf32, #tpu.memory_space<vmem>>, vector<1x1x8xf32>
    %5 = vector.shape_cast %4 : vector<1x1x8xf32> to vector<1x8xf32>
    %cst = arith.constant 1.000000e+00 : f32
    %6 = vector.broadcast %cst : f32 to vector<1x8xf32>
    %7 = arith.subf %5, %6 : vector<1x8xf32>
    %cst_8 = arith.constant 1.000000e+04 : f32
    %8 = vector.broadcast %cst_8 : f32 to vector<1x8xf32>
    %9 = arith.mulf %7, %8 : vector<1x8xf32>
    %10 = arith.truncf %1 : vector<8x32xf32> to vector<8x32xbf16>
    %11 = arith.truncf %3 : vector<8x32xf32> to vector<8x32xbf16>
    %c0_9 = arith.constant 0 : index
    %c0_10 = arith.constant 0 : index
    %12 = vector.load %arg5[%c0_9, %c0_10] : memref<32x32xbf16, #tpu.memory_space<vmem>>, vector<32x32xbf16>
    %cst_11 = arith.constant dense<0.000000e+00> : vector<8x32xf32>
    %13 = tpu.matmul %10, %12, %cst_11 {dimension_numbers = #tpu.dot_dimension_numbers<[1], [0], [0], [1], [0, 0, 1, 1], [], []>} : vector<8x32xbf16>, vector<32x32xbf16>, vector<8x32xf32> -> vector<8x32xf32>
    %c0_12 = arith.constant 0 : index
    %c0_13 = arith.constant 0 : index
    %14 = vector.load %arg6[%c0_12, %c0_13] : memref<1x32xf32, #tpu.memory_space<vmem>>, vector<1x32xf32>
    %15 = vector.broadcast %14 : vector<1x32xf32> to vector<8x32xf32>
    %16 = arith.addf %13, %15 : vector<8x32xf32>
    %cst_14 = arith.constant 0.353553385 : f32
    %17 = vector.broadcast %cst_14 : f32 to vector<8x32xf32>
    %18 = arith.mulf %16, %17 : vector<8x32xf32>
    %c0_15 = arith.constant 0 : index
    %c0_16 = arith.constant 0 : index
    %19 = vector.load %arg7[%c0_15, %c0_16] : memref<32x32xbf16, #tpu.memory_space<vmem>>, vector<32x32xbf16>
    %cst_17 = arith.constant dense<0.000000e+00> : vector<8x32xf32>
    %20 = tpu.matmul %11, %19, %cst_17 {dimension_numbers = #tpu.dot_dimension_numbers<[1], [0], [0], [1], [0, 0, 1, 1], [], []>} : vector<8x32xbf16>, vector<32x32xbf16>, vector<8x32xf32> -> vector<8x32xf32>
    %c0_18 = arith.constant 0 : index
    %c0_19 = arith.constant 0 : index
    %21 = vector.load %arg8[%c0_18, %c0_19] : memref<1x32xf32, #tpu.memory_space<vmem>>, vector<1x32xf32>
    %22 = vector.broadcast %21 : vector<1x32xf32> to vector<8x32xf32>
    %23 = arith.addf %20, %22 : vector<8x32xf32>
    %c0_20 = arith.constant 0 : index
    %c0_21 = arith.constant 0 : index
    %24 = vector.load %arg9[%c0_20, %c0_21] : memref<32x32xbf16, #tpu.memory_space<vmem>>, vector<32x32xbf16>
    %cst_22 = arith.constant dense<0.000000e+00> : vector<8x32xf32>
    %25 = tpu.matmul %11, %24, %cst_22 {dimension_numbers = #tpu.dot_dimension_numbers<[1], [0], [0], [1], [0, 0, 1, 1], [], []>} : vector<8x32xbf16>, vector<32x32xbf16>, vector<8x32xf32> -> vector<8x32xf32>
    %c0_23 = arith.constant 0 : index
    %c0_24 = arith.constant 0 : index
    %26 = vector.load %arg10[%c0_23, %c0_24] : memref<1x32xf32, #tpu.memory_space<vmem>>, vector<1x32xf32>
    %27 = vector.broadcast %26 : vector<1x32xf32> to vector<8x32xf32>
    %28 = arith.addf %25, %27 : vector<8x32xf32>
    %29 = arith.truncf %18 : vector<8x32xf32> to vector<8x32xbf16>
    %30 = arith.truncf %23 : vector<8x32xf32> to vector<8x32xbf16>
    %31 = arith.truncf %28 : vector<8x32xf32> to vector<8x32xbf16>
    %32 = vector.extract_strided_slice %29 {offsets = [0, 0], sizes = [8, 8], strides = [1, 1]} : vector<8x32xbf16> to vector<8x8xbf16>
    %33 = vector.extract_strided_slice %30 {offsets = [0, 0], sizes = [8, 8], strides = [1, 1]} : vector<8x32xbf16> to vector<8x8xbf16>
    %34 = tpu.transpose %33, [1, 0] : vector<8x8xbf16> -> vector<8x8xbf16>
    %cst_25 = arith.constant dense<0.000000e+00> : vector<8x8xf32>
    %35 = tpu.matmul %32, %34, %cst_25 {dimension_numbers = #tpu.dot_dimension_numbers<[1], [0], [0], [1], [0, 0, 1, 1], [], []>} : vector<8x8xbf16>, vector<8x8xbf16>, vector<8x8xf32> -> vector<8x8xf32>
    %36 = vector.broadcast %9 : vector<1x8xf32> to vector<8x8xf32>
    %37 = arith.addf %35, %36 : vector<8x8xf32>
    %cst_26 = arith.constant dense<0xFF800000> : vector<8xf32>
    %38 = vector.multi_reduction <maximumf>, %37, %cst_26 [1] : vector<8x8xf32> to vector<8xf32>
    %39 = vector.shape_cast %38 : vector<8xf32> to vector<8x1xf32>
    %40 = vector.broadcast %39 : vector<8x1xf32> to vector<8x8xf32>
    %41 = arith.subf %37, %40 : vector<8x8xf32>
    %42 = math.exp %41 : vector<8x8xf32>
    %cst_27 = arith.constant dense<0.000000e+00> : vector<8xf32>
    %43 = vector.multi_reduction <add>, %42, %cst_27 [1] : vector<8x8xf32> to vector<8xf32>
    %44 = vector.shape_cast %43 : vector<8xf32> to vector<8x1xf32>
    %45 = tpu.reciprocal %44 {approx = true} : vector<8x1xf32> -> vector<8x1xf32>
    %46 = vector.broadcast %45 : vector<8x1xf32> to vector<8x8xf32>
    %47 = arith.mulf %42, %46 : vector<8x8xf32>
    %48 = arith.truncf %47 : vector<8x8xf32> to vector<8x8xbf16>
    %49 = vector.extract_strided_slice %31 {offsets = [0, 0], sizes = [8, 8], strides = [1, 1]} : vector<8x32xbf16> to vector<8x8xbf16>
    %cst_28 = arith.constant dense<0.000000e+00> : vector<8x8xf32>
    %50 = tpu.matmul %48, %49, %cst_28 {dimension_numbers = #tpu.dot_dimension_numbers<[1], [0], [0], [1], [0, 0, 1, 1], [], []>} : vector<8x8xbf16>, vector<8x8xbf16>, vector<8x8xf32> -> vector<8x8xf32>
    %51 = vector.extract_strided_slice %29 {offsets = [0, 8], sizes = [8, 8], strides = [1, 1]} : vector<8x32xbf16> to vector<8x8xbf16>
    %52 = vector.extract_strided_slice %30 {offsets = [0, 8], sizes = [8, 8], strides = [1, 1]} : vector<8x32xbf16> to vector<8x8xbf16>
    %53 = tpu.transpose %52, [1, 0] : vector<8x8xbf16> -> vector<8x8xbf16>
    %cst_29 = arith.constant dense<0.000000e+00> : vector<8x8xf32>
    %54 = tpu.matmul %51, %53, %cst_29 {dimension_numbers = #tpu.dot_dimension_numbers<[1], [0], [0], [1], [0, 0, 1, 1], [], []>} : vector<8x8xbf16>, vector<8x8xbf16>, vector<8x8xf32> -> vector<8x8xf32>
    %55 = vector.broadcast %9 : vector<1x8xf32> to vector<8x8xf32>
    %56 = arith.addf %54, %55 : vector<8x8xf32>
    %cst_30 = arith.constant dense<0xFF800000> : vector<8xf32>
    %57 = vector.multi_reduction <maximumf>, %56, %cst_30 [1] : vector<8x8xf32> to vector<8xf32>
    %58 = vector.shape_cast %57 : vector<8xf32> to vector<8x1xf32>
    %59 = vector.broadcast %58 : vector<8x1xf32> to vector<8x8xf32>
    %60 = arith.subf %56, %59 : vector<8x8xf32>
    %61 = math.exp %60 : vector<8x8xf32>
    %cst_31 = arith.constant dense<0.000000e+00> : vector<8xf32>
    %62 = vector.multi_reduction <add>, %61, %cst_31 [1] : vector<8x8xf32> to vector<8xf32>
    %63 = vector.shape_cast %62 : vector<8xf32> to vector<8x1xf32>
    %64 = tpu.reciprocal %63 {approx = true} : vector<8x1xf32> -> vector<8x1xf32>
    %65 = vector.broadcast %64 : vector<8x1xf32> to vector<8x8xf32>
    %66 = arith.mulf %61, %65 : vector<8x8xf32>
    %67 = arith.truncf %66 : vector<8x8xf32> to vector<8x8xbf16>
    %68 = vector.extract_strided_slice %31 {offsets = [0, 8], sizes = [8, 8], strides = [1, 1]} : vector<8x32xbf16> to vector<8x8xbf16>
    %cst_32 = arith.constant dense<0.000000e+00> : vector<8x8xf32>
    %69 = tpu.matmul %67, %68, %cst_32 {dimension_numbers = #tpu.dot_dimension_numbers<[1], [0], [0], [1], [0, 0, 1, 1], [], []>} : vector<8x8xbf16>, vector<8x8xbf16>, vector<8x8xf32> -> vector<8x8xf32>
    %70 = vector.extract_strided_slice %29 {offsets = [0, 16], sizes = [8, 8], strides = [1, 1]} : vector<8x32xbf16> to vector<8x8xbf16>
    %71 = vector.extract_strided_slice %30 {offsets = [0, 16], sizes = [8, 8], strides = [1, 1]} : vector<8x32xbf16> to vector<8x8xbf16>
    %72 = tpu.transpose %71, [1, 0] : vector<8x8xbf16> -> vector<8x8xbf16>
    %cst_33 = arith.constant dense<0.000000e+00> : vector<8x8xf32>
    %73 = tpu.matmul %70, %72, %cst_33 {dimension_numbers = #tpu.dot_dimension_numbers<[1], [0], [0], [1], [0, 0, 1, 1], [], []>} : vector<8x8xbf16>, vector<8x8xbf16>, vector<8x8xf32> -> vector<8x8xf32>
    %74 = vector.broadcast %9 : vector<1x8xf32> to vector<8x8xf32>
    %75 = arith.addf %73, %74 : vector<8x8xf32>
    %cst_34 = arith.constant dense<0xFF800000> : vector<8xf32>
    %76 = vector.multi_reduction <maximumf>, %75, %cst_34 [1] : vector<8x8xf32> to vector<8xf32>
    %77 = vector.shape_cast %76 : vector<8xf32> to vector<8x1xf32>
    %78 = vector.broadcast %77 : vector<8x1xf32> to vector<8x8xf32>
    %79 = arith.subf %75, %78 : vector<8x8xf32>
    %80 = math.exp %79 : vector<8x8xf32>
    %cst_35 = arith.constant dense<0.000000e+00> : vector<8xf32>
    %81 = vector.multi_reduction <add>, %80, %cst_35 [1] : vector<8x8xf32> to vector<8xf32>
    %82 = vector.shape_cast %81 : vector<8xf32> to vector<8x1xf32>
    %83 = tpu.reciprocal %82 {approx = true} : vector<8x1xf32> -> vector<8x1xf32>
    %84 = vector.broadcast %83 : vector<8x1xf32> to vector<8x8xf32>
    %85 = arith.mulf %80, %84 : vector<8x8xf32>
    %86 = arith.truncf %85 : vector<8x8xf32> to vector<8x8xbf16>
    %87 = vector.extract_strided_slice %31 {offsets = [0, 16], sizes = [8, 8], strides = [1, 1]} : vector<8x32xbf16> to vector<8x8xbf16>
    %cst_36 = arith.constant dense<0.000000e+00> : vector<8x8xf32>
    %88 = tpu.matmul %86, %87, %cst_36 {dimension_numbers = #tpu.dot_dimension_numbers<[1], [0], [0], [1], [0, 0, 1, 1], [], []>} : vector<8x8xbf16>, vector<8x8xbf16>, vector<8x8xf32> -> vector<8x8xf32>
    %89 = vector.extract_strided_slice %29 {offsets = [0, 24], sizes = [8, 8], strides = [1, 1]} : vector<8x32xbf16> to vector<8x8xbf16>
    %90 = vector.extract_strided_slice %30 {offsets = [0, 24], sizes = [8, 8], strides = [1, 1]} : vector<8x32xbf16> to vector<8x8xbf16>
    %91 = tpu.transpose %90, [1, 0] : vector<8x8xbf16> -> vector<8x8xbf16>
    %cst_37 = arith.constant dense<0.000000e+00> : vector<8x8xf32>
    %92 = tpu.matmul %89, %91, %cst_37 {dimension_numbers = #tpu.dot_dimension_numbers<[1], [0], [0], [1], [0, 0, 1, 1], [], []>} : vector<8x8xbf16>, vector<8x8xbf16>, vector<8x8xf32> -> vector<8x8xf32>
    %93 = vector.broadcast %9 : vector<1x8xf32> to vector<8x8xf32>
    %94 = arith.addf %92, %93 : vector<8x8xf32>
    %cst_38 = arith.constant dense<0xFF800000> : vector<8xf32>
    %95 = vector.multi_reduction <maximumf>, %94, %cst_38 [1] : vector<8x8xf32> to vector<8xf32>
    %96 = vector.shape_cast %95 : vector<8xf32> to vector<8x1xf32>
    %97 = vector.broadcast %96 : vector<8x1xf32> to vector<8x8xf32>
    %98 = arith.subf %94, %97 : vector<8x8xf32>
    %99 = math.exp %98 : vector<8x8xf32>
    %cst_39 = arith.constant dense<0.000000e+00> : vector<8xf32>
    %100 = vector.multi_reduction <add>, %99, %cst_39 [1] : vector<8x8xf32> to vector<8xf32>
    %101 = vector.shape_cast %100 : vector<8xf32> to vector<8x1xf32>
    %102 = tpu.reciprocal %101 {approx = true} : vector<8x1xf32> -> vector<8x1xf32>
    %103 = vector.broadcast %102 : vector<8x1xf32> to vector<8x8xf32>
    %104 = arith.mulf %99, %103 : vector<8x8xf32>
    %105 = arith.truncf %104 : vector<8x8xf32> to vector<8x8xbf16>
    %106 = vector.extract_strided_slice %31 {offsets = [0, 24], sizes = [8, 8], strides = [1, 1]} : vector<8x32xbf16> to vector<8x8xbf16>
    %cst_40 = arith.constant dense<0.000000e+00> : vector<8x8xf32>
    %107 = tpu.matmul %105, %106, %cst_40 {dimension_numbers = #tpu.dot_dimension_numbers<[1], [0], [0], [1], [0, 0, 1, 1], [], []>} : vector<8x8xbf16>, vector<8x8xbf16>, vector<8x8xf32> -> vector<8x8xf32>
    %108 = tpu.concatenate %50, %69, %88, %107 in 1 : vector<8x8xf32>, vector<8x8xf32>, vector<8x8xf32>, vector<8x8xf32> -> vector<8x32xf32>
    %109 = arith.truncf %108 : vector<8x32xf32> to vector<8x32xbf16>
    %c0_41 = arith.constant 0 : index
    %c0_42 = arith.constant 0 : index
    %110 = vector.load %arg11[%c0_41, %c0_42] : memref<32x32xbf16, #tpu.memory_space<vmem>>, vector<32x32xbf16>
    %cst_43 = arith.constant dense<0.000000e+00> : vector<8x32xf32>
    %111 = tpu.matmul %109, %110, %cst_43 {dimension_numbers = #tpu.dot_dimension_numbers<[1], [0], [0], [1], [0, 0, 1, 1], [], []>} : vector<8x32xbf16>, vector<32x32xbf16>, vector<8x32xf32> -> vector<8x32xf32>
    %c0_44 = arith.constant 0 : index
    %c0_45 = arith.constant 0 : index
    %112 = vector.load %arg12[%c0_44, %c0_45] : memref<1x32xf32, #tpu.memory_space<vmem>>, vector<1x32xf32>
    %113 = vector.broadcast %112 : vector<1x32xf32> to vector<8x32xf32>
    %114 = arith.addf %111, %113 : vector<8x32xf32>
    %115 = arith.addf %1, %114 : vector<8x32xf32>
    %cst_46 = arith.constant dense<0.000000e+00> : vector<8xf32>
    %116 = vector.multi_reduction <add>, %115, %cst_46 [1] : vector<8x32xf32> to vector<8xf32>
    %117 = vector.shape_cast %116 : vector<8xf32> to vector<8x1xf32>
    %cst_47 = arith.constant 3.200000e+01 : f32
    %118 = vector.broadcast %cst_47 : f32 to vector<8x1xf32>
    %119 = arith.divf %117, %118 : vector<8x1xf32>
    %120 = arith.mulf %115, %115 : vector<8x32xf32>
    %cst_48 = arith.constant dense<0.000000e+00> : vector<8xf32>
    %121 = vector.multi_reduction <add>, %120, %cst_48 [1] : vector<8x32xf32> to vector<8xf32>
    %122 = vector.shape_cast %121 : vector<8xf32> to vector<8x1xf32>
    %cst_49 = arith.constant 3.200000e+01 : f32
    %123 = vector.broadcast %cst_49 : f32 to vector<8x1xf32>
    %124 = arith.divf %122, %123 : vector<8x1xf32>
    %125 = arith.mulf %119, %119 : vector<8x1xf32>
    %126 = arith.subf %124, %125 : vector<8x1xf32>
    %cst_50 = arith.constant 0.000000e+00 : f32
    %127 = vector.broadcast %cst_50 : f32 to vector<8x1xf32>
    %128 = arith.maximumf %126, %127 : vector<8x1xf32>
    %129 = vector.broadcast %119 : vector<8x1xf32> to vector<8x32xf32>
    %130 = arith.subf %115, %129 : vector<8x32xf32>
    %cst_51 = arith.constant 9.99999996E-13 : f32
    %131 = vector.broadcast %cst_51 : f32 to vector<8x1xf32>
    %132 = arith.addf %128, %131 : vector<8x1xf32>
    %133 = math.rsqrt %132 : vector<8x1xf32>
    %134 = vector.broadcast %133 : vector<8x1xf32> to vector<8x32xf32>
    %135 = arith.mulf %130, %134 : vector<8x32xf32>
    %c0_52 = arith.constant 0 : index
    %c0_53 = arith.constant 0 : index
    %136 = vector.load %arg13[%c0_52, %c0_53] : memref<1x32xf32, #tpu.memory_space<vmem>>, vector<1x32xf32>
    %137 = vector.broadcast %136 : vector<1x32xf32> to vector<8x32xf32>
    %138 = arith.mulf %135, %137 : vector<8x32xf32>
    %c0_54 = arith.constant 0 : index
    %c0_55 = arith.constant 0 : index
    %139 = vector.load %arg14[%c0_54, %c0_55] : memref<1x32xf32, #tpu.memory_space<vmem>>, vector<1x32xf32>
    %140 = vector.broadcast %139 : vector<1x32xf32> to vector<8x32xf32>
    %141 = arith.addf %138, %140 : vector<8x32xf32>
    %142 = arith.truncf %141 : vector<8x32xf32> to vector<8x32xbf16>
    %c0_56 = arith.constant 0 : index
    %c0_57 = arith.constant 0 : index
    %143 = vector.load %arg15[%c0_56, %c0_57] : memref<32x64xbf16, #tpu.memory_space<vmem>>, vector<32x64xbf16>
    %cst_58 = arith.constant dense<0.000000e+00> : vector<8x64xf32>
    %144 = tpu.matmul %142, %143, %cst_58 {dimension_numbers = #tpu.dot_dimension_numbers<[1], [0], [0], [1], [0, 0, 1, 1], [], []>} : vector<8x32xbf16>, vector<32x64xbf16>, vector<8x64xf32> -> vector<8x64xf32>
    %c0_59 = arith.constant 0 : index
    %c0_60 = arith.constant 0 : index
    %145 = vector.load %arg16[%c0_59, %c0_60] : memref<1x64xf32, #tpu.memory_space<vmem>>, vector<1x64xf32>
    %146 = vector.broadcast %145 : vector<1x64xf32> to vector<8x64xf32>
    %147 = arith.addf %144, %146 : vector<8x64xf32>
    %cst_61 = arith.constant 0.000000e+00 : f32
    %148 = vector.broadcast %cst_61 : f32 to vector<8x64xf32>
    %149 = arith.maximumf %147, %148 : vector<8x64xf32>
    %150 = arith.truncf %149 : vector<8x64xf32> to vector<8x64xbf16>
    %c0_62 = arith.constant 0 : index
    %c0_63 = arith.constant 0 : index
    %151 = vector.load %arg17[%c0_62, %c0_63] : memref<64x32xbf16, #tpu.memory_space<vmem>>, vector<64x32xbf16>
    %cst_64 = arith.constant dense<0.000000e+00> : vector<8x32xf32>
    %152 = tpu.matmul %150, %151, %cst_64 {dimension_numbers = #tpu.dot_dimension_numbers<[1], [0], [0], [1], [0, 0, 1, 1], [], []>} : vector<8x64xbf16>, vector<64x32xbf16>, vector<8x32xf32> -> vector<8x32xf32>
    %c0_65 = arith.constant 0 : index
    %c0_66 = arith.constant 0 : index
    %153 = vector.load %arg18[%c0_65, %c0_66] : memref<1x32xf32, #tpu.memory_space<vmem>>, vector<1x32xf32>
    %154 = vector.broadcast %153 : vector<1x32xf32> to vector<8x32xf32>
    %155 = arith.addf %152, %154 : vector<8x32xf32>
    %156 = arith.addf %141, %155 : vector<8x32xf32>
    %cst_67 = arith.constant dense<0.000000e+00> : vector<8xf32>
    %157 = vector.multi_reduction <add>, %156, %cst_67 [1] : vector<8x32xf32> to vector<8xf32>
    %158 = vector.shape_cast %157 : vector<8xf32> to vector<8x1xf32>
    %cst_68 = arith.constant 3.200000e+01 : f32
    %159 = vector.broadcast %cst_68 : f32 to vector<8x1xf32>
    %160 = arith.divf %158, %159 : vector<8x1xf32>
    %161 = arith.mulf %156, %156 : vector<8x32xf32>
    %cst_69 = arith.constant dense<0.000000e+00> : vector<8xf32>
    %162 = vector.multi_reduction <add>, %161, %cst_69 [1] : vector<8x32xf32> to vector<8xf32>
    %163 = vector.shape_cast %162 : vector<8xf32> to vector<8x1xf32>
    %cst_70 = arith.constant 3.200000e+01 : f32
    %164 = vector.broadcast %cst_70 : f32 to vector<8x1xf32>
    %165 = arith.divf %163, %164 : vector<8x1xf32>
    %166 = arith.mulf %160, %160 : vector<8x1xf32>
    %167 = arith.subf %165, %166 : vector<8x1xf32>
    %cst_71 = arith.constant 0.000000e+00 : f32
    %168 = vector.broadcast %cst_71 : f32 to vector<8x1xf32>
    %169 = arith.maximumf %167, %168 : vector<8x1xf32>
    %170 = vector.broadcast %160 : vector<8x1xf32> to vector<8x32xf32>
    %171 = arith.subf %156, %170 : vector<8x32xf32>
    %cst_72 = arith.constant 9.99999996E-13 : f32
    %172 = vector.broadcast %cst_72 : f32 to vector<8x1xf32>
    %173 = arith.addf %169, %172 : vector<8x1xf32>
    %174 = math.rsqrt %173 : vector<8x1xf32>
    %175 = vector.broadcast %174 : vector<8x1xf32> to vector<8x32xf32>
    %176 = arith.mulf %171, %175 : vector<8x32xf32>
    %c0_73 = arith.constant 0 : index
    %c0_74 = arith.constant 0 : index
    %177 = vector.load %arg19[%c0_73, %c0_74] : memref<1x32xf32, #tpu.memory_space<vmem>>, vector<1x32xf32>
    %178 = vector.broadcast %177 : vector<1x32xf32> to vector<8x32xf32>
    %179 = arith.mulf %176, %178 : vector<8x32xf32>
    %c0_75 = arith.constant 0 : index
    %c0_76 = arith.constant 0 : index
    %180 = vector.load %arg20[%c0_75, %c0_76] : memref<1x32xf32, #tpu.memory_space<vmem>>, vector<1x32xf32>
    %181 = vector.broadcast %180 : vector<1x32xf32> to vector<8x32xf32>
    %182 = arith.addf %179, %181 : vector<8x32xf32>
    %c0_77 = arith.constant 0 : index
    %c0_78 = arith.constant 0 : index
    %c0_79 = arith.constant 0 : index
    %183 = vector.load %arg21[%c0_77, %c0_78, %c0_79] : memref<1x8x32xf32, #tpu.memory_space<vmem>>, vector<1x8x32xf32>
    %184 = vector.shape_cast %183 : vector<1x8x32xf32> to vector<8x32xf32>
    %185 = vector.shape_cast %182 : vector<8x32xf32> to vector<1x8x32xf32>
    tpu.vector_store %arg21[%c0_77, %c0_78, %c0_79], %185 {strides = array<i32>} : memref<1x8x32xf32, #tpu.memory_space<vmem>>, vector<1x8x32xf32>,
    return
  }
  func.func @transform_0(%arg0: i32, %arg1: i32) -> (i32, i32, i32) {
    %c0_i32 = arith.constant 0 : i32
    %c0_i32_0 = arith.constant 0 : i32
    return %arg0, %arg1, %c0_i32 : i32, i32, i32
  }
  func.func @transform_1(%arg0: i32, %arg1: i32) -> (i32, i32, i32) {
    %c0_i32 = arith.constant 0 : i32
    %c0_i32_0 = arith.constant 0 : i32
    %c0_i32_1 = arith.constant 0 : i32
    return %arg0, %c0_i32, %c0_i32_0 : i32, i32, i32
  }
  func.func @transform_2(%arg0: i32, %arg1: i32) -> (i32, i32, i32) {
    %c0_i32 = arith.constant 0 : i32
    %c0_i32_0 = arith.constant 0 : i32
    %c0_i32_1 = arith.constant 0 : i32
    return %arg0, %c0_i32, %c0_i32_0 : i32, i32, i32
  }
  func.func @transform_3(%arg0: i32, %arg1: i32) -> (i32, i32) {
    %c0_i32 = arith.constant 0 : i32
    %c0_i32_0 = arith.constant 0 : i32
    %c0_i32_1 = arith.constant 0 : i32
    return %c0_i32, %c0_i32_0 : i32, i32
  }
  func.func @transform_4(%arg0: i32, %arg1: i32) -> (i32, i32) {
    %c0_i32 = arith.constant 0 : i32
    %c0_i32_0 = arith.constant 0 : i32
    %c0_i32_1 = arith.constant 0 : i32
    return %c0_i32, %c0_i32_0 : i32, i32
  }
  func.func @transform_5(%arg0: i32, %arg1: i32) -> (i32, i32) {
    %c0_i32 = arith.constant 0 : i32
    %c0_i32_0 = arith.constant 0 : i32
    %c0_i32_1 = arith.constant 0 : i32
    return %c0_i32, %c0_i32_0 : i32, i32
  }
  func.func @transform_6(%arg0: i32, %arg1: i32) -> (i32, i32) {
    %c0_i32 = arith.constant 0 : i32
    %c0_i32_0 = arith.constant 0 : i32
    %c0_i32_1 = arith.constant 0 : i32
    return %c0_i32, %c0_i32_0 : i32, i32
  }
  func.func @transform_7(%arg0: i32, %arg1: i32) -> (i32, i32) {
    %c0_i32 = arith.constant 0 : i32
    %c0_i32_0 = arith.constant 0 : i32
    %c0_i32_1 = arith.constant 0 : i32
    return %c0_i32, %c0_i32_0 : i32, i32
  }
  func.func @transform_8(%arg0: i32, %arg1: i32) -> (i32, i32) {
    %c0_i32 = arith.constant 0 : i32
    %c0_i32_0 = arith.constant 0 : i32
    %c0_i32_1 = arith.constant 0 : i32
    return %c0_i32, %c0_i32_0 : i32, i32
  }
  func.func @transform_9(%arg0: i32, %arg1: i32) -> (i32, i32) {
    %c0_i32 = arith.constant 0 : i32
    %c0_i32_0 = arith.constant 0 : i32
    %c0_i32_1 = arith.constant 0 : i32
    return %c0_i32, %c0_i32_0 : i32, i32
  }
  func.func @transform_10(%arg0: i32, %arg1: i32) -> (i32, i32) {
    %c0_i32 = arith.constant 0 : i32
    %c0_i32_0 = arith.constant 0 : i32
    %c0_i32_1 = arith.constant 0 : i32
    return %c0_i32, %c0_i32_0 : i32, i32
  }
  func.func @transform_11(%arg0: i32, %arg1: i32) -> (i32, i32) {
    %c0_i32 = arith.constant 0 : i32
    %c0_i32_0 = arith.constant 0 : i32
    %c0_i32_1 = arith.constant 0 : i32
    return %c0_i32, %c0_i32_0 : i32, i32
  }
  func.func @transform_12(%arg0: i32, %arg1: i32) -> (i32, i32) {
    %c0_i32 = arith.constant 0 : i32
    %c0_i32_0 = arith.constant 0 : i32
    %c0_i32_1 = arith.constant 0 : i32
    return %c0_i32, %c0_i32_0 : i32, i32
  }
  func.func @transform_13(%arg0: i32, %arg1: i32) -> (i32, i32) {
    %c0_i32 = arith.constant 0 : i32
    %c0_i32_0 = arith.constant 0 : i32
    %c0_i32_1 = arith.constant 0 : i32
    return %c0_i32, %c0_i32_0 : i32, i32
  }
  func.func @transform_14(%arg0: i32, %arg1: i32) -> (i32, i32) {
    %c0_i32 = arith.constant 0 : i32
    %c0_i32_0 = arith.constant 0 : i32
    %c0_i32_1 = arith.constant 0 : i32
    return %c0_i32, %c0_i32_0 : i32, i32
  }
  func.func @transform_15(%arg0: i32, %arg1: i32) -> (i32, i32) {
    %c0_i32 = arith.constant 0 : i32
    %c0_i32_0 = arith.constant 0 : i32
    %c0_i32_1 = arith.constant 0 : i32
    return %c0_i32, %c0_i32_0 : i32, i32
  }
  func.func @transform_16(%arg0: i32, %arg1: i32) -> (i32, i32) {
    %c0_i32 = arith.constant 0 : i32
    %c0_i32_0 = arith.constant 0 : i32
    %c0_i32_1 = arith.constant 0 : i32
    return %c0_i32, %c0_i32_0 : i32, i32
  }
  func.func @transform_17(%arg0: i32, %arg1: i32) -> (i32, i32) {
    %c0_i32 = arith.constant 0 : i32
    %c0_i32_0 = arith.constant 0 : i32
    %c0_i32_1 = arith.constant 0 : i32
    return %c0_i32, %c0_i32_0 : i32, i32
  }
  func.func @transform_18(%arg0: i32, %arg1: i32) -> (i32, i32) {
    %c0_i32 = arith.constant 0 : i32
    %c0_i32_0 = arith.constant 0 : i32
    %c0_i32_1 = arith.constant 0 : i32
    return %c0_i32, %c0_i32_0 : i32, i32
  }
  func.func @transform_19(%arg0: i32, %arg1: i32) -> (i32, i32, i32) {
    %c0_i32 = arith.constant 0 : i32
    %c0_i32_0 = arith.constant 0 : i32
    return %arg0, %arg1, %c0_i32 : i32, i32, i32
  }
}

</mosaic_0001>

<llo_original>
// kernel: tpu_custom_call.1
$region0: #{tpu_custom_call.1}
  #allocation0 [shape = 'u32[]', space=smem, size = 0x4, offset = 0x4, fixed_abs, tag = 'smem constant byte address 0x4 - core index']
  #allocation1 [shape = 'u32[144,128]{1,0:T(1,128)}', space=vmem, size = 0x12000, scoped, tag = 'internal scratch']
  %s0 = inlined_call_operand.vmem [shape: f32[2,8,32], index: 0, kind: input, shape index: {}]
  %s1 = inlined_call_operand.vmem [shape: f32[2,8,32], index: 1, kind: input, shape index: {}]
  %s2 = inlined_call_operand.hbm [shape: f32[2,1,8], index: 2, kind: input, shape index: {}]
  %s3 = inlined_call_operand.vmem [shape: bf16[32,32], index: 3, kind: input, shape index: {}]
  %s4 = inlined_call_operand.vmem [shape: f32[1,32], index: 4, kind: input, shape index: {}]
  %s5 = inlined_call_operand.hbm [shape: bf16[32,32], index: 5, kind: input, shape index: {}]
  %s6 = inlined_call_operand.hbm [shape: f32[1,32], index: 6, kind: input, shape index: {}]
  %s7 = inlined_call_operand.hbm [shape: bf16[32,32], index: 7, kind: input, shape index: {}]
  %s8 = inlined_call_operand.hbm [shape: f32[1,32], index: 8, kind: input, shape index: {}]
  %s9 = inlined_call_operand.vmem [shape: bf16[32,32], index: 9, kind: input, shape index: {}]
  %s10 = inlined_call_operand.hbm [shape: f32[1,32], index: 10, kind: input, shape index: {}]
  %s11 = inlined_call_operand.hbm [shape: f32[1,32], index: 11, kind: input, shape index: {}]
  %s12 = inlined_call_operand.hbm [shape: f32[1,32], index: 12, kind: input, shape index: {}]
  %s13 = inlined_call_operand.vmem [shape: bf16[32,64], index: 13, kind: input, shape index: {}]
  %s14 = inlined_call_operand.vmem [shape: f32[1,64], index: 14, kind: input, shape index: {}]
  %s15 = inlined_call_operand.vmem [shape: bf16[64,32], index: 15, kind: input, shape index: {}]
  %s16 = inlined_call_operand.vmem [shape: f32[1,32], index: 16, kind: input, shape index: {}]
  %s17 = inlined_call_operand.vmem [shape: f32[1,32], index: 17, kind: input, shape index: {}]
  %s18 = inlined_call_operand.vmem [shape: f32[1,32], index: 18, kind: input, shape index: {}]
  %s19 = inlined_call_operand.hbm [shape: f32[2,8,32], index: 19, kind: output, shape index: {}]
  %s20 = sld [smem:[#allocation0]]
  $region141: #{tpu_custom_call.1} parent=0
    _
  %s22 = ssub.s32 1, %s20
  %s23 = scalar_select 0, %s22, %s20
  $region1: #{tpu_custom_call.1} parent=0
    #allocation2 [shape = 'u8[1024]{0}', space=vmem, size = 0x400, scoped, tag = 'input window, operand 2']
    #allocation3 [shape = 's32[2]{0}', space=sflag, size = 0x8, scoped, tag = 'scoped memory for tpu_custom_call.1']
    #allocation4 [shape = 's32[2]{0}', space=sflag, size = 0x8, scoped, tag = 'scoped memory for tpu_custom_call.1']
    #allocation5 [shape = 'u8[8192]{0}', space=vmem, size = 0x2000, scoped, tag = 'input window, operand 5, single buffered']
    #allocation6 [shape = 's32[1]{0}', space=sflag, size = 0x4, scoped, tag = 'scoped memory for tpu_custom_call.1']
    #allocation7 [shape = 'u8[512]{0}', space=vmem, size = 0x400, scoped, tag = 'input window, operand 6, single buffered']
    #allocation8 [shape = 'u8[8192]{0}', space=vmem, size = 0x2000, scoped, tag = 'input window, operand 7, single buffered']
    #allocation9 [shape = 's32[1]{0}', space=sflag, size = 0x4, scoped, tag = 'scoped memory for tpu_custom_call.1']
    #allocation10 [shape = 'u8[512]{0}', space=vmem, size = 0x400, scoped, tag = 'input window, operand 8, single buffered']
    #allocation11 [shape = 'u8[512]{0}', space=vmem, size = 0x400, scoped, tag = 'input window, operand 10, single buffered']
    #allocation12 [shape = 's32[1]{0}', space=sflag, size = 0x4, scoped, tag = 'scoped memory for tpu_custom_call.1']
    #allocation13 [shape = 'u8[512]{0}', space=vmem, size = 0x400, scoped, tag = 'input window, operand 11, single buffered']
    #allocation14 [shape = 'u8[512]{0}', space=vmem, size = 0x400, scoped, tag = 'input window, operand 12, single buffered']
    #allocation15 [shape = 's32[1]{0}', space=sflag, size = 0x4, scoped, tag = 'scoped memory for tpu_custom_call.1']
    #allocation16 [shape = 'u8[8192]{0}', space=vmem, size = 0x2000, scoped, tag = 'output window, operand 0']
    %24 = vsyncpa [#allocation3], 0
    %s25 = scalar_lea.sflag [#allocation3], 1
    %26 = vsyncpa %s25, 0
    %27 = vsyncpa [#allocation6], 0
    %28 = vsyncpa [#allocation9], 0
    %29 = vsyncpa [#allocation12], 0
    %30 = vsyncpa [#allocation15], 0
    %31 = vsyncpa [#allocation4], 0
    %s32 = scalar_lea.sflag [#allocation4], 1
    %33 = vsyncpa %s32, 0
    loop: start=0, step=1, limit=4
    $region2: #{tpu_custom_call.1} parent=1 // loop_pre_header
      _
    $region3: #{tpu_custom_call.1} parent=1 // loop_header
      %s35 = sphi 0, %s39
      %p36 = scmp.ge.s32.totalorder %s35, 4
      %s42 = sphi 0, %s54
      %s43 = sphi 0, %s50
      %s44 = sphi 0, %s42
      %s45 = sphi 0, %s43
      %s46 = sphi 0, %s44
      %s47 = sphi 0, %s45
      %s59 = sphi 0, %s61
      %s62 = sphi 0, %s59
      %s63 = sphi 0, %s62
      %s79 = sphi 0, %s63
      %s85 = sphi 0, %s87
      %s88 = sphi 0, %s85
      %s89 = sphi 0, %s88
      %s105 = sphi 0, %s89
      %s111 = sphi 0, %s113
      %s114 = sphi 0, %s111
      %s115 = sphi 0, %s114
      %s131 = sphi 0, %s115
      %s135 = sphi 0, %s135
      %s137 = sphi 0, %s135
      %s138 = sphi 0, %s137
      %s152 = sphi 0, %s138
      %s156 = sphi 0, %s156
      %s158 = sphi 0, %s156
      %s159 = sphi 0, %s158
      %s173 = sphi 0, %s159
      %s177 = sphi 0, %s177
      %s179 = sphi 0, %s177
      %s180 = sphi 0, %s179
      %s194 = sphi 0, %s180
      %s198 = sphi 0, %s198
      %s200 = sphi 0, %s198
      %s201 = sphi 0, %s200
      %s215 = sphi 0, %s201
      %s219 = sphi 0, %s219
      %s221 = sphi 0, %s219
      %s222 = sphi 0, %s221
      %s236 = sphi 0, %s222
      %s240 = sphi 0, %s240
      %s242 = sphi 0, %s240
      %s243 = sphi 0, %s242
      %s257 = sphi 0, %s243
      %s261 = sphi 0, %s261
      %s263 = sphi 0, %s261
      %s264 = sphi 0, %s263
      %s278 = sphi 0, %s264
      %s282 = sphi 0, %s282
      %s284 = sphi 0, %s282
      %s285 = sphi 0, %s284
      %s299 = sphi 0, %s285
      %s303 = sphi 0, %s303
      %s305 = sphi 0, %s303
      %s306 = sphi 0, %s305
      %s320 = sphi 0, %s306
      %s324 = sphi 0, %s324
      %s326 = sphi 0, %s324
      %s327 = sphi 0, %s326
      %s341 = sphi 0, %s327
      %s345 = sphi 0, %s345
      %s347 = sphi 0, %s345
      %s348 = sphi 0, %s347
      %s362 = sphi 0, %s348
      %s366 = sphi 0, %s366
      %s368 = sphi 0, %s366
      %s369 = sphi 0, %s368
      %s383 = sphi 0, %s369
      %s387 = sphi 0, %s387
      %s389 = sphi 0, %s387
      %s390 = sphi 0, %s389
      %s404 = sphi 0, %s390
      %s408 = sphi 0, %s408
      %s410 = sphi 0, %s408
      %s411 = sphi 0, %s410
      %s425 = sphi 0, %s411
      %s429 = sphi 0, %s429
      %s431 = sphi 0, %s429
      %s432 = sphi 0, %s431
      %s446 = sphi 0, %s432
      %s450 = sphi 0, %s450
      %s452 = sphi 0, %s450
      %s453 = sphi 0, %s452
      %s467 = sphi 0, %s453
      %s475 = sphi 0, %s477
      %s478 = sphi 0, %s475
      %s479 = sphi 0, %s478
      %s495 = sphi 0, %s479
    $region4: #{tpu_custom_call.1} parent=1 // loop_header_branch
      %38 = sbr.rel (%p36) target = $region8
    $region5: #{tpu_custom_call.1} parent=1 // loop_body
      %s40 = ssub.s32 %s35, 1
      %s41 = ssub.s32 %s35, 2
      %s48 = sadd.s32 1, %s43
      %p49 = scmp.ge.s32.totalorder %s48, 1
      %s50 = scalar_select %p49, 0, %s48
      %s51 = sadd.s32 1, %s42
      %s52 = scalar_select %p49, %s51, %s42
      %p53 = scmp.ge.s32.totalorder %s52, 2
      %s54 = scalar_select %p53, 0, %s52
      %s55 = ssub.s32 %s42, %s54
      %s56 = ssub.s32 %s43, %s50
      %s57 = sor.u32 %s55, %s56
      %p58 = scmp.eq.s32.totalorder %s57, 0
      %s60 = sadd.s32 %s59, 1
      %s61 = scalar_select %p58, %s59, %s60
      %p64 = pneg %p58
      %p65 = scmp.eq.s32.totalorder %s35, 1
      %p66 = por %p64, %p65
      %p67 = scmp.ne.s32.totalorder %s59, %s62
      %p68 = scmp.eq.s32.totalorder %s35, 0
      %p69 = por %p67, %p68
      %p70 = scmp.ne.s32.totalorder %s59, %s62
      %p71 = scmp.eq.s32.totalorder %s40, 1
      %p72 = por %p70, %p71
      %p73 = scmp.ne.s32.totalorder %s62, %s63
      %p74 = scmp.eq.s32.totalorder %s40, 0
      %p75 = por %p73, %p74
      %p76 = scmp.ne.s32.totalorder %s62, %s63
      %p77 = scmp.eq.s32.totalorder %s41, 1
      %p78 = por %p76, %p77
      %p80 = scmp.ne.s32.totalorder %s63, %s79
      %p81 = scmp.eq.s32.totalorder %s41, 0
      %p82 = por %p80, %p81
      %s83 = ssub.s32 %s42, %s54
      %p84 = scmp.eq.s32.totalorder %s83, 0
      %s86 = sadd.s32 %s85, 1
      %s87 = scalar_select %p84, %s85, %s86
      %p90 = pneg %p84
      %p91 = scmp.eq.s32.totalorder %s35, 1
      %p92 = por %p90, %p91
      %p93 = scmp.ne.s32.totalorder %s85, %s88
      %p94 = scmp.eq.s32.totalorder %s35, 0
      %p95 = por %p93, %p94
      %p96 = scmp.ne.s32.totalorder %s85, %s88
      %p97 = scmp.eq.s32.totalorder %s40, 1
      %p98 = por %p96, %p97
      %p99 = scmp.ne.s32.totalorder %s88, %s89
      %p100 = scmp.eq.s32.totalorder %s40, 0
      %p101 = por %p99, %p100
      %p102 = scmp.ne.s32.totalorder %s88, %s89
      %p103 = scmp.eq.s32.totalorder %s41, 1
      %p104 = por %p102, %p103
      %p106 = scmp.ne.s32.totalorder %s89, %s105
      %p107 = scmp.eq.s32.totalorder %s41, 0
      %p108 = por %p106, %p107
      %s109 = ssub.s32 %s42, %s54
      %p110 = scmp.eq.s32.totalorder %s109, 0
      %s112 = sadd.s32 %s111, 1
      %s113 = scalar_select %p110, %s111, %s112
      %p116 = pneg %p110
      %p117 = scmp.eq.s32.totalorder %s35, 1
      %p118 = por %p116, %p117
      %p119 = scmp.ne.s32.totalorder %s111, %s114
      %p120 = scmp.eq.s32.totalorder %s35, 0
      %p121 = por %p119, %p120
      %p122 = scmp.ne.s32.totalorder %s111, %s114
      %p123 = scmp.eq.s32.totalorder %s40, 1
      %p124 = por %p122, %p123
      %p125 = scmp.ne.s32.totalorder %s114, %s115
      %p126 = scmp.eq.s32.totalorder %s40, 0
      %p127 = por %p125, %p126
      %p128 = scmp.ne.s32.totalorder %s114, %s115
      %p129 = scmp.eq.s32.totalorder %s41, 1
      %p130 = por %p128, %p129
      %p132 = scmp.ne.s32.totalorder %s115, %s131
      %p133 = scmp.eq.s32.totalorder %s41, 0
      %p134 = por %p132, %p133
      %s136 = sadd.s32 %s135, 1
      %p139 = scmp.eq.s32.totalorder %s35, 1
      %p140 = scmp.ne.s32.totalorder %s135, %s137
      %p141 = scmp.eq.s32.totalorder %s35, 0
      %p142 = por %p140, %p141
      %p143 = scmp.ne.s32.totalorder %s135, %s137
      %p144 = scmp.eq.s32.totalorder %s40, 1
      %p145 = por %p143, %p144
      %p146 = scmp.ne.s32.totalorder %s137, %s138
      %p147 = scmp.eq.s32.totalorder %s40, 0
      %p148 = por %p146, %p147
      %p149 = scmp.ne.s32.totalorder %s137, %s138
      %p150 = scmp.eq.s32.totalorder %s41, 1
      %p151 = por %p149, %p150
      %p153 = scmp.ne.s32.totalorder %s138, %s152
      %p154 = scmp.eq.s32.totalorder %s41, 0
      %p155 = por %p153, %p154
      %s157 = sadd.s32 %s156, 1
      %p160 = scmp.eq.s32.totalorder %s35, 1
      %p161 = scmp.ne.s32.totalorder %s156, %s158
      %p162 = scmp.eq.s32.totalorder %s35, 0
      %p163 = por %p161, %p162
      %p164 = scmp.ne.s32.totalorder %s156, %s158
      %p165 = scmp.eq.s32.totalorder %s40, 1
      %p166 = por %p164, %p165
      %p167 = scmp.ne.s32.totalorder %s158, %s159
      %p168 = scmp.eq.s32.totalorder %s40, 0
      %p169 = por %p167, %p168
      %p170 = scmp.ne.s32.totalorder %s158, %s159
      %p171 = scmp.eq.s32.totalorder %s41, 1
      %p172 = por %p170, %p171
      %p174 = scmp.ne.s32.totalorder %s159, %s173
      %p175 = scmp.eq.s32.totalorder %s41, 0
      %p176 = por %p174, %p175
      %s178 = sadd.s32 %s177, 1
      %p181 = scmp.eq.s32.totalorder %s35, 1
      %p182 = scmp.ne.s32.totalorder %s177, %s179
      %p183 = scmp.eq.s32.totalorder %s35, 0
      %p184 = por %p182, %p183
      %p185 = scmp.ne.s32.totalorder %s177, %s179
      %p186 = scmp.eq.s32.totalorder %s40, 1
      %p187 = por %p185, %p186
      %p188 = scmp.ne.s32.totalorder %s179, %s180
      %p189 = scmp.eq.s32.totalorder %s40, 0
      %p190 = por %p188, %p189
      %p191 = scmp.ne.s32.totalorder %s179, %s180
      %p192 = scmp.eq.s32.totalorder %s41, 1
      %p193 = por %p191, %p192
      %p195 = scmp.ne.s32.totalorder %s180, %s194
      %p196 = scmp.eq.s32.totalorder %s41, 0
      %p197 = por %p195, %p196
      %s199 = sadd.s32 %s198, 1
      %p202 = scmp.eq.s32.totalorder %s35, 1
      %p203 = scmp.ne.s32.totalorder %s198, %s200
      %p204 = scmp.eq.s32.totalorder %s35, 0
      %p205 = por %p203, %p204
      %p206 = scmp.ne.s32.totalorder %s198, %s200
      %p207 = scmp.eq.s32.totalorder %s40, 1
      %p208 = por %p206, %p207
      %p209 = scmp.ne.s32.totalorder %s200, %s201
      %p210 = scmp.eq.s32.totalorder %s40, 0
      %p211 = por %p209, %p210
      %p212 = scmp.ne.s32.totalorder %s200, %s201
      %p213 = scmp.eq.s32.totalorder %s41, 1
      %p214 = por %p212, %p213
      %p216 = scmp.ne.s32.totalorder %s201, %s215
      %p217 = scmp.eq.s32.totalorder %s41, 0
      %p218 = por %p216, %p217
      %s220 = sadd.s32 %s219, 1
      %p223 = scmp.eq.s32.totalorder %s35, 1
      %p224 = scmp.ne.s32.totalorder %s219, %s221
      %p225 = scmp.eq.s32.totalorder %s35, 0
      %p226 = por %p224, %p225
      %p227 = scmp.ne.s32.totalorder %s219, %s221
      %p228 = scmp.eq.s32.totalorder %s40, 1
      %p229 = por %p227, %p228
      %p230 = scmp.ne.s32.totalorder %s221, %s222
      %p231 = scmp.eq.s32.totalorder %s40, 0
      %p232 = por %p230, %p231
      %p233 = scmp.ne.s32.totalorder %s221, %s222
      %p234 = scmp.eq.s32.totalorder %s41, 1
      %p235 = por %p233, %p234
      %p237 = scmp.ne.s32.totalorder %s222, %s236
      %p238 = scmp.eq.s32.totalorder %s41, 0
      %p239 = por %p237, %p238
      %s241 = sadd.s32 %s240, 1
      %p244 = scmp.eq.s32.totalorder %s35, 1
      %p245 = scmp.ne.s32.totalorder %s240, %s242
      %p246 = scmp.eq.s32.totalorder %s35, 0
      %p247 = por %p245, %p246
      %p248 = scmp.ne.s32.totalorder %s240, %s242
      %p249 = scmp.eq.s32.totalorder %s40, 1
      %p250 = por %p248, %p249
      %p251 = scmp.ne.s32.totalorder %s242, %s243
      %p252 = scmp.eq.s32.totalorder %s40, 0
      %p253 = por %p251, %p252
      %p254 = scmp.ne.s32.totalorder %s242, %s243
      %p255 = scmp.eq.s32.totalorder %s41, 1
      %p256 = por %p254, %p255
      %p258 = scmp.ne.s32.totalorder %s243, %s257
      %p259 = scmp.eq.s32.totalorder %s41, 0
      %p260 = por %p258, %p259
      %s262 = sadd.s32 %s261, 1
      %p265 = scmp.eq.s32.totalorder %s35, 1
      %p266 = scmp.ne.s32.totalorder %s261, %s263
      %p267 = scmp.eq.s32.totalorder %s35, 0
      %p268 = por %p266, %p267
      %p269 = scmp.ne.s32.totalorder %s261, %s263
      %p270 = scmp.eq.s32.totalorder %s40, 1
      %p271 = por %p269, %p270
      %p272 = scmp.ne.s32.totalorder %s263, %s264
      %p273 = scmp.eq.s32.totalorder %s40, 0
      %p274 = por %p272, %p273
      %p275 = scmp.ne.s32.totalorder %s263, %s264
      %p276 = scmp.eq.s32.totalorder %s41, 1
      %p277 = por %p275, %p276
      %p279 = scmp.ne.s32.totalorder %s264, %s278
      %p280 = scmp.eq.s32.totalorder %s41, 0
      %p281 = por %p279, %p280
      %s283 = sadd.s32 %s282, 1
      %p286 = scmp.eq.s32.totalorder %s35, 1
      %p287 = scmp.ne.s32.totalorder %s282, %s284
      %p288 = scmp.eq.s32.totalorder %s35, 0
      %p289 = por %p287, %p288
      %p290 = scmp.ne.s32.totalorder %s282, %s284
      %p291 = scmp.eq.s32.totalorder %s40, 1
      %p292 = por %p290, %p291
      %p293 = scmp.ne.s32.totalorder %s284, %s285
      %p294 = scmp.eq.s32.totalorder %s40, 0
      %p295 = por %p293, %p294
      %p296 = scmp.ne.s32.totalorder %s284, %s285
      %p297 = scmp.eq.s32.totalorder %s41, 1
      %p298 = por %p296, %p297
      %p300 = scmp.ne.s32.totalorder %s285, %s299
      %p301 = scmp.eq.s32.totalorder %s41, 0
      %p302 = por %p300, %p301
      %s304 = sadd.s32 %s303, 1
      %p307 = scmp.eq.s32.totalorder %s35, 1
      %p308 = scmp.ne.s32.totalorder %s303, %s305
      %p309 = scmp.eq.s32.totalorder %s35, 0
      %p310 = por %p308, %p309
      %p311 = scmp.ne.s32.totalorder %s303, %s305
      %p312 = scmp.eq.s32.totalorder %s40, 1
      %p313 = por %p311, %p312
      %p314 = scmp.ne.s32.totalorder %s305, %s306
      %p315 = scmp.eq.s32.totalorder %s40, 0
      %p316 = por %p314, %p315
      %p317 = scmp.ne.s32.totalorder %s305, %s306
      %p318 = scmp.eq.s32.totalorder %s41, 1
      %p319 = por %p317, %p318
      %p321 = scmp.ne.s32.totalorder %s306, %s320
      %p322 = scmp.eq.s32.totalorder %s41, 0
      %p323 = por %p321, %p322
      %s325 = sadd.s32 %s324, 1
      %p328 = scmp.eq.s32.totalorder %s35, 1
      %p329 = scmp.ne.s32.totalorder %s324, %s326
      %p330 = scmp.eq.s32.totalorder %s35, 0
      %p331 = por %p329, %p330
      %p332 = scmp.ne.s32.totalorder %s324, %s326
      %p333 = scmp.eq.s32.totalorder %s40, 1
      %p334 = por %p332, %p333
      %p335 = scmp.ne.s32.totalorder %s326, %s327
      %p336 = scmp.eq.s32.totalorder %s40, 0
      %p337 = por %p335, %p336
      %p338 = scmp.ne.s32.totalorder %s326, %s327
      %p339 = scmp.eq.s32.totalorder %s41, 1
      %p340 = por %p338, %p339
      %p342 = scmp.ne.s32.totalorder %s327, %s341
      %p343 = scmp.eq.s32.totalorder %s41, 0
      %p344 = por %p342, %p343
      %s346 = sadd.s32 %s345, 1
      %p349 = scmp.eq.s32.totalorder %s35, 1
      %p350 = scmp.ne.s32.totalorder %s345, %s347
      %p351 = scmp.eq.s32.totalorder %s35, 0
      %p352 = por %p350, %p351
      %p353 = scmp.ne.s32.totalorder %s345, %s347
      %p354 = scmp.eq.s32.totalorder %s40, 1
      %p355 = por %p353, %p354
      %p356 = scmp.ne.s32.totalorder %s347, %s348
      %p357 = scmp.eq.s32.totalorder %s40, 0
      %p358 = por %p356, %p357
      %p359 = scmp.ne.s32.totalorder %s347, %s348
      %p360 = scmp.eq.s32.totalorder %s41, 1
      %p361 = por %p359, %p360
      %p363 = scmp.ne.s32.totalorder %s348, %s362
      %p364 = scmp.eq.s32.totalorder %s41, 0
      %p365 = por %p363, %p364
      %s367 = sadd.s32 %s366, 1
      %p370 = scmp.eq.s32.totalorder %s35, 1
      %p371 = scmp.ne.s32.totalorder %s366, %s368
      %p372 = scmp.eq.s32.totalorder %s35, 0
      %p373 = por %p371, %p372
      %p374 = scmp.ne.s32.totalorder %s366, %s368
      %p375 = scmp.eq.s32.totalorder %s40, 1
      %p376 = por %p374, %p375
      %p377 = scmp.ne.s32.totalorder %s368, %s369
      %p378 = scmp.eq.s32.totalorder %s40, 0
      %p379 = por %p377, %p378
      %p380 = scmp.ne.s32.totalorder %s368, %s369
      %p381 = scmp.eq.s32.totalorder %s41, 1
      %p382 = por %p380, %p381
      %p384 = scmp.ne.s32.totalorder %s369, %s383
      %p385 = scmp.eq.s32.totalorder %s41, 0
      %p386 = por %p384, %p385
      %s388 = sadd.s32 %s387, 1
      %p391 = scmp.eq.s32.totalorder %s35, 1
      %p392 = scmp.ne.s32.totalorder %s387, %s389
      %p393 = scmp.eq.s32.totalorder %s35, 0
      %p394 = por %p392, %p393
      %p395 = scmp.ne.s32.totalorder %s387, %s389
      %p396 = scmp.eq.s32.totalorder %s40, 1
      %p397 = por %p395, %p396
      %p398 = scmp.ne.s32.totalorder %s389, %s390
      %p399 = scmp.eq.s32.totalorder %s40, 0
      %p400 = por %p398, %p399
      %p401 = scmp.ne.s32.totalorder %s389, %s390
      %p402 = scmp.eq.s32.totalorder %s41, 1
      %p403 = por %p401, %p402
      %p405 = scmp.ne.s32.totalorder %s390, %s404
      %p406 = scmp.eq.s32.totalorder %s41, 0
      %p407 = por %p405, %p406
      %s409 = sadd.s32 %s408, 1
      %p412 = scmp.eq.s32.totalorder %s35, 1
      %p413 = scmp.ne.s32.totalorder %s408, %s410
      %p414 = scmp.eq.s32.totalorder %s35, 0
      %p415 = por %p413, %p414
      %p416 = scmp.ne.s32.totalorder %s408, %s410
      %p417 = scmp.eq.s32.totalorder %s40, 1
      %p418 = por %p416, %p417
      %p419 = scmp.ne.s32.totalorder %s410, %s411
      %p420 = scmp.eq.s32.totalorder %s40, 0
      %p421 = por %p419, %p420
      %p422 = scmp.ne.s32.totalorder %s410, %s411
      %p423 = scmp.eq.s32.totalorder %s41, 1
      %p424 = por %p422, %p423
      %p426 = scmp.ne.s32.totalorder %s411, %s425
      %p427 = scmp.eq.s32.totalorder %s41, 0
      %p428 = por %p426, %p427
      %s430 = sadd.s32 %s429, 1
      %p433 = scmp.eq.s32.totalorder %s35, 1
      %p434 = scmp.ne.s32.totalorder %s429, %s431
      %p435 = scmp.eq.s32.totalorder %s35, 0
      %p436 = por %p434, %p435
      %p437 = scmp.ne.s32.totalorder %s429, %s431
      %p438 = scmp.eq.s32.totalorder %s40, 1
      %p439 = por %p437, %p438
      %p440 = scmp.ne.s32.totalorder %s431, %s432
      %p441 = scmp.eq.s32.totalorder %s40, 0
      %p442 = por %p440, %p441
      %p443 = scmp.ne.s32.totalorder %s431, %s432
      %p444 = scmp.eq.s32.totalorder %s41, 1
      %p445 = por %p443, %p444
      %p447 = scmp.ne.s32.totalorder %s432, %s446
      %p448 = scmp.eq.s32.totalorder %s41, 0
      %p449 = por %p447, %p448
      %s451 = sadd.s32 %s450, 1
      %p454 = scmp.eq.s32.totalorder %s35, 1
      %p455 = scmp.ne.s32.totalorder %s450, %s452
      %p456 = scmp.eq.s32.totalorder %s35, 0
      %p457 = por %p455, %p456
      %p458 = scmp.ne.s32.totalorder %s450, %s452
      %p459 = scmp.eq.s32.totalorder %s40, 1
      %p460 = por %p458, %p459
      %p461 = scmp.ne.s32.totalorder %s452, %s453
      %p462 = scmp.eq.s32.totalorder %s40, 0
      %p463 = por %p461, %p462
      %p464 = scmp.ne.s32.totalorder %s452, %s453
      %p465 = scmp.eq.s32.totalorder %s41, 1
      %p466 = por %p464, %p465
      %p468 = scmp.ne.s32.totalorder %s453, %s467
      %p469 = scmp.eq.s32.totalorder %s41, 0
      %p470 = por %p468, %p469
      %s471 = ssub.s32 %s42, %s54
      %s472 = ssub.s32 %s43, %s50
      %s473 = sor.u32 %s471, %s472
      %p474 = scmp.eq.s32.totalorder %s473, 0
      %s476 = sadd.s32 %s475, 1
      %s477 = scalar_select %p474, %s475, %s476
      %p480 = pneg %p474
      %p481 = scmp.eq.s32.totalorder %s35, 1
      %p482 = por %p480, %p481
      %p483 = scmp.ne.s32.totalorder %s475, %s478
      %p484 = scmp.eq.s32.totalorder %s35, 0
      %p485 = por %p483, %p484
      %p486 = scmp.ne.s32.totalorder %s475, %s478
      %p487 = scmp.eq.s32.totalorder %s40, 1
      %p488 = por %p486, %p487
      %p489 = scmp.ne.s32.totalorder %s478, %s479
      %p490 = scmp.eq.s32.totalorder %s40, 0
      %p491 = por %p489, %p490
      %p492 = scmp.ne.s32.totalorder %s478, %s479
      %p493 = scmp.eq.s32.totalorder %s41, 1
      %p494 = por %p492, %p493
      %p496 = scmp.ne.s32.totalorder %s479, %s495
      %p497 = scmp.eq.s32.totalorder %s41, 0
      %p498 = por %p496, %p497
      %p499 = scmp.le.s32.totalorder 1, %s35
      %p500 = scmp.lt.s32.totalorder %s35, 3
      %p501 = pnand %p499, %p500
      %p502 = pneg %p501
      // Predicated region
      $region9: #{tpu_custom_call.1} parent=5 // pred_check
        _
      $region10: #{tpu_custom_call.1} parent=5 // pred_check_branch
        %504 = sbr.rel (%p501) target = $region12
      $region11: #{tpu_custom_call.1} parent=5 // pred_region
        %s505 = ssub.s32 %s35, 1
        // Predicated region
        $region13: #{tpu_custom_call.1} parent=11 // pred_check
          %p506 = pneg %p148
        $region14: #{tpu_custom_call.1} parent=11 // pred_check_branch
          %508 = sbr.rel (%p506) target = $region16
        $region15: #{tpu_custom_call.1} parent=11 // pred_region
          _
        $region16: #{tpu_custom_call.1} parent=11 // pred_fallthru
          _
        // Predicated region
        $region17: #{tpu_custom_call.1} parent=11 // pred_check
          %p509 = pneg %p169
        $region18: #{tpu_custom_call.1} parent=11 // pred_check_branch
          %511 = sbr.rel (%p509) target = $region20
        $region19: #{tpu_custom_call.1} parent=11 // pred_region
          _
        $region20: #{tpu_custom_call.1} parent=11 // pred_fallthru
          _
        // Predicated region
        $region21: #{tpu_custom_call.1} parent=11 // pred_check
          %p512 = pneg %p190
        $region22: #{tpu_custom_call.1} parent=11 // pred_check_branch
          %514 = sbr.rel (%p512) target = $region24
        $region23: #{tpu_custom_call.1} parent=11 // pred_region
          %s516 = ssub.s32 256, 256
          %517 = vsyncadd [#allocation6], %s516
          %s518 = sshll.u32 [#allocation5], 4
          %s519 = int_to_ptr.vmem [resolvable:$true] %s518
          %524 = dma.hbm_to_vmem [thread:$0]  %s5, 256, %s519, [#allocation6], 64, 64, 4
        $region24: #{tpu_custom_call.1} parent=11 // pred_fallthru
          _
        // Predicated region
        $region25: #{tpu_custom_call.1} parent=11 // pred_check
          %p525 = pneg %p211
        $region26: #{tpu_custom_call.1} parent=11 // pred_check_branch
          %527 = sbr.rel (%p525) target = $region28
        $region27: #{tpu_custom_call.1} parent=11 // pred_region
          %s529 = ssub.s32 16, 16
          %530 = vsyncadd [#allocation6], %s529
          %s532 = sshll.u32 [#allocation7], 4
          %s533 = int_to_ptr.vmem [resolvable:$true] %s532
          %535 = dma.hbm_to_vmem [thread:$0]  %s6, 16, %s533, [#allocation6]
        $region28: #{tpu_custom_call.1} parent=11 // pred_fallthru
          _
        // Predicated region
        $region29: #{tpu_custom_call.1} parent=11 // pred_check
          %p536 = pneg %p232
        $region30: #{tpu_custom_call.1} parent=11 // pred_check_branch
          %538 = sbr.rel (%p536) target = $region32
        $region31: #{tpu_custom_call.1} parent=11 // pred_region
          %s540 = ssub.s32 256, 256
          %541 = vsyncadd [#allocation9], %s540
          %s542 = sshll.u32 [#allocation8], 4
          %s543 = int_to_ptr.vmem [resolvable:$true] %s542
          %548 = dma.hbm_to_vmem [thread:$0]  %s7, 256, %s543, [#allocation9], 64, 64, 4
        $region32: #{tpu_custom_call.1} parent=11 // pred_fallthru
          _
        // Predicated region
        $region33: #{tpu_custom_call.1} parent=11 // pred_check
          %p549 = pneg %p253
        $region34: #{tpu_custom_call.1} parent=11 // pred_check_branch
          %551 = sbr.rel (%p549) target = $region36
        $region35: #{tpu_custom_call.1} parent=11 // pred_region
          %s553 = ssub.s32 16, 16
          %554 = vsyncadd [#allocation9], %s553
          %s556 = sshll.u32 [#allocation10], 4
          %s557 = int_to_ptr.vmem [resolvable:$true] %s556
          %559 = dma.hbm_to_vmem [thread:$0]  %s8, 16, %s557, [#allocation9]
        $region36: #{tpu_custom_call.1} parent=11 // pred_fallthru
          _
        // Predicated region
        $region37: #{tpu_custom_call.1} parent=11 // pred_check
          %p560 = pneg %p274
        $region38: #{tpu_custom_call.1} parent=11 // pred_check_branch
          %562 = sbr.rel (%p560) target = $region40
        $region39: #{tpu_custom_call.1} parent=11 // pred_region
          _
        $region40: #{tpu_custom_call.1} parent=11 // pred_fallthru
          _
        // Predicated region
        $region41: #{tpu_custom_call.1} parent=11 // pred_check
          %p563 = pneg %p295
        $region42: #{tpu_custom_call.1} parent=11 // pred_check_branch
          %565 = sbr.rel (%p563) target = $region44
        $region43: #{tpu_custom_call.1} parent=11 // pred_region
          %s567 = ssub.s32 16, 16
          %568 = vsyncadd [#allocation12], %s567
          %s570 = sshll.u32 [#allocation11], 4
          %s571 = int_to_ptr.vmem [resolvable:$true] %s570
          %573 = dma.hbm_to_vmem [thread:$0]  %s10, 16, %s571, [#allocation12]
        $region44: #{tpu_custom_call.1} parent=11 // pred_fallthru
          _
        // Predicated region
        $region45: #{tpu_custom_call.1} parent=11 // pred_check
          %p574 = pneg %p316
        $region46: #{tpu_custom_call.1} parent=11 // pred_check_branch
          %576 = sbr.rel (%p574) target = $region48
        $region47: #{tpu_custom_call.1} parent=11 // pred_region
          %s578 = ssub.s32 16, 16
          %579 = vsyncadd [#allocation12], %s578
          %s581 = sshll.u32 [#allocation13], 4
          %s582 = int_to_ptr.vmem [resolvable:$true] %s581
          %584 = dma.hbm_to_vmem [thread:$0]  %s11, 16, %s582, [#allocation12]
        $region48: #{tpu_custom_call.1} parent=11 // pred_fallthru
          _
        // Predicated region
        $region49: #{tpu_custom_call.1} parent=11 // pred_check
          %p585 = pneg %p337
        $region50: #{tpu_custom_call.1} parent=11 // pred_check_branch
          %587 = sbr.rel (%p585) target = $region52
        $region51: #{tpu_custom_call.1} parent=11 // pred_region
          %s589 = ssub.s32 16, 16
          %590 = vsyncadd [#allocation15], %s589
          %s592 = sshll.u32 [#allocation14], 4
          %s593 = int_to_ptr.vmem [resolvable:$true] %s592
          %595 = dma.hbm_to_vmem [thread:$0]  %s12, 16, %s593, [#allocation15]
        $region52: #{tpu_custom_call.1} parent=11 // pred_fallthru
          _
        // Predicated region
        $region53: #{tpu_custom_call.1} parent=11 // pred_check
          %p596 = pneg %p358
        $region54: #{tpu_custom_call.1} parent=11 // pred_check_branch
          %598 = sbr.rel (%p596) target = $region56
        $region55: #{tpu_custom_call.1} parent=11 // pred_region
          _
        $region56: #{tpu_custom_call.1} parent=11 // pred_fallthru
          _
        // Predicated region
        $region57: #{tpu_custom_call.1} parent=11 // pred_check
          %p599 = pneg %p379
        $region58: #{tpu_custom_call.1} parent=11 // pred_check_branch
          %601 = sbr.rel (%p599) target = $region60
        $region59: #{tpu_custom_call.1} parent=11 // pred_region
          _
        $region60: #{tpu_custom_call.1} parent=11 // pred_fallthru
          _
        // Predicated region
        $region61: #{tpu_custom_call.1} parent=11 // pred_check
          %p602 = pneg %p400
        $region62: #{tpu_custom_call.1} parent=11 // pred_check_branch
          %604 = sbr.rel (%p602) target = $region64
        $region63: #{tpu_custom_call.1} parent=11 // pred_region
          _
        $region64: #{tpu_custom_call.1} parent=11 // pred_fallthru
          _
        // Predicated region
        $region65: #{tpu_custom_call.1} parent=11 // pred_check
          %p605 = pneg %p421
        $region66: #{tpu_custom_call.1} parent=11 // pred_check_branch
          %607 = sbr.rel (%p605) target = $region68
        $region67: #{tpu_custom_call.1} parent=11 // pred_region
          _
        $region68: #{tpu_custom_call.1} parent=11 // pred_fallthru
          _
        // Predicated region
        $region69: #{tpu_custom_call.1} parent=11 // pred_check
          %p608 = pneg %p442
        $region70: #{tpu_custom_call.1} parent=11 // pred_check_branch
          %610 = sbr.rel (%p608) target = $region72
        $region71: #{tpu_custom_call.1} parent=11 // pred_region
          _
        $region72: #{tpu_custom_call.1} parent=11 // pred_fallthru
          _
        // Predicated region
        $region73: #{tpu_custom_call.1} parent=11 // pred_check
          %p611 = pneg %p463
        $region74: #{tpu_custom_call.1} parent=11 // pred_check_branch
          %613 = sbr.rel (%p611) target = $region76
        $region75: #{tpu_custom_call.1} parent=11 // pred_region
          _
        $region76: #{tpu_custom_call.1} parent=11 // pred_fallthru
          _
      $region12: #{tpu_custom_call.1} parent=5 // pred_fallthru
        _
      %p614 = scmp.lt.s32.totalorder %s35, 2
      // Predicated region
      $region77: #{tpu_custom_call.1} parent=5 // pred_check
        %p615 = pneg %p614
      $region78: #{tpu_custom_call.1} parent=5 // pred_check_branch
        %617 = sbr.rel (%p615) target = $region80
      $region79: #{tpu_custom_call.1} parent=5 // pred_region
        // Predicated region
        $region81: #{tpu_custom_call.1} parent=79 // pred_check
          %p618 = pneg %p69
        $region82: #{tpu_custom_call.1} parent=79 // pred_check_branch
          %620 = sbr.rel (%p618) target = $region84
        $region83: #{tpu_custom_call.1} parent=79 // pred_region
          %p621 = scmp.lt.s32.totalorder %s42, 1
          %s622 = scalar_select %p621, %s42, 1
          %p623 = scmp.lt.s32.totalorder %s43, 0
          %s624 = scalar_select %p623, %s43, 0
          %s625 = sadd.s32 %s624, %s622
          %s626 = smul.addr %s625, 8
          %s627 = scalar_lea.vmem %s0, %s626
        $region84: #{tpu_custom_call.1} parent=79 // pred_fallthru
          _
        // Predicated region
        $region85: #{tpu_custom_call.1} parent=79 // pred_check
          %p628 = pneg %p95
        $region86: #{tpu_custom_call.1} parent=79 // pred_check_branch
          %630 = sbr.rel (%p628) target = $region88
        $region87: #{tpu_custom_call.1} parent=79 // pred_region
          %p631 = scmp.lt.s32.totalorder %s42, 1
          %s632 = scalar_select %p631, %s42, 1
          %s633 = smul.addr %s632, 8
          %s634 = scalar_lea.vmem %s1, %s633
        $region88: #{tpu_custom_call.1} parent=79 // pred_fallthru
          _
        // Predicated region
        $region89: #{tpu_custom_call.1} parent=79 // pred_check
          %p635 = pneg %p121
        $region90: #{tpu_custom_call.1} parent=79 // pred_check_branch
          %637 = sbr.rel (%p635) target = $region92
        $region91: #{tpu_custom_call.1} parent=79 // pred_region
          %s638 = sand.u32 %s111, 1
          %s639 = scalar_lea.sflag [#allocation3], %s638
          %s640 = sand.u32 %s111, 1
          %s641 = scalar_lea.vmem [#allocation2], %s640
          %s643 = ssub.s32 16, 16
          %644 = vsyncadd %s639, %s643
          %s645 = smul.addr %s42, 16
          %s646 = scalar_lea.hbm %s2, %s645
          %s648 = sshll.u32 %s641, 4
          %s649 = int_to_ptr.vmem [resolvable:$true] %s648
          %651 = dma.hbm_to_vmem [thread:$0]  %s646, 16, %s649, %s639
        $region92: #{tpu_custom_call.1} parent=79 // pred_fallthru
          _
      $region80: #{tpu_custom_call.1} parent=5 // pred_fallthru
        _
      %p652 = scmp.le.s32.totalorder 1, %s35
      %p653 = scmp.lt.s32.totalorder %s35, 3
      %p654 = pnand %p652, %p653
      %p655 = pneg %p654
      // Predicated region
      $region93: #{tpu_custom_call.1} parent=5 // pred_check
        _
      $region94: #{tpu_custom_call.1} parent=5 // pred_check_branch
        %657 = sbr.rel (%p654) target = $region96
      $region95: #{tpu_custom_call.1} parent=5 // pred_region
        %s658 = ssub.s32 %s35, 1
        %s659 = sand.u32 %s114, 1
        %s660 = scalar_lea.sflag [#allocation3], %s659
        %s661 = sand.u32 %s114, 1
        %s662 = scalar_lea.vmem [#allocation2], %s661
        // Predicated region
        $region97: #{tpu_custom_call.1} parent=95 // pred_check
          %p663 = pneg %p127
        $region98: #{tpu_custom_call.1} parent=95 // pred_check_branch
          %665 = sbr.rel (%p663) target = $region100
        $region99: #{tpu_custom_call.1} parent=95 // pred_region
          %666 = dma.done %s660, 16
        $region100: #{tpu_custom_call.1} parent=95 // pred_fallthru
          _
        // Predicated region
        $region101: #{tpu_custom_call.1} parent=95 // pred_check
          %p667 = pneg %p190
        $region102: #{tpu_custom_call.1} parent=95 // pred_check_branch
          %669 = sbr.rel (%p667) target = $region104
        $region103: #{tpu_custom_call.1} parent=95 // pred_region
          %670 = dma.done [#allocation6], 256
        $region104: #{tpu_custom_call.1} parent=95 // pred_fallthru
          _
        // Predicated region
        $region105: #{tpu_custom_call.1} parent=95 // pred_check
          %p671 = pneg %p211
        $region106: #{tpu_custom_call.1} parent=95 // pred_check_branch
          %673 = sbr.rel (%p671) target = $region108
        $region107: #{tpu_custom_call.1} parent=95 // pred_region
          %674 = dma.done [#allocation6], 16
        $region108: #{tpu_custom_call.1} parent=95 // pred_fallthru
          _
        // Predicated region
        $region109: #{tpu_custom_call.1} parent=95 // pred_check
          %p675 = pneg %p232
        $region110: #{tpu_custom_call.1} parent=95 // pred_check_branch
          %677 = sbr.rel (%p675) target = $region112
        $region111: #{tpu_custom_call.1} parent=95 // pred_region
          %678 = dma.done [#allocation9], 256
        $region112: #{tpu_custom_call.1} parent=95 // pred_fallthru
          _
        // Predicated region
        $region113: #{tpu_custom_call.1} parent=95 // pred_check
          %p679 = pneg %p253
        $region114: #{tpu_custom_call.1} parent=95 // pred_check_branch
          %681 = sbr.rel (%p679) target = $region116
        $region115: #{tpu_custom_call.1} parent=95 // pred_region
          %682 = dma.done [#allocation9], 16
        $region116: #{tpu_custom_call.1} parent=95 // pred_fallthru
          _
        // Predicated region
        $region117: #{tpu_custom_call.1} parent=95 // pred_check
          %p683 = pneg %p295
        $region118: #{tpu_custom_call.1} parent=95 // pred_check_branch
          %685 = sbr.rel (%p683) target = $region120
        $region119: #{tpu_custom_call.1} parent=95 // pred_region
          %686 = dma.done [#allocation12], 16
        $region120: #{tpu_custom_call.1} parent=95 // pred_fallthru
          _
        // Predicated region
        $region121: #{tpu_custom_call.1} parent=95 // pred_check
          %p687 = pneg %p316
        $region122: #{tpu_custom_call.1} parent=95 // pred_check_branch
          %689 = sbr.rel (%p687) target = $region124
        $region123: #{tpu_custom_call.1} parent=95 // pred_region
          %690 = dma.done [#allocation12], 16
        $region124: #{tpu_custom_call.1} parent=95 // pred_fallthru
          _
        // Predicated region
        $region125: #{tpu_custom_call.1} parent=95 // pred_check
          %p691 = pneg %p337
        $region126: #{tpu_custom_call.1} parent=95 // pred_check_branch
          %693 = sbr.rel (%p691) target = $region128
        $region127: #{tpu_custom_call.1} parent=95 // pred_region
          %694 = dma.done [#allocation15], 16
        $region128: #{tpu_custom_call.1} parent=95 // pred_fallthru
          _
        %p695 = scmp.lt.s32.totalorder %s44, 1
        %s696 = scalar_select %p695, %s44, 1
        %p697 = scmp.lt.s32.totalorder %s45, 0
        %s698 = scalar_select %p697, %s45, 0
        %s699 = sadd.s32 %s698, %s696
        %s700 = smul.addr %s699, 8
        %s701 = scalar_lea.vmem %s0, %s700
        %p702 = pneg %p75
        %p703 = pneg %p72
        %p704 = scmp.lt.s32.totalorder %s44, 1
        %s705 = scalar_select %p704, %s44, 1
        %s706 = smul.addr %s705, 8
        %s707 = scalar_lea.vmem %s1, %s706
        %p708 = pneg %p101
        %p709 = pneg %p98
        %s710 = sand.u32 %s114, 1
        %s711 = scalar_lea.sflag [#allocation3], %s710
        %s712 = sand.u32 %s114, 1
        %s713 = scalar_lea.vmem [#allocation2], %s712
        %p714 = pneg %p127
        %p715 = pneg %p124
        %p716 = pneg %p148
        %p717 = pneg %p145
        %p718 = pneg %p169
        %p719 = pneg %p166
        %p720 = pneg %p190
        %p721 = pneg %p187
        %p722 = pneg %p211
        %p723 = pneg %p208
        %p724 = pneg %p232
        %p725 = pneg %p229
        %p726 = pneg %p253
        %p727 = pneg %p250
        %p728 = pneg %p274
        %p729 = pneg %p271
        %p730 = pneg %p295
        %p731 = pneg %p292
        %p732 = pneg %p316
        %p733 = pneg %p313
        %p734 = pneg %p337
        %p735 = pneg %p334
        %p736 = pneg %p358
        %p737 = pneg %p355
        %p738 = pneg %p379
        %p739 = pneg %p376
        %p740 = pneg %p400
        %p741 = pneg %p397
        %p742 = pneg %p421
        %p743 = pneg %p418
        %p744 = pneg %p442
        %p745 = pneg %p439
        %p746 = pneg %p463
        %p747 = pneg %p460
        %p748 = pneg %p491
        %p749 = pneg %p488
        %s750 = sand.u32 %s478, 1
        %s751 = scalar_lea.sflag [#allocation4], %s750
        %s752 = sand.u32 %s478, 1
        %s753 = smul.addr %s752, 8
        %s754 = scalar_lea.vmem [#allocation16], %s753
        %p755 = scmp.lt.s32.totalorder %s44, 1
        %s756 = scalar_select %p755, %s44, 1
        %p757 = scmp.lt.s32.totalorder %s45, 0
        %s758 = scalar_select %p757, %s45, 0
        %s759 = sadd.s32 %s758, %s756
        %s760 = smul.addr %s759, 8
        %s761 = scalar_lea.vmem %s0, %s760
        %p762 = scmp.lt.s32.totalorder %s44, 1
        %s763 = scalar_select %p762, %s44, 1
        %s764 = smul.addr %s763, 8
        %s765 = scalar_lea.vmem %s1, %s764
        %v767 = vld [vmem:[%s761] sm:$0xff]
        %v768 = vld [vmem:[%s765] sm:$0xff]
        %v769 = vld [vmem:[%s662] sm:$0x1]
        %v770 = vsub.f32 %v769, 1.0
        %v771 = vmul.f32 %v770, 10000.0
        %v772 = vpack.c.bf16 %v767, %v767
        %v773 = vpack.c.bf16 %v768, %v768
        %v774 = vld [vmem:[%s3] sm:$0xf]
        %v775 = vld [vmem:[%s3 + $0x4] sm:$0xf]
        %v776 = vld [vmem:[%s3 + $0x8] sm:$0xf]
        %v777 = vld [vmem:[%s3 + $0xc] sm:$0xf]
        %v778 = vld [vmem:[%s4] sm:$0x1]
        %v780 = vlaneseq
        %v781 = vshrl.u32 %v780, 7
        %v782 = vsub.s32 0, %v781
        %v783 = vrot.slane %v778, %v782
        %v789 = vunpack.c.l.b16 %v774
        %v790 = vunpack.c.l.b16 %v775
        %v791 = vunpack.c.l.b16 %v776
        %v792 = vunpack.c.l.b16 %v777
        %v793 = vpack.c.b16 %v790, %v789
        %v794 = vpack.c.b16 %v792, %v791
        %vm797 = vcmask 261120
        %v799 = vsel %vm797, %v772, 0
        %801 = vmatprep.subr.bf16.mxu0 0
        %802 = vmatpush1.bf16.msra.mxu0 %v793
        %803 = vmatprep.subr.bf16.mxu0 0
        %804 = vmatpush1.bf16.msra.mxu0 %v794
        %805 = vmatprep.subr.bf16.mxu0 0
        %806 = vmatpush1.bf16.msra.mxu0 0
        %807 = vmatprep.subr.bf16.mxu0 0
        %808 = vmatpush1.bf16.msra.mxu0 0
        %809 = vmatprep.subr.bf16.mxu0 0
        %810 = vmatpush1.bf16.msra.mxu0 0
        %811 = vmatprep.subr.bf16.mxu0 0
        %812 = vmatpush1.bf16.msra.mxu0 0
        %813 = vmatprep.subr.bf16.mxu0 0
        %814 = vmatpush1.bf16.msra.mxu0 0
        %815 = vmatprep.subr.bf16.mxu0 0
        %816 = vmatpush1.bf16.msra.mxu0 0
        %817 = vmatprep.subr.bf16.mxu0 0
        %818 = vmatpush1.bf16.msra.mxu0 0
        %819 = vmatprep.subr.bf16.mxu0 0
        %820 = vmatpush1.bf16.msra.mxu0 0
        %821 = vmatprep.subr.bf16.mxu0 0
        %822 = vmatpush1.bf16.msra.mxu0 0
        %823 = vmatprep.subr.bf16.mxu0 0
        %824 = vmatpush1.bf16.msra.mxu0 0
        %825 = vmatprep.subr.bf16.mxu0 0
        %826 = vmatpush1.bf16.msra.mxu0 0
        %827 = vmatprep.subr.bf16.mxu0 0
        %828 = vmatpush1.bf16.msra.mxu0 0
        %829 = vmatprep.subr.bf16.mxu0 0
        %830 = vmatpush1.bf16.msra.mxu0 0
        %831 = vmatprep.subr.bf16.mxu0 0
        %832 = vmatpush1.bf16.msra.mxu0 0
        %833 = vmatprep.mubr.bf16.mxu0 0
        %834 = vmatmul.mubr.bf16.gmra.mrb[0].mxu0 %v799
        %v835 = vpop.f32.mrb[0].mxu0
        %v836 = vadd.f32 %v783, %v835
        %v837 = vpop.f32.mrb[0].mxu0
        %v838 = vpop.f32.mrb[0].mxu0
        %v839 = vpop.f32.mrb[0].mxu0
        %840 = vdwg.mxu0
        %v841 = vmul.f32 %v836, 0.35355338
        %v842 = vld [vmem:[#allocation5] sm:$0xf]
        %v843 = vld [vmem:[#allocation5 + $0x4] sm:$0xf]
        %v844 = vld [vmem:[#allocation5 + $0x8] sm:$0xf]
        %v845 = vld [vmem:[#allocation5 + $0xc] sm:$0xf]
        %v846 = vld [vmem:[#allocation7] sm:$0x1]
        %v848 = vlaneseq
        %v849 = vshrl.u32 %v848, 7
        %v850 = vsub.s32 0, %v849
        %v851 = vrot.slane %v846, %v850
        %v857 = vunpack.c.l.b16 %v842
        %v858 = vunpack.c.l.b16 %v843
        %v859 = vunpack.c.l.b16 %v844
        %v860 = vunpack.c.l.b16 %v845
        %v861 = vpack.c.b16 %v858, %v857
        %v862 = vpack.c.b16 %v860, %v859
        %v866 = vsel %vm797, %v773, 0
        %868 = vmatprep.subr.bf16.mxu0 0
        %869 = vmatpush1.bf16.msra.mxu0 %v861
        %870 = vmatprep.subr.bf16.mxu0 0
        %871 = vmatpush1.bf16.msra.mxu0 %v862
        %872 = vmatprep.subr.bf16.mxu0 0
        %873 = vmatpush1.bf16.msra.mxu0 0
        %874 = vmatprep.subr.bf16.mxu0 0
        %875 = vmatpush1.bf16.msra.mxu0 0
        %876 = vmatprep.subr.bf16.mxu0 0
        %877 = vmatpush1.bf16.msra.mxu0 0
        %878 = vmatprep.subr.bf16.mxu0 0
        %879 = vmatpush1.bf16.msra.mxu0 0
        %880 = vmatprep.subr.bf16.mxu0 0
        %881 = vmatpush1.bf16.msra.mxu0 0
        %882 = vmatprep.subr.bf16.mxu0 0
        %883 = vmatpush1.bf16.msra.mxu0 0
        %884 = vmatprep.subr.bf16.mxu0 0
        %885 = vmatpush1.bf16.msra.mxu0 0
        %886 = vmatprep.subr.bf16.mxu0 0
        %887 = vmatpush1.bf16.msra.mxu0 0
        %888 = vmatprep.subr.bf16.mxu0 0
        %889 = vmatpush1.bf16.msra.mxu0 0
        %890 = vmatprep.subr.bf16.mxu0 0
        %891 = vmatpush1.bf16.msra.mxu0 0
        %892 = vmatprep.subr.bf16.mxu0 0
        %893 = vmatpush1.bf16.msra.mxu0 0
        %894 = vmatprep.subr.bf16.mxu0 0
        %895 = vmatpush1.bf16.msra.mxu0 0
        %896 = vmatprep.subr.bf16.mxu0 0
        %897 = vmatpush1.bf16.msra.mxu0 0
        %898 = vmatprep.subr.bf16.mxu0 0
        %899 = vmatpush1.bf16.msra.mxu0 0
        %900 = vmatprep.mubr.bf16.mxu0 0
        %901 = vmatmul.mubr.bf16.gmra.mrb[0].mxu0 %v866
        %v902 = vpop.f32.mrb[0].mxu0
        %v903 = vadd.f32 %v851, %v902
        %v904 = vpop.f32.mrb[0].mxu0
        %v905 = vpop.f32.mrb[0].mxu0
        %v906 = vpop.f32.mrb[0].mxu0
        %907 = vdwg.mxu0
        %v908 = vld [vmem:[#allocation8] sm:$0xf]
        %v909 = vld [vmem:[#allocation8 + $0x4] sm:$0xf]
        %v910 = vld [vmem:[#allocation8 + $0x8] sm:$0xf]
        %v911 = vld [vmem:[#allocation8 + $0xc] sm:$0xf]
        %v912 = vld [vmem:[#allocation10] sm:$0x1]
        %v914 = vlaneseq
        %v915 = vshrl.u32 %v914, 7
        %v916 = vsub.s32 0, %v915
        %v917 = vrot.slane %v912, %v916
        %v923 = vunpack.c.l.b16 %v908
        %v924 = vunpack.c.l.b16 %v909
        %v925 = vunpack.c.l.b16 %v910
        %v926 = vunpack.c.l.b16 %v911
        %v927 = vpack.c.b16 %v924, %v923
        %v928 = vpack.c.b16 %v926, %v925
        %931 = vmatprep.subr.bf16.mxu0 0
        %932 = vmatpush1.bf16.msra.mxu0 %v927
        %933 = vmatprep.subr.bf16.mxu0 0
        %934 = vmatpush1.bf16.msra.mxu0 %v928
        %935 = vmatprep.subr.bf16.mxu0 0
        %936 = vmatpush1.bf16.msra.mxu0 0
        %937 = vmatprep.subr.bf16.mxu0 0
        %938 = vmatpush1.bf16.msra.mxu0 0
        %939 = vmatprep.subr.bf16.mxu0 0
        %940 = vmatpush1.bf16.msra.mxu0 0
        %941 = vmatprep.subr.bf16.mxu0 0
        %942 = vmatpush1.bf16.msra.mxu0 0
        %943 = vmatprep.subr.bf16.mxu0 0
        %944 = vmatpush1.bf16.msra.mxu0 0
        %945 = vmatprep.subr.bf16.mxu0 0
        %946 = vmatpush1.bf16.msra.mxu0 0
        %947 = vmatprep.subr.bf16.mxu0 0
        %948 = vmatpush1.bf16.msra.mxu0 0
        %949 = vmatprep.subr.bf16.mxu0 0
        %950 = vmatpush1.bf16.msra.mxu0 0
        %951 = vmatprep.subr.bf16.mxu0 0
        %952 = vmatpush1.bf16.msra.mxu0 0
        %953 = vmatprep.subr.bf16.mxu0 0
        %954 = vmatpush1.bf16.msra.mxu0 0
        %955 = vmatprep.subr.bf16.mxu0 0
        %956 = vmatpush1.bf16.msra.mxu0 0
        %957 = vmatprep.subr.bf16.mxu0 0
        %958 = vmatpush1.bf16.msra.mxu0 0
        %959 = vmatprep.subr.bf16.mxu0 0
        %960 = vmatpush1.bf16.msra.mxu0 0
        %961 = vmatprep.subr.bf16.mxu0 0
        %962 = vmatpush1.bf16.msra.mxu0 0
        %963 = vmatprep.mubr.bf16.mxu0 0
        %964 = vmatmul.mubr.bf16.gmra.mrb[0].mxu0 %v866
        %v965 = vpop.f32.mrb[0].mxu0
        %v966 = vadd.f32 %v917, %v965
        %v967 = vpop.f32.mrb[0].mxu0
        %v968 = vpop.f32.mrb[0].mxu0
        %v969 = vpop.f32.mrb[0].mxu0
        %970 = vdwg.mxu0
        %v971 = vpack.c.bf16 %v841, %v841
        %v972 = vpack.c.bf16 %v903, %v903
        %v973 = vpack.c.bf16 %v966, %v966
        %v975 = vlaneseq
        %v976 = vshrl.u32 %v975, 7
        %v977 = vsub.s32 0, %v976
        %v978 = vrot.slane %v771, %v977
        %vm980 = vcmask 64512
        %v982 = vsel %vm980, %v971, 0
        %v985 = vsel %vm980, %v972, 0
        %987 = vmatprep.subr.bf16.mxu0 0
        %988 = vmatpush1.bf16.xpose.msra.mxu0 %v985
        %989 = vmatprep.subr.bf16.mxu0 0
        %990 = vmatpush1.bf16.xpose.msra.mxu0 0
        %991 = vmatprep.subr.bf16.mxu0 0
        %992 = vmatpush1.bf16.xpose.msra.mxu0 0
        %993 = vmatprep.subr.bf16.mxu0 0
        %994 = vmatpush1.bf16.xpose.msra.mxu0 0
        %995 = vmatprep.subr.bf16.mxu0 0
        %996 = vmatpush1.bf16.xpose.msra.mxu0 0
        %997 = vmatprep.subr.bf16.mxu0 0
        %998 = vmatpush1.bf16.xpose.msra.mxu0 0
        %999 = vmatprep.subr.bf16.mxu0 0
        %1000 = vmatpush1.bf16.xpose.msra.mxu0 0
        %1001 = vmatprep.subr.bf16.mxu0 0
        %1002 = vmatpush1.bf16.xpose.msra.mxu0 0
        %1003 = vmatprep.subr.bf16.mxu0 0
        %1004 = vmatpush1.bf16.xpose.msra.mxu0 0
        %1005 = vmatprep.subr.bf16.mxu0 0
        %1006 = vmatpush1.bf16.xpose.msra.mxu0 0
        %1007 = vmatprep.subr.bf16.mxu0 0
        %1008 = vmatpush1.bf16.xpose.msra.mxu0 0
        %1009 = vmatprep.subr.bf16.mxu0 0
        %1010 = vmatpush1.bf16.xpose.msra.mxu0 0
        %1011 = vmatprep.subr.bf16.mxu0 0
        %1012 = vmatpush1.bf16.xpose.msra.mxu0 0
        %1013 = vmatprep.subr.bf16.mxu0 0
        %1014 = vmatpush1.bf16.xpose.msra.mxu0 0
        %1015 = vmatprep.subr.bf16.mxu0 0
        %1016 = vmatpush1.bf16.xpose.msra.mxu0 0
        %1017 = vmatprep.subr.bf16.mxu0 0
        %1018 = vmatpush1.bf16.xpose.msra.mxu0 0
        %1019 = vmatprep.mubr.bf16.mxu0 0
        %1020 = vmatmul.mubr.bf16.gmra.mrb[0].mxu0 %v982
        %v1021 = vpop.f32.mrb[0].mxu0
        %v1022 = vadd.f32 %v978, %v1021
        %v1023 = vpop.f32.mrb[0].mxu0
        %v1024 = vpop.f32.mrb[0].mxu0
        %v1025 = vpop.f32.mrb[0].mxu0
        %1026 = vdwg.mxu0
        %v1027 = vsel %vm980, %v1022, -inf
        %1028 = vmax.xlane.f32.xlu0 %v1027
        %v1029 = vpop.xlane.xlu0 %1028
        %v1030 = vsub.f32 %v1022, %v1029
        %v1031 = vmul.f32 %v1030, 1.442695
        %v1032 = vpow.pop %v1031
        %v1033 = vsel %vm980, %v1032, 0.0
        %1034 = vadd.xlane.f32.xlu0 %v1033
        %v1035 = vpop.xlane.xlu0 %1034
        %v1036 = vrcp.pop %v1035
        %v1037 = vmul.f32 %v1032, %v1036
        %v1038 = vpack.c.bf16 %v1037, %v1037
        %v1040 = vsel %vm980, %v1038, 0
        %vm1042 = vcmask 1043456
        %v1044 = vsel %vm1042, %v973, 0
        %1046 = vmatprep.subr.bf16.mxu0 0
        %1047 = vmatpush1.bf16.msra.mxu0 %v1044
        %1048 = vmatprep.subr.bf16.mxu0 0
        %1049 = vmatpush1.bf16.msra.mxu0 0
        %1050 = vmatprep.subr.bf16.mxu0 0
        %1051 = vmatpush1.bf16.msra.mxu0 0
        %1052 = vmatprep.subr.bf16.mxu0 0
        %1053 = vmatpush1.bf16.msra.mxu0 0
        %1054 = vmatprep.subr.bf16.mxu0 0
        %1055 = vmatpush1.bf16.msra.mxu0 0
        %1056 = vmatprep.subr.bf16.mxu0 0
        %1057 = vmatpush1.bf16.msra.mxu0 0
        %1058 = vmatprep.subr.bf16.mxu0 0
        %1059 = vmatpush1.bf16.msra.mxu0 0
        %1060 = vmatprep.subr.bf16.mxu0 0
        %1061 = vmatpush1.bf16.msra.mxu0 0
        %1062 = vmatprep.subr.bf16.mxu0 0
        %1063 = vmatpush1.bf16.msra.mxu0 0
        %1064 = vmatprep.subr.bf16.mxu0 0
        %1065 = vmatpush1.bf16.msra.mxu0 0
        %1066 = vmatprep.subr.bf16.mxu0 0
        %1067 = vmatpush1.bf16.msra.mxu0 0
        %1068 = vmatprep.subr.bf16.mxu0 0
        %1069 = vmatpush1.bf16.msra.mxu0 0
        %1070 = vmatprep.subr.bf16.mxu0 0
        %1071 = vmatpush1.bf16.msra.mxu0 0
        %1072 = vmatprep.subr.bf16.mxu0 0
        %1073 = vmatpush1.bf16.msra.mxu0 0
        %1074 = vmatprep.subr.bf16.mxu0 0
        %1075 = vmatpush1.bf16.msra.mxu0 0
        %1076 = vmatprep.subr.bf16.mxu0 0
        %1077 = vmatpush1.bf16.msra.mxu0 0
        %1078 = vmatprep.mubr.bf16.mxu0 0
        %1079 = vmatmul.mubr.bf16.gmra.mrb[0].mxu0 %v1040
        %v1080 = vpop.f32.mrb[0].mxu0
        %v1081 = vadd.f32 0.0, %v1080
        %v1082 = vpop.f32.mrb[0].mxu0
        %v1083 = vpop.f32.mrb[0].mxu0
        %v1084 = vpop.f32.mrb[0].mxu0
        %1085 = vdwg.mxu0
        %1087 = vrot.lane.b32.xlu0 %v971, 120
        %v1088 = vpop.permute.xlu0 %1087
        %1090 = vrot.lane.b32.xlu0 %v972, 120
        %v1091 = vpop.permute.xlu0 %1090
        %v1093 = vsel %vm980, %v1088, 0
        %v1096 = vsel %vm980, %v1091, 0
        %1098 = vmatprep.subr.bf16.mxu0 0
        %1099 = vmatpush1.bf16.xpose.msra.mxu0 %v1096
        %1100 = vmatprep.subr.bf16.mxu0 0
        %1101 = vmatpush1.bf16.xpose.msra.mxu0 0
        %1102 = vmatprep.subr.bf16.mxu0 0
        %1103 = vmatpush1.bf16.xpose.msra.mxu0 0
        %1104 = vmatprep.subr.bf16.mxu0 0
        %1105 = vmatpush1.bf16.xpose.msra.mxu0 0
        %1106 = vmatprep.subr.bf16.mxu0 0
        %1107 = vmatpush1.bf16.xpose.msra.mxu0 0
        %1108 = vmatprep.subr.bf16.mxu0 0
        %1109 = vmatpush1.bf16.xpose.msra.mxu0 0
        %1110 = vmatprep.subr.bf16.mxu0 0
        %1111 = vmatpush1.bf16.xpose.msra.mxu0 0
        %1112 = vmatprep.subr.bf16.mxu0 0
        %1113 = vmatpush1.bf16.xpose.msra.mxu0 0
        %1114 = vmatprep.subr.bf16.mxu0 0
        %1115 = vmatpush1.bf16.xpose.msra.mxu0 0
        %1116 = vmatprep.subr.bf16.mxu0 0
        %1117 = vmatpush1.bf16.xpose.msra.mxu0 0
        %1118 = vmatprep.subr.bf16.mxu0 0
        %1119 = vmatpush1.bf16.xpose.msra.mxu0 0
        %1120 = vmatprep.subr.bf16.mxu0 0
        %1121 = vmatpush1.bf16.xpose.msra.mxu0 0
        %1122 = vmatprep.subr.bf16.mxu0 0
        %1123 = vmatpush1.bf16.xpose.msra.mxu0 0
        %1124 = vmatprep.subr.bf16.mxu0 0
        %1125 = vmatpush1.bf16.xpose.msra.mxu0 0
        %1126 = vmatprep.subr.bf16.mxu0 0
        %1127 = vmatpush1.bf16.xpose.msra.mxu0 0
        %1128 = vmatprep.subr.bf16.mxu0 0
        %1129 = vmatpush1.bf16.xpose.msra.mxu0 0
        %1130 = vmatprep.mubr.bf16.mxu0 0
        %1131 = vmatmul.mubr.bf16.gmra.mrb[0].mxu0 %v1093
        %v1132 = vpop.f32.mrb[0].mxu0
        %v1133 = vadd.f32 %v978, %v1132
        %v1134 = vpop.f32.mrb[0].mxu0
        %v1135 = vpop.f32.mrb[0].mxu0
        %v1136 = vpop.f32.mrb[0].mxu0
        %1137 = vdwg.mxu0
        %v1138 = vsel %vm980, %v1133, -inf
        %1139 = vmax.xlane.f32.xlu0 %v1138
        %v1140 = vpop.xlane.xlu0 %1139
        %v1141 = vsub.f32 %v1133, %v1140
        %v1142 = vmul.f32 %v1141, 1.442695
        %v1143 = vpow.pop %v1142
        %v1144 = vsel %vm980, %v1143, 0.0
        %1145 = vadd.xlane.f32.xlu0 %v1144
        %v1146 = vpop.xlane.xlu0 %1145
        %v1147 = vrcp.pop %v1146
        %v1148 = vmul.f32 %v1143, %v1147
        %v1149 = vpack.c.bf16 %v1148, %v1148
        %1151 = vrot.lane.b32.xlu0 %v973, 120
        %v1152 = vpop.permute.xlu0 %1151
        %v1154 = vsel %vm980, %v1149, 0
        %v1157 = vsel %vm1042, %v1152, 0
        %1159 = vmatprep.subr.bf16.mxu0 0
        %1160 = vmatpush1.bf16.msra.mxu0 %v1157
        %1161 = vmatprep.subr.bf16.mxu0 0
        %1162 = vmatpush1.bf16.msra.mxu0 0
        %1163 = vmatprep.subr.bf16.mxu0 0
        %1164 = vmatpush1.bf16.msra.mxu0 0
        %1165 = vmatprep.subr.bf16.mxu0 0
        %1166 = vmatpush1.bf16.msra.mxu0 0
        %1167 = vmatprep.subr.bf16.mxu0 0
        %1168 = vmatpush1.bf16.msra.mxu0 0
        %1169 = vmatprep.subr.bf16.mxu0 0
        %1170 = vmatpush1.bf16.msra.mxu0 0
        %1171 = vmatprep.subr.bf16.mxu0 0
        %1172 = vmatpush1.bf16.msra.mxu0 0
        %1173 = vmatprep.subr.bf16.mxu0 0
        %1174 = vmatpush1.bf16.msra.mxu0 0
        %1175 = vmatprep.subr.bf16.mxu0 0
        %1176 = vmatpush1.bf16.msra.mxu0 0
        %1177 = vmatprep.subr.bf16.mxu0 0
        %1178 = vmatpush1.bf16.msra.mxu0 0
        %1179 = vmatprep.subr.bf16.mxu0 0
        %1180 = vmatpush1.bf16.msra.mxu0 0
        %1181 = vmatprep.subr.bf16.mxu0 0
        %1182 = vmatpush1.bf16.msra.mxu0 0
        %1183 = vmatprep.subr.bf16.mxu0 0
        %1184 = vmatpush1.bf16.msra.mxu0 0
        %1185 = vmatprep.subr.bf16.mxu0 0
        %1186 = vmatpush1.bf16.msra.mxu0 0
        %1187 = vmatprep.subr.bf16.mxu0 0
        %1188 = vmatpush1.bf16.msra.mxu0 0
        %1189 = vmatprep.subr.bf16.mxu0 0
        %1190 = vmatpush1.bf16.msra.mxu0 0
        %1191 = vmatprep.mubr.bf16.mxu0 0
        %1192 = vmatmul.mubr.bf16.gmra.mrb[0].mxu0 %v1154
        %v1193 = vpop.f32.mrb[0].mxu0
        %v1194 = vadd.f32 0.0, %v1193
        %v1195 = vpop.f32.mrb[0].mxu0
        %v1196 = vpop.f32.mrb[0].mxu0
        %v1197 = vpop.f32.mrb[0].mxu0
        %1198 = vdwg.mxu0
        %1199 = vrot.lane.b32.xlu0 %v971, 112
        %v1200 = vpop.permute.xlu0 %1199
        %1201 = vrot.lane.b32.xlu0 %v972, 112
        %v1202 = vpop.permute.xlu0 %1201
        %v1204 = vsel %vm980, %v1200, 0
        %v1207 = vsel %vm980, %v1202, 0
        %1209 = vmatprep.subr.bf16.mxu0 0
        %1210 = vmatpush1.bf16.xpose.msra.mxu0 %v1207
        %1211 = vmatprep.subr.bf16.mxu0 0
        %1212 = vmatpush1.bf16.xpose.msra.mxu0 0
        %1213 = vmatprep.subr.bf16.mxu0 0
        %1214 = vmatpush1.bf16.xpose.msra.mxu0 0
        %1215 = vmatprep.subr.bf16.mxu0 0
        %1216 = vmatpush1.bf16.xpose.msra.mxu0 0
        %1217 = vmatprep.subr.bf16.mxu0 0
        %1218 = vmatpush1.bf16.xpose.msra.mxu0 0
        %1219 = vmatprep.subr.bf16.mxu0 0
        %1220 = vmatpush1.bf16.xpose.msra.mxu0 0
        %1221 = vmatprep.subr.bf16.mxu0 0
        %1222 = vmatpush1.bf16.xpose.msra.mxu0 0
        %1223 = vmatprep.subr.bf16.mxu0 0
        %1224 = vmatpush1.bf16.xpose.msra.mxu0 0
        %1225 = vmatprep.subr.bf16.mxu0 0
        %1226 = vmatpush1.bf16.xpose.msra.mxu0 0
        %1227 = vmatprep.subr.bf16.mxu0 0
        %1228 = vmatpush1.bf16.xpose.msra.mxu0 0
        %1229 = vmatprep.subr.bf16.mxu0 0
        %1230 = vmatpush1.bf16.xpose.msra.mxu0 0
        %1231 = vmatprep.subr.bf16.mxu0 0
        %1232 = vmatpush1.bf16.xpose.msra.mxu0 0
        %1233 = vmatprep.subr.bf16.mxu0 0
        %1234 = vmatpush1.bf16.xpose.msra.mxu0 0
        %1235 = vmatprep.subr.bf16.mxu0 0
        %1236 = vmatpush1.bf16.xpose.msra.mxu0 0
        %1237 = vmatprep.subr.bf16.mxu0 0
        %1238 = vmatpush1.bf16.xpose.msra.mxu0 0
        %1239 = vmatprep.subr.bf16.mxu0 0
        %1240 = vmatpush1.bf16.xpose.msra.mxu0 0
        %1241 = vmatprep.mubr.bf16.mxu0 0
        %1242 = vmatmul.mubr.bf16.gmra.mrb[0].mxu0 %v1204
        %v1243 = vpop.f32.mrb[0].mxu0
        %v1244 = vadd.f32 %v978, %v1243
        %v1245 = vpop.f32.mrb[0].mxu0
        %v1246 = vpop.f32.mrb[0].mxu0
        %v1247 = vpop.f32.mrb[0].mxu0
        %1248 = vdwg.mxu0
        %v1249 = vsel %vm980, %v1244, -inf
        %1250 = vmax.xlane.f32.xlu0 %v1249
        %v1251 = vpop.xlane.xlu0 %1250
        %v1252 = vsub.f32 %v1244, %v1251
        %v1253 = vmul.f32 %v1252, 1.442695
        %v1254 = vpow.pop %v1253
        %v1255 = vsel %vm980, %v1254, 0.0
        %1256 = vadd.xlane.f32.xlu0 %v1255
        %v1257 = vpop.xlane.xlu0 %1256
        %v1258 = vrcp.pop %v1257
        %v1259 = vmul.f32 %v1254, %v1258
        %v1260 = vpack.c.bf16 %v1259, %v1259
        %1261 = vrot.lane.b32.xlu0 %v973, 112
        %v1262 = vpop.permute.xlu0 %1261
        %v1264 = vsel %vm980, %v1260, 0
        %v1267 = vsel %vm1042, %v1262, 0
        %1269 = vmatprep.subr.bf16.mxu0 0
        %1270 = vmatpush1.bf16.msra.mxu0 %v1267
        %1271 = vmatprep.subr.bf16.mxu0 0
        %1272 = vmatpush1.bf16.msra.mxu0 0
        %1273 = vmatprep.subr.bf16.mxu0 0
        %1274 = vmatpush1.bf16.msra.mxu0 0
        %1275 = vmatprep.subr.bf16.mxu0 0
        %1276 = vmatpush1.bf16.msra.mxu0 0
        %1277 = vmatprep.subr.bf16.mxu0 0
        %1278 = vmatpush1.bf16.msra.mxu0 0
        %1279 = vmatprep.subr.bf16.mxu0 0
        %1280 = vmatpush1.bf16.msra.mxu0 0
        %1281 = vmatprep.subr.bf16.mxu0 0
        %1282 = vmatpush1.bf16.msra.mxu0 0
        %1283 = vmatprep.subr.bf16.mxu0 0
        %1284 = vmatpush1.bf16.msra.mxu0 0
        %1285 = vmatprep.subr.bf16.mxu0 0
        %1286 = vmatpush1.bf16.msra.mxu0 0
        %1287 = vmatprep.subr.bf16.mxu0 0
        %1288 = vmatpush1.bf16.msra.mxu0 0
        %1289 = vmatprep.subr.bf16.mxu0 0
        %1290 = vmatpush1.bf16.msra.mxu0 0
        %1291 = vmatprep.subr.bf16.mxu0 0
        %1292 = vmatpush1.bf16.msra.mxu0 0
        %1293 = vmatprep.subr.bf16.mxu0 0
        %1294 = vmatpush1.bf16.msra.mxu0 0
        %1295 = vmatprep.subr.bf16.mxu0 0
        %1296 = vmatpush1.bf16.msra.mxu0 0
        %1297 = vmatprep.subr.bf16.mxu0 0
        %1298 = vmatpush1.bf16.msra.mxu0 0
        %1299 = vmatprep.subr.bf16.mxu0 0
        %1300 = vmatpush1.bf16.msra.mxu0 0
        %1301 = vmatprep.mubr.bf16.mxu0 0
        %1302 = vmatmul.mubr.bf16.gmra.mrb[0].mxu0 %v1264
        %v1303 = vpop.f32.mrb[0].mxu0
        %v1304 = vadd.f32 0.0, %v1303
        %v1305 = vpop.f32.mrb[0].mxu0
        %v1306 = vpop.f32.mrb[0].mxu0
        %v1307 = vpop.f32.mrb[0].mxu0
        %1308 = vdwg.mxu0
        %1309 = vrot.lane.b32.xlu0 %v971, 104
        %v1310 = vpop.permute.xlu0 %1309
        %1311 = vrot.lane.b32.xlu0 %v972, 104
        %v1312 = vpop.permute.xlu0 %1311
        %v1314 = vsel %vm980, %v1310, 0
        %v1317 = vsel %vm980, %v1312, 0
        %1319 = vmatprep.subr.bf16.mxu0 0
        %1320 = vmatpush1.bf16.xpose.msra.mxu0 %v1317
        %1321 = vmatprep.subr.bf16.mxu0 0
        %1322 = vmatpush1.bf16.xpose.msra.mxu0 0
        %1323 = vmatprep.subr.bf16.mxu0 0
        %1324 = vmatpush1.bf16.xpose.msra.mxu0 0
        %1325 = vmatprep.subr.bf16.mxu0 0
        %1326 = vmatpush1.bf16.xpose.msra.mxu0 0
        %1327 = vmatprep.subr.bf16.mxu0 0
        %1328 = vmatpush1.bf16.xpose.msra.mxu0 0
        %1329 = vmatprep.subr.bf16.mxu0 0
        %1330 = vmatpush1.bf16.xpose.msra.mxu0 0
        %1331 = vmatprep.subr.bf16.mxu0 0
        %1332 = vmatpush1.bf16.xpose.msra.mxu0 0
        %1333 = vmatprep.subr.bf16.mxu0 0
        %1334 = vmatpush1.bf16.xpose.msra.mxu0 0
        %1335 = vmatprep.subr.bf16.mxu0 0
        %1336 = vmatpush1.bf16.xpose.msra.mxu0 0
        %1337 = vmatprep.subr.bf16.mxu0 0
        %1338 = vmatpush1.bf16.xpose.msra.mxu0 0
        %1339 = vmatprep.subr.bf16.mxu0 0
        %1340 = vmatpush1.bf16.xpose.msra.mxu0 0
        %1341 = vmatprep.subr.bf16.mxu0 0
        %1342 = vmatpush1.bf16.xpose.msra.mxu0 0
        %1343 = vmatprep.subr.bf16.mxu0 0
        %1344 = vmatpush1.bf16.xpose.msra.mxu0 0
        %1345 = vmatprep.subr.bf16.mxu0 0
        %1346 = vmatpush1.bf16.xpose.msra.mxu0 0
        %1347 = vmatprep.subr.bf16.mxu0 0
        %1348 = vmatpush1.bf16.xpose.msra.mxu0 0
        %1349 = vmatprep.subr.bf16.mxu0 0
        %1350 = vmatpush1.bf16.xpose.msra.mxu0 0
        %1351 = vmatprep.mubr.bf16.mxu0 0
        %1352 = vmatmul.mubr.bf16.gmra.mrb[0].mxu0 %v1314
        %v1353 = vpop.f32.mrb[0].mxu0
        %v1354 = vadd.f32 %v978, %v1353
        %v1355 = vpop.f32.mrb[0].mxu0
        %v1356 = vpop.f32.mrb[0].mxu0
        %v1357 = vpop.f32.mrb[0].mxu0
        %1358 = vdwg.mxu0
        %v1359 = vsel %vm980, %v1354, -inf
        %1360 = vmax.xlane.f32.xlu0 %v1359
        %v1361 = vpop.xlane.xlu0 %1360
        %v1362 = vsub.f32 %v1354, %v1361
        %v1363 = vmul.f32 %v1362, 1.442695
        %v1364 = vpow.pop %v1363
        %v1365 = vsel %vm980, %v1364, 0.0
        %1366 = vadd.xlane.f32.xlu0 %v1365
        %v1367 = vpop.xlane.xlu0 %1366
        %v1368 = vrcp.pop %v1367
        %v1369 = vmul.f32 %v1364, %v1368
        %v1370 = vpack.c.bf16 %v1369, %v1369
        %1371 = vrot.lane.b32.xlu0 %v973, 104
        %v1372 = vpop.permute.xlu0 %1371
        %v1374 = vsel %vm980, %v1370, 0
        %v1377 = vsel %vm1042, %v1372, 0
        %1379 = vmatprep.subr.bf16.mxu0 0
        %1380 = vmatpush1.bf16.msra.mxu0 %v1377
        %1381 = vmatprep.subr.bf16.mxu0 0
        %1382 = vmatpush1.bf16.msra.mxu0 0
        %1383 = vmatprep.subr.bf16.mxu0 0
        %1384 = vmatpush1.bf16.msra.mxu0 0
        %1385 = vmatprep.subr.bf16.mxu0 0
        %1386 = vmatpush1.bf16.msra.mxu0 0
        %1387 = vmatprep.subr.bf16.mxu0 0
        %1388 = vmatpush1.bf16.msra.mxu0 0
        %1389 = vmatprep.subr.bf16.mxu0 0
        %1390 = vmatpush1.bf16.msra.mxu0 0
        %1391 = vmatprep.subr.bf16.mxu0 0
        %1392 = vmatpush1.bf16.msra.mxu0 0
        %1393 = vmatprep.subr.bf16.mxu0 0
        %1394 = vmatpush1.bf16.msra.mxu0 0
        %1395 = vmatprep.subr.bf16.mxu0 0
        %1396 = vmatpush1.bf16.msra.mxu0 0
        %1397 = vmatprep.subr.bf16.mxu0 0
        %1398 = vmatpush1.bf16.msra.mxu0 0
        %1399 = vmatprep.subr.bf16.mxu0 0
        %1400 = vmatpush1.bf16.msra.mxu0 0
        %1401 = vmatprep.subr.bf16.mxu0 0
        %1402 = vmatpush1.bf16.msra.mxu0 0
        %1403 = vmatprep.subr.bf16.mxu0 0
        %1404 = vmatpush1.bf16.msra.mxu0 0
        %1405 = vmatprep.subr.bf16.mxu0 0
        %1406 = vmatpush1.bf16.msra.mxu0 0
        %1407 = vmatprep.subr.bf16.mxu0 0
        %1408 = vmatpush1.bf16.msra.mxu0 0
        %1409 = vmatprep.subr.bf16.mxu0 0
        %1410 = vmatpush1.bf16.msra.mxu0 0
        %1411 = vmatprep.mubr.bf16.mxu0 0
        %1412 = vmatmul.mubr.bf16.gmra.mrb[0].mxu0 %v1374
        %v1413 = vpop.f32.mrb[0].mxu0
        %v1414 = vadd.f32 0.0, %v1413
        %v1415 = vpop.f32.mrb[0].mxu0
        %v1416 = vpop.f32.mrb[0].mxu0
        %v1417 = vpop.f32.mrb[0].mxu0
        %1418 = vdwg.mxu0
        %1420 = vrot.lane.b32.xlu0 %v1194, 8
        %v1421 = vpop.permute.xlu0 %1420
        %1424 = vrot.lane.b32.xlu0 %v1304, 16
        %v1425 = vpop.permute.xlu0 %1424
        %1428 = vrot.lane.b32.xlu0 %v1414, 24
        %v1429 = vpop.permute.xlu0 %1428
        %v1431 = vsel %vm980, %v1081, %v1421
        %vm1432 = vcmask 130048
        %v1433 = vsel %vm1432, %v1431, %v1425
        %vm1434 = vcmask 195584
        %v1435 = vsel %vm1434, %v1433, %v1429
        %v1436 = vpack.c.bf16 %v1435, %v1435
        %v1437 = vld [vmem:[%s9] sm:$0xf]
        %v1438 = vld [vmem:[%s9 + $0x4] sm:$0xf]
        %v1439 = vld [vmem:[%s9 + $0x8] sm:$0xf]
        %v1440 = vld [vmem:[%s9 + $0xc] sm:$0xf]
        %v1441 = vld [vmem:[#allocation11] sm:$0x1]
        %v1443 = vlaneseq
        %v1444 = vshrl.u32 %v1443, 7
        %v1445 = vsub.s32 0, %v1444
        %v1446 = vrot.slane %v1441, %v1445
        %v1452 = vunpack.c.l.b16 %v1437
        %v1453 = vunpack.c.l.b16 %v1438
        %v1454 = vunpack.c.l.b16 %v1439
        %v1455 = vunpack.c.l.b16 %v1440
        %v1456 = vpack.c.b16 %v1453, %v1452
        %v1457 = vpack.c.b16 %v1455, %v1454
        %v1461 = vsel %vm797, %v1436, 0
        %1463 = vmatprep.subr.bf16.mxu0 0
        %1464 = vmatpush1.bf16.msra.mxu0 %v1456
        %1465 = vmatprep.subr.bf16.mxu0 0
        %1466 = vmatpush1.bf16.msra.mxu0 %v1457
        %1467 = vmatprep.subr.bf16.mxu0 0
        %1468 = vmatpush1.bf16.msra.mxu0 0
        %1469 = vmatprep.subr.bf16.mxu0 0
        %1470 = vmatpush1.bf16.msra.mxu0 0
        %1471 = vmatprep.subr.bf16.mxu0 0
        %1472 = vmatpush1.bf16.msra.mxu0 0
        %1473 = vmatprep.subr.bf16.mxu0 0
        %1474 = vmatpush1.bf16.msra.mxu0 0
        %1475 = vmatprep.subr.bf16.mxu0 0
        %1476 = vmatpush1.bf16.msra.mxu0 0
        %1477 = vmatprep.subr.bf16.mxu0 0
        %1478 = vmatpush1.bf16.msra.mxu0 0
        %1479 = vmatprep.subr.bf16.mxu0 0
        %1480 = vmatpush1.bf16.msra.mxu0 0
        %1481 = vmatprep.subr.bf16.mxu0 0
        %1482 = vmatpush1.bf16.msra.mxu0 0
        %1483 = vmatprep.subr.bf16.mxu0 0
        %1484 = vmatpush1.bf16.msra.mxu0 0
        %1485 = vmatprep.subr.bf16.mxu0 0
        %1486 = vmatpush1.bf16.msra.mxu0 0
        %1487 = vmatprep.subr.bf16.mxu0 0
        %1488 = vmatpush1.bf16.msra.mxu0 0
        %1489 = vmatprep.subr.bf16.mxu0 0
        %1490 = vmatpush1.bf16.msra.mxu0 0
        %1491 = vmatprep.subr.bf16.mxu0 0
        %1492 = vmatpush1.bf16.msra.mxu0 0
        %1493 = vmatprep.subr.bf16.mxu0 0
        %1494 = vmatpush1.bf16.msra.mxu0 0
        %1495 = vmatprep.mubr.bf16.mxu0 0
        %1496 = vmatmul.mubr.bf16.gmra.mrb[0].mxu0 %v1461
        %v1497 = vpop.f32.mrb[0].mxu0
        %v1498 = vadd.f32 %v1446, %v1497
        %v1499 = vpop.f32.mrb[0].mxu0
        %v1500 = vpop.f32.mrb[0].mxu0
        %v1501 = vpop.f32.mrb[0].mxu0
        %1502 = vdwg.mxu0
        %v1503 = vadd.f32 %v767, %v1498
        %v1504 = vsel %vm797, %v1503, 0.0
        %1505 = vadd.xlane.f32.xlu0 %v1504
        %v1506 = vpop.xlane.xlu0 %1505
        %v1507 = vrcp.pop 32.0
        %v1508 = vmul.f32 %v1506, %v1507
        %v1509 = vmul.f32 %v1503, %v1503
        %v1510 = vsel %vm797, %v1509, 0.0
        %1511 = vadd.xlane.f32.xlu0 %v1510
        %v1512 = vpop.xlane.xlu0 %1511
        %v1513 = vmul.f32 %v1512, %v1507
        %v1514 = vmul.f32 %v1508, %v1508
        %v1515 = vsub.f32 %v1513, %v1514
        %v1516 = vmax.f32 %v1515, 0.0
        %v1517 = vsub.f32 %v1503, %v1508
        %v1518 = vadd.f32 %v1516, 1e-12
        %v1519 = vrsqrt.pop %v1518
        %v1520 = vmul.f32 %v1517, %v1519
        %v1521 = vld [vmem:[#allocation13] sm:$0x1]
        %v1523 = vlaneseq
        %v1524 = vshrl.u32 %v1523, 7
        %v1525 = vsub.s32 0, %v1524
        %v1526 = vrot.slane %v1521, %v1525
        %v1528 = vmul.f32 %v1520, %v1526
        %v1529 = vld [vmem:[#allocation14] sm:$0x1]
        %v1531 = vlaneseq
        %v1532 = vshrl.u32 %v1531, 7
        %v1533 = vsub.s32 0, %v1532
        %v1534 = vrot.slane %v1529, %v1533
        %v1536 = vadd.f32 %v1528, %v1534
        %v1537 = vpack.c.bf16 %v1536, %v1536
        %v1538 = vld [vmem:[%s13] sm:$0xf]
        %v1539 = vld [vmem:[%s13 + $0x4] sm:$0xf]
        %v1540 = vld [vmem:[%s13 + $0x8] sm:$0xf]
        %v1541 = vld [vmem:[%s13 + $0xc] sm:$0xf]
        %v1542 = vld [vmem:[%s14] sm:$0x1]
        %v1544 = vlaneseq
        %v1545 = vshrl.u32 %v1544, 7
        %v1546 = vsub.s32 0, %v1545
        %v1547 = vrot.slane %v1542, %v1546
        %v1553 = vunpack.c.l.b16 %v1538
        %v1554 = vunpack.c.l.b16 %v1539
        %v1555 = vunpack.c.l.b16 %v1540
        %v1556 = vunpack.c.l.b16 %v1541
        %v1557 = vpack.c.b16 %v1554, %v1553
        %v1558 = vpack.c.b16 %v1556, %v1555
        %v1562 = vsel %vm797, %v1537, 0
        %1564 = vmatprep.subr.bf16.mxu0 0
        %1565 = vmatpush1.bf16.msra.mxu0 %v1557
        %1566 = vmatprep.subr.bf16.mxu0 0
        %1567 = vmatpush1.bf16.msra.mxu0 %v1558
        %1568 = vmatprep.subr.bf16.mxu0 0
        %1569 = vmatpush1.bf16.msra.mxu0 0
        %1570 = vmatprep.subr.bf16.mxu0 0
        %1571 = vmatpush1.bf16.msra.mxu0 0
        %1572 = vmatprep.subr.bf16.mxu0 0
        %1573 = vmatpush1.bf16.msra.mxu0 0
        %1574 = vmatprep.subr.bf16.mxu0 0
        %1575 = vmatpush1.bf16.msra.mxu0 0
        %1576 = vmatprep.subr.bf16.mxu0 0
        %1577 = vmatpush1.bf16.msra.mxu0 0
        %1578 = vmatprep.subr.bf16.mxu0 0
        %1579 = vmatpush1.bf16.msra.mxu0 0
        %1580 = vmatprep.subr.bf16.mxu0 0
        %1581 = vmatpush1.bf16.msra.mxu0 0
        %1582 = vmatprep.subr.bf16.mxu0 0
        %1583 = vmatpush1.bf16.msra.mxu0 0
        %1584 = vmatprep.subr.bf16.mxu0 0
        %1585 = vmatpush1.bf16.msra.mxu0 0
        %1586 = vmatprep.subr.bf16.mxu0 0
        %1587 = vmatpush1.bf16.msra.mxu0 0
        %1588 = vmatprep.subr.bf16.mxu0 0
        %1589 = vmatpush1.bf16.msra.mxu0 0
        %1590 = vmatprep.subr.bf16.mxu0 0
        %1591 = vmatpush1.bf16.msra.mxu0 0
        %1592 = vmatprep.subr.bf16.mxu0 0
        %1593 = vmatpush1.bf16.msra.mxu0 0
        %1594 = vmatprep.subr.bf16.mxu0 0
        %1595 = vmatpush1.bf16.msra.mxu0 0
        %1596 = vmatprep.mubr.bf16.mxu0 0
        %1597 = vmatmul.mubr.bf16.gmra.mrb[0].mxu0 %v1562
        %v1598 = vpop.f32.mrb[0].mxu0
        %v1599 = vadd.f32 %v1547, %v1598
        %v1600 = vpop.f32.mrb[0].mxu0
        %v1601 = vpop.f32.mrb[0].mxu0
        %v1602 = vpop.f32.mrb[0].mxu0
        %1603 = vdwg.mxu0
        %v1604 = vmax.f32 %v1599, 0.0
        %v1605 = vpack.c.bf16 %v1604, %v1604
        %v1606 = vld [vmem:[%s15] sm:$0xf]
        %v1607 = vld [vmem:[%s15 + $0x4] sm:$0xf]
        %v1608 = vld [vmem:[%s15 + $0x8] sm:$0xf]
        %v1609 = vld [vmem:[%s15 + $0xc] sm:$0xf]
        %v1610 = vld [vmem:[%s15 + $0x10] sm:$0xf]
        %v1611 = vld [vmem:[%s15 + $0x14] sm:$0xf]
        %v1612 = vld [vmem:[%s15 + $0x18] sm:$0xf]
        %v1613 = vld [vmem:[%s15 + $0x1c] sm:$0xf]
        %v1614 = vld [vmem:[%s16] sm:$0x1]
        %v1616 = vlaneseq
        %v1617 = vshrl.u32 %v1616, 7
        %v1618 = vsub.s32 0, %v1617
        %v1619 = vrot.slane %v1614, %v1618
        %v1629 = vunpack.c.l.b16 %v1606
        %v1630 = vunpack.c.l.b16 %v1607
        %v1631 = vunpack.c.l.b16 %v1608
        %v1632 = vunpack.c.l.b16 %v1609
        %v1633 = vunpack.c.l.b16 %v1610
        %v1634 = vunpack.c.l.b16 %v1611
        %v1635 = vunpack.c.l.b16 %v1612
        %v1636 = vunpack.c.l.b16 %v1613
        %v1637 = vpack.c.b16 %v1630, %v1629
        %v1638 = vpack.c.b16 %v1632, %v1631
        %v1639 = vpack.c.b16 %v1634, %v1633
        %v1640 = vpack.c.b16 %v1636, %v1635
        %vm1645 = vcmask 523264
        %v1647 = vsel %vm1645, %v1605, 0
        %1649 = vmatprep.subr.bf16.mxu0 0
        %1650 = vmatpush1.bf16.msra.mxu0 %v1637
        %1651 = vmatprep.subr.bf16.mxu0 0
        %1652 = vmatpush1.bf16.msra.mxu0 %v1638
        %1653 = vmatprep.subr.bf16.mxu0 0
        %1654 = vmatpush1.bf16.msra.mxu0 %v1639
        %1655 = vmatprep.subr.bf16.mxu0 0
        %1656 = vmatpush1.bf16.msra.mxu0 %v1640
        %1657 = vmatprep.subr.bf16.mxu0 0
        %1658 = vmatpush1.bf16.msra.mxu0 0
        %1659 = vmatprep.subr.bf16.mxu0 0
        %1660 = vmatpush1.bf16.msra.mxu0 0
        %1661 = vmatprep.subr.bf16.mxu0 0
        %1662 = vmatpush1.bf16.msra.mxu0 0
        %1663 = vmatprep.subr.bf16.mxu0 0
        %1664 = vmatpush1.bf16.msra.mxu0 0
        %1665 = vmatprep.subr.bf16.mxu0 0
        %1666 = vmatpush1.bf16.msra.mxu0 0
        %1667 = vmatprep.subr.bf16.mxu0 0
        %1668 = vmatpush1.bf16.msra.mxu0 0
        %1669 = vmatprep.subr.bf16.mxu0 0
        %1670 = vmatpush1.bf16.msra.mxu0 0
        %1671 = vmatprep.subr.bf16.mxu0 0
        %1672 = vmatpush1.bf16.msra.mxu0 0
        %1673 = vmatprep.subr.bf16.mxu0 0
        %1674 = vmatpush1.bf16.msra.mxu0 0
        %1675 = vmatprep.subr.bf16.mxu0 0
        %1676 = vmatpush1.bf16.msra.mxu0 0
        %1677 = vmatprep.subr.bf16.mxu0 0
        %1678 = vmatpush1.bf16.msra.mxu0 0
        %1679 = vmatprep.subr.bf16.mxu0 0
        %1680 = vmatpush1.bf16.msra.mxu0 0
        %1681 = vmatprep.mubr.bf16.mxu0 0
        %1682 = vmatmul.mubr.bf16.gmra.mrb[0].mxu0 %v1647
        %v1683 = vpop.f32.mrb[0].mxu0
        %v1684 = vadd.f32 %v1619, %v1683
        %v1685 = vpop.f32.mrb[0].mxu0
        %v1686 = vpop.f32.mrb[0].mxu0
        %v1687 = vpop.f32.mrb[0].mxu0
        %1688 = vdwg.mxu0
        %v1689 = vadd.f32 %v1536, %v1684
        %v1690 = vsel %vm797, %v1689, 0.0
        %1691 = vadd.xlane.f32.xlu0 %v1690
        %v1692 = vpop.xlane.xlu0 %1691
        %v1693 = vmul.f32 %v1692, %v1507
        %v1694 = vmul.f32 %v1689, %v1689
        %v1695 = vsel %vm797, %v1694, 0.0
        %1696 = vadd.xlane.f32.xlu0 %v1695
        %v1697 = vpop.xlane.xlu0 %1696
        %v1698 = vmul.f32 %v1697, %v1507
        %v1699 = vmul.f32 %v1693, %v1693
        %v1700 = vsub.f32 %v1698, %v1699
        %v1701 = vmax.f32 %v1700, 0.0
        %v1702 = vsub.f32 %v1689, %v1693
        %v1703 = vadd.f32 %v1701, 1e-12
        %v1704 = vrsqrt.pop %v1703
        %v1705 = vmul.f32 %v1702, %v1704
        %v1706 = vld [vmem:[%s17] sm:$0x1]
        %v1708 = vlaneseq
        %v1709 = vshrl.u32 %v1708, 7
        %v1710 = vsub.s32 0, %v1709
        %v1711 = vrot.slane %v1706, %v1710
        %v1713 = vmul.f32 %v1705, %v1711
        %v1714 = vld [vmem:[%s18] sm:$0x1]
        %v1716 = vlaneseq
        %v1717 = vshrl.u32 %v1716, 7
        %v1718 = vsub.s32 0, %v1717
        %v1719 = vrot.slane %v1714, %v1718
        %v1721 = vadd.f32 %v1713, %v1719
        %1722 = vst.msk [vmem:[%s754] sm:$0xff] %vm797, %v1721
        %s1723 = sand.u32 %s478, 1
        %s1724 = scalar_lea.sflag [#allocation4], %s1723
        %s1725 = sand.u32 %s478, 1
        %s1726 = smul.addr %s1725, 8
        %s1727 = scalar_lea.vmem [#allocation16], %s1726
        // Predicated region
        $region129: #{tpu_custom_call.1} parent=95 // pred_check
          %p1728 = pneg %p488
        $region130: #{tpu_custom_call.1} parent=95 // pred_check_branch
          %1730 = sbr.rel (%p1728) target = $region132
        $region131: #{tpu_custom_call.1} parent=95 // pred_region
          %s1732 = ssub.s32 128, 128
          %1733 = vsyncadd %s1724, %s1732
          %s1734 = sadd.s32 %s45, %s44
          %s1735 = smul.addr %s1734, 128
          %s1736 = scalar_lea.hbm %s19, %s1735
          %s1738 = sshll.u32 %s1727, 4
          %s1739 = int_to_ptr.vmem [resolvable:$true] %s1738
          %1741 = dma.vmem_to_hbm [thread:$0]  %s1739, 128, %s1736, %s1724
        $region132: #{tpu_custom_call.1} parent=95 // pred_fallthru
          _
      $region96: #{tpu_custom_call.1} parent=5 // pred_fallthru
        _
      %p1742 = scmp.le.s32.totalorder 2, %s35
      // Predicated region
      $region133: #{tpu_custom_call.1} parent=5 // pred_check
        %p1743 = pneg %p1742
      $region134: #{tpu_custom_call.1} parent=5 // pred_check_branch
        %1745 = sbr.rel (%p1743) target = $region136
      $region135: #{tpu_custom_call.1} parent=5 // pred_region
        %s1746 = ssub.s32 %s35, 2
        // Predicated region
        $region137: #{tpu_custom_call.1} parent=135 // pred_check
          %p1747 = pneg %p494
        $region138: #{tpu_custom_call.1} parent=135 // pred_check_branch
          %1749 = sbr.rel (%p1747) target = $region140
        $region139: #{tpu_custom_call.1} parent=135 // pred_region
          %s1750 = sand.u32 %s479, 1
          %s1751 = scalar_lea.sflag [#allocation4], %s1750
          %s1752 = sand.u32 %s479, 1
          %s1753 = smul.addr %s1752, 8
          %s1754 = scalar_lea.vmem [#allocation16], %s1753
          %1755 = dma.done %s1751, 128
        $region140: #{tpu_custom_call.1} parent=135 // pred_fallthru
          _
      $region136: #{tpu_custom_call.1} parent=5 // pred_fallthru
        _
    $region6: #{tpu_custom_call.1} parent=1 // loop_footer
      %s39 = sadd.s32 1, %s35
    $region7: #{tpu_custom_call.1} parent=1 // loop_footer_branch
      %34 = sbr.rel target = $region3
    $region8: #{tpu_custom_call.1} parent=1 // loop_exit
      _
    %1756 = vsyncpa [#allocation3], 1
    %s1757 = scalar_lea.sflag [#allocation3], 1
    %1758 = vsyncpa %s1757, 1
    %1759 = vsyncpa [#allocation6], 1
    %1760 = vsyncpa [#allocation9], 1
    %1761 = vsyncpa [#allocation12], 1
    %1762 = vsyncpa [#allocation15], 1
    %1763 = vsyncpa [#allocation4], 1
    %s1764 = scalar_lea.sflag [#allocation4], 1
    %1765 = vsyncpa %s1764, 1

// kernel: tpu_custom_call.1
$region0: #{tpu_custom_call.1}
  #allocation0 [shape = 'u32[]', space=smem, size = 0x4, offset = 0x4, fixed_abs, tag = 'smem constant byte address 0x4 - core index']
  #allocation1 [shape = 'u32[144,128]{1,0:T(1,128)}', space=vmem, size = 0x12000, scoped, tag = 'internal scratch']
  %s0 = inlined_call_operand.vmem [shape: f32[2,8,32], index: 0, kind: input, shape index: {}]
  %s1 = inlined_call_operand.vmem [shape: f32[2,8,32], index: 1, kind: input, shape index: {}]
  %s2 = inlined_call_operand.hbm [shape: f32[2,1,8], index: 2, kind: input, shape index: {}]
  %s3 = inlined_call_operand.vmem [shape: bf16[32,32], index: 3, kind: input, shape index: {}]
  %s4 = inlined_call_operand.vmem [shape: f32[1,32], index: 4, kind: input, shape index: {}]
  %s5 = inlined_call_operand.hbm [shape: bf16[32,32], index: 5, kind: input, shape index: {}]
  %s6 = inlined_call_operand.hbm [shape: f32[1,32], index: 6, kind: input, shape index: {}]
  %s7 = inlined_call_operand.hbm [shape: bf16[32,32], index: 7, kind: input, shape index: {}]
  %s8 = inlined_call_operand.hbm [shape: f32[1,32], index: 8, kind: input, shape index: {}]
  %s9 = inlined_call_operand.vmem [shape: bf16[32,32], index: 9, kind: input, shape index: {}]
  %s10 = inlined_call_operand.hbm [shape: f32[1,32], index: 10, kind: input, shape index: {}]
  %s11 = inlined_call_operand.hbm [shape: f32[1,32], index: 11, kind: input, shape index: {}]
  %s12 = inlined_call_operand.hbm [shape: f32[1,32], index: 12, kind: input, shape index: {}]
  %s13 = inlined_call_operand.vmem [shape: bf16[32,64], index: 13, kind: input, shape index: {}]
  %s14 = inlined_call_operand.vmem [shape: f32[1,64], index: 14, kind: input, shape index: {}]
  %s15 = inlined_call_operand.vmem [shape: bf16[64,32], index: 15, kind: input, shape index: {}]
  %s16 = inlined_call_operand.vmem [shape: f32[1,32], index: 16, kind: input, shape index: {}]
  %s17 = inlined_call_operand.vmem [shape: f32[1,32], index: 17, kind: input, shape index: {}]
  %s18 = inlined_call_operand.vmem [shape: f32[1,32], index: 18, kind: input, shape index: {}]
  %s19 = inlined_call_operand.hbm [shape: f32[2,8,32], index: 19, kind: output, shape index: {}]
  %s20 = sld [smem:[#allocation0]]
  $region141: #{tpu_custom_call.1} parent=0
    _
  %s22 = ssub.s32 1, %s20
  %s23 = scalar_select 0, %s22, %s20
  $region1: #{tpu_custom_call.1} parent=0
    #allocation2 [shape = 'u8[1024]{0}', space=vmem, size = 0x400, scoped, tag = 'input window, operand 2']
    #allocation3 [shape = 's32[2]{0}', space=sflag, size = 0x8, scoped, tag = 'scoped memory for tpu_custom_call.1']
    #allocation4 [shape = 's32[2]{0}', space=sflag, size = 0x8, scoped, tag = 'scoped memory for tpu_custom_call.1']
    #allocation5 [shape = 'u8[8192]{0}', space=vmem, size = 0x2000, scoped, tag = 'input window, operand 5, single buffered']
    #allocation6 [shape = 's32[1]{0}', space=sflag, size = 0x4, scoped, tag = 'scoped memory for tpu_custom_call.1']
    #allocation7 [shape = 'u8[512]{0}', space=vmem, size = 0x400, scoped, tag = 'input window, operand 6, single buffered']
    #allocation8 [shape = 'u8[8192]{0}', space=vmem, size = 0x2000, scoped, tag = 'input window, operand 7, single buffered']
    #allocation9 [shape = 's32[1]{0}', space=sflag, size = 0x4, scoped, tag = 'scoped memory for tpu_custom_call.1']
    #allocation10 [shape = 'u8[512]{0}', space=vmem, size = 0x400, scoped, tag = 'input window, operand 8, single buffered']
    #allocation11 [shape = 'u8[512]{0}', space=vmem, size = 0x400, scoped, tag = 'input window, operand 10, single buffered']
    #allocation12 [shape = 's32[1]{0}', space=sflag, size = 0x4, scoped, tag = 'scoped memory for tpu_custom_call.1']
    #allocation13 [shape = 'u8[512]{0}', space=vmem, size = 0x400, scoped, tag = 'input window, operand 11, single buffered']
    #allocation14 [shape = 'u8[512]{0}', space=vmem, size = 0x400, scoped, tag = 'input window, operand 12, single buffered']
    #allocation15 [shape = 's32[1]{0}', space=sflag, size = 0x4, scoped, tag = 'scoped memory for tpu_custom_call.1']
    #allocation16 [shape = 'u8[8192]{0}', space=vmem, size = 0x2000, scoped, tag = 'output window, operand 0']
    %24 = vsyncpa [#allocation3], 0
    %s25 = scalar_lea.sflag [#allocation3], 1
    %26 = vsyncpa %s25, 0
    %27 = vsyncpa [#allocation6], 0
    %28 = vsyncpa [#allocation9], 0
    %29 = vsyncpa [#allocation12], 0
    %30 = vsyncpa [#allocation15], 0
    %31 = vsyncpa [#allocation4], 0
    %s32 = scalar_lea.sflag [#allocation4], 1
    %33 = vsyncpa %s32, 0
    loop: start=0, step=1, limit=4
    $region2: #{tpu_custom_call.1} parent=1 // loop_pre_header
      _
    $region3: #{tpu_custom_call.1} parent=1 // loop_header
      %s35 = sphi 0, %s39
      %p36 = scmp.ge.s32.totalorder %s35, 4
      %s42 = sphi 0, %s54
      %s43 = sphi 0, %s50
      %s44 = sphi 0, %s42
      %s45 = sphi 0, %s43
      %s46 = sphi 0, %s44
      %s47 = sphi 0, %s45
      %s59 = sphi 0, %s61
      %s62 = sphi 0, %s59
      %s63 = sphi 0, %s62
      %s79 = sphi 0, %s63
      %s85 = sphi 0, %s87
      %s88 = sphi 0, %s85
      %s89 = sphi 0, %s88
      %s105 = sphi 0, %s89
      %s111 = sphi 0, %s113
      %s114 = sphi 0, %s111
      %s115 = sphi 0, %s114
      %s131 = sphi 0, %s115
      %s135 = sphi 0, %s135
      %s137 = sphi 0, %s135
      %s138 = sphi 0, %s137
      %s152 = sphi 0, %s138
      %s156 = sphi 0, %s156
      %s158 = sphi 0, %s156
      %s159 = sphi 0, %s158
      %s173 = sphi 0, %s159
      %s177 = sphi 0, %s177
      %s179 = sphi 0, %s177
      %s180 = sphi 0, %s179
      %s194 = sphi 0, %s180
      %s198 = sphi 0, %s198
      %s200 = sphi 0, %s198
      %s201 = sphi 0, %s200
      %s215 = sphi 0, %s201
      %s219 = sphi 0, %s219
      %s221 = sphi 0, %s219
      %s222 = sphi 0, %s221
      %s236 = sphi 0, %s222
      %s240 = sphi 0, %s240
      %s242 = sphi 0, %s240
      %s243 = sphi 0, %s242
      %s257 = sphi 0, %s243
      %s261 = sphi 0, %s261
      %s263 = sphi 0, %s261
      %s264 = sphi 0, %s263
      %s278 = sphi 0, %s264
      %s282 = sphi 0, %s282
      %s284 = sphi 0, %s282
      %s285 = sphi 0, %s284
      %s299 = sphi 0, %s285
      %s303 = sphi 0, %s303
      %s305 = sphi 0, %s303
      %s306 = sphi 0, %s305
      %s320 = sphi 0, %s306
      %s324 = sphi 0, %s324
      %s326 = sphi 0, %s324
      %s327 = sphi 0, %s326
      %s341 = sphi 0, %s327
      %s345 = sphi 0, %s345
      %s347 = sphi 0, %s345
      %s348 = sphi 0, %s347
      %s362 = sphi 0, %s348
      %s366 = sphi 0, %s366
      %s368 = sphi 0, %s366
      %s369 = sphi 0, %s368
      %s383 = sphi 0, %s369
      %s387 = sphi 0, %s387
      %s389 = sphi 0, %s387
      %s390 = sphi 0, %s389
      %s404 = sphi 0, %s390
      %s408 = sphi 0, %s408
      %s410 = sphi 0, %s408
      %s411 = sphi 0, %s410
      %s425 = sphi 0, %s411
      %s429 = sphi 0, %s429
      %s431 = sphi 0, %s429
      %s432 = sphi 0, %s431
      %s446 = sphi 0, %s432
      %s450 = sphi 0, %s450
      %s452 = sphi 0, %s450
      %s453 = sphi 0, %s452
      %s467 = sphi 0, %s453
      %s475 = sphi 0, %s477
      %s478 = sphi 0, %s475
      %s479 = sphi 0, %s478
      %s495 = sphi 0, %s479
    $region4: #{tpu_custom_call.1} parent=1 // loop_header_branch
      %38 = sbr.rel (%p36) target = $region8
    $region5: #{tpu_custom_call.1} parent=1 // loop_body
      %s40 = ssub.s32 %s35, 1
      %s41 = ssub.s32 %s35, 2
      %s48 = sadd.s32 1, %s43
      %p49 = scmp.ge.s32.totalorder %s48, 1
      %s50 = scalar_select %p49, 0, %s48
      %s51 = sadd.s32 1, %s42
      %s52 = scalar_select %p49, %s51, %s42
      %p53 = scmp.ge.s32.totalorder %s52, 2
      %s54 = scalar_select %p53, 0, %s52
      %s55 = ssub.s32 %s42, %s54
      %s56 = ssub.s32 %s43, %s50
      %s57 = sor.u32 %s55, %s56
      %p58 = scmp.eq.s32.totalorder %s57, 0
      %s60 = sadd.s32 %s59, 1
      %s61 = scalar_select %p58, %s59, %s60
      %p64 = pneg %p58
      %p65 = scmp.eq.s32.totalorder %s35, 1
      %p66 = por %p64, %p65
      %p67 = scmp.ne.s32.totalorder %s59, %s62
      %p68 = scmp.eq.s32.totalorder %s35, 0
      %p69 = por %p67, %p68
      %p70 = scmp.ne.s32.totalorder %s59, %s62
      %p71 = scmp.eq.s32.totalorder %s40, 1
      %p72 = por %p70, %p71
      %p73 = scmp.ne.s32.totalorder %s62, %s63
      %p74 = scmp.eq.s32.totalorder %s40, 0
      %p75 = por %p73, %p74
      %p76 = scmp.ne.s32.totalorder %s62, %s63
      %p77 = scmp.eq.s32.totalorder %s41, 1
      %p78 = por %p76, %p77
      %p80 = scmp.ne.s32.totalorder %s63, %s79
      %p81 = scmp.eq.s32.totalorder %s41, 0
      %p82 = por %p80, %p81
      %s83 = ssub.s32 %s42, %s54
      %p84 = scmp.eq.s32.totalorder %s83, 0
      %s86 = sadd.s32 %s85, 1
      %s87 = scalar_select %p84, %s85, %s86
      %p90 = pneg %p84
      %p91 = scmp.eq.s32.totalorder %s35, 1
      %p92 = por %p90, %p91
      %p93 = scmp.ne.s32.totalorder %s85, %s88
      %p94 = scmp.eq.s32.totalorder %s35, 0
      %p95 = por %p93, %p94
      %p96 = scmp.ne.s32.totalorder %s85, %s88
      %p97 = scmp.eq.s32.totalorder %s40, 1
      %p98 = por %p96, %p97
      %p99 = scmp.ne.s32.totalorder %s88, %s89
      %p100 = scmp.eq.s32.totalorder %s40, 0
      %p101 = por %p99, %p100
      %p102 = scmp.ne.s32.totalorder %s88, %s89
      %p103 = scmp.eq.s32.totalorder %s41, 1
      %p104 = por %p102, %p103
      %p106 = scmp.ne.s32.totalorder %s89, %s105
      %p107 = scmp.eq.s32.totalorder %s41, 0
      %p108 = por %p106, %p107
      %s109 = ssub.s32 %s42, %s54
      %p110 = scmp.eq.s32.totalorder %s109, 0
      %s112 = sadd.s32 %s111, 1
      %s113 = scalar_select %p110, %s111, %s112
      %p116 = pneg %p110
      %p117 = scmp.eq.s32.totalorder %s35, 1
      %p118 = por %p116, %p117
      %p119 = scmp.ne.s32.totalorder %s111, %s114
      %p120 = scmp.eq.s32.totalorder %s35, 0
      %p121 = por %p119, %p120
      %p122 = scmp.ne.s32.totalorder %s111, %s114
      %p123 = scmp.eq.s32.totalorder %s40, 1
      %p124 = por %p122, %p123
      %p125 = scmp.ne.s32.totalorder %s114, %s115
      %p126 = scmp.eq.s32.totalorder %s40, 0
      %p127 = por %p125, %p126
      %p128 = scmp.ne.s32.totalorder %s114, %s115
      %p129 = scmp.eq.s32.totalorder %s41, 1
      %p130 = por %p128, %p129
      %p132 = scmp.ne.s32.totalorder %s115, %s131
      %p133 = scmp.eq.s32.totalorder %s41, 0
      %p134 = por %p132, %p133
      %s136 = sadd.s32 %s135, 1
      %p139 = scmp.eq.s32.totalorder %s35, 1
      %p140 = scmp.ne.s32.totalorder %s135, %s137
      %p141 = scmp.eq.s32.totalorder %s35, 0
      %p142 = por %p140, %p141
      %p143 = scmp.ne.s32.totalorder %s135, %s137
      %p144 = scmp.eq.s32.totalorder %s40, 1
      %p145 = por %p143, %p144
      %p146 = scmp.ne.s32.totalorder %s137, %s138
      %p147 = scmp.eq.s32.totalorder %s40, 0
      %p148 = por %p146, %p147
      %p149 = scmp.ne.s32.totalorder %s137, %s138
      %p150 = scmp.eq.s32.totalorder %s41, 1
      %p151 = por %p149, %p150
      %p153 = scmp.ne.s32.totalorder %s138, %s152
      %p154 = scmp.eq.s32.totalorder %s41, 0
      %p155 = por %p153, %p154
      %s157 = sadd.s32 %s156, 1
      %p160 = scmp.eq.s32.totalorder %s35, 1
      %p161 = scmp.ne.s32.totalorder %s156, %s158
      %p162 = scmp.eq.s32.totalorder %s35, 0
      %p163 = por %p161, %p162
      %p164 = scmp.ne.s32.totalorder %s156, %s158
      %p165 = scmp.eq.s32.totalorder %s40, 1
      %p166 = por %p164, %p165
      %p167 = scmp.ne.s32.totalorder %s158, %s159
      %p168 = scmp.eq.s32.totalorder %s40, 0
      %p169 = por %p167, %p168
      %p170 = scmp.ne.s32.totalorder %s158, %s159
      %p171 = scmp.eq.s32.totalorder %s41, 1
      %p172 = por %p170, %p171
      %p174 = scmp.ne.s32.totalorder %s159, %s173
      %p175 = scmp.eq.s32.totalorder %s41, 0
      %p176 = por %p174, %p175
      %s178 = sadd.s32 %s177, 1
      %p181 = scmp.eq.s32.totalorder %s35, 1
      %p182 = scmp.ne.s32.totalorder %s177, %s179
      %p183 = scmp.eq.s32.totalorder %s35, 0
      %p184 = por %p182, %p183
      %p185 = scmp.ne.s32.totalorder %s177, %s179
      %p186 = scmp.eq.s32.totalorder %s40, 1
      %p187 = por %p185, %p186
      %p188 = scmp.ne.s32.totalorder %s179, %s180
      %p189 = scmp.eq.s32.totalorder %s40, 0
      %p190 = por %p188, %p189
      %p191 = scmp.ne.s32.totalorder %s179, %s180
      %p192 = scmp.eq.s32.totalorder %s41, 1
      %p193 = por %p191, %p192
      %p195 = scmp.ne.s32.totalorder %s180, %s194
      %p196 = scmp.eq.s32.totalorder %s41, 0
      %p197 = por %p195, %p196
      %s199 = sadd.s32 %s198, 1
      %p202 = scmp.eq.s32.totalorder %s35, 1
      %p203 = scmp.ne.s32.totalorder %s198, %s200
      %p204 = scmp.eq.s32.totalorder %s35, 0
      %p205 = por %p203, %p204
      %p206 = scmp.ne.s32.totalorder %s198, %s200
      %p207 = scmp.eq.s32.totalorder %s40, 1
      %p208 = por %p206, %p207
      %p209 = scmp.ne.s32.totalorder %s200, %s201
      %p210 = scmp.eq.s32.totalorder %s40, 0
      %p211 = por %p209, %p210
      %p212 = scmp.ne.s32.totalorder %s200, %s201
      %p213 = scmp.eq.s32.totalorder %s41, 1
      %p214 = por %p212, %p213
      %p216 = scmp.ne.s32.totalorder %s201, %s215
      %p217 = scmp.eq.s32.totalorder %s41, 0
      %p218 = por %p216, %p217
      %s220 = sadd.s32 %s219, 1
      %p223 = scmp.eq.s32.totalorder %s35, 1
      %p224 = scmp.ne.s32.totalorder %s219, %s221
      %p225 = scmp.eq.s32.totalorder %s35, 0
      %p226 = por %p224, %p225
      %p227 = scmp.ne.s32.totalorder %s219, %s221
      %p228 = scmp.eq.s32.totalorder %s40, 1
      %p229 = por %p227, %p228
      %p230 = scmp.ne.s32.totalorder %s221, %s222
      %p231 = scmp.eq.s32.totalorder %s40, 0
      %p232 = por %p230, %p231
      %p233 = scmp.ne.s32.totalorder %s221, %s222
      %p234 = scmp.eq.s32.totalorder %s41, 1
      %p235 = por %p233, %p234
      %p237 = scmp.ne.s32.totalorder %s222, %s236
      %p238 = scmp.eq.s32.totalorder %s41, 0
      %p239 = por %p237, %p238
      %s241 = sadd.s32 %s240, 1
      %p244 = scmp.eq.s32.totalorder %s35, 1
      %p245 = scmp.ne.s32.totalorder %s240, %s242
      %p246 = scmp.eq.s32.totalorder %s35, 0
      %p247 = por %p245, %p246
      %p248 = scmp.ne.s32.totalorder %s240, %s242
      %p249 = scmp.eq.s32.totalorder %s40, 1
      %p250 = por %p248, %p249
      %p251 = scmp.ne.s32.totalorder %s242, %s243
      %p252 = scmp.eq.s32.totalorder %s40, 0
      %p253 = por %p251, %p252
      %p254 = scmp.ne.s32.totalorder %s242, %s243
      %p255 = scmp.eq.s32.totalorder %s41, 1
      %p256 = por %p254, %p255
      %p258 = scmp.ne.s32.totalorder %s243, %s257
      %p259 = scmp.eq.s32.totalorder %s41, 0
      %p260 = por %p258, %p259
      %s262 = sadd.s32 %s261, 1
      %p265 = scmp.eq.s32.totalorder %s35, 1
      %p266 = scmp.ne.s32.totalorder %s261, %s263
      %p267 = scmp.eq.s32.totalorder %s35, 0
      %p268 = por %p266, %p267
      %p269 = scmp.ne.s32.totalorder %s261, %s263
      %p270 = scmp.eq.s32.totalorder %s40, 1
      %p271 = por %p269, %p270
      %p272 = scmp.ne.s32.totalorder %s263, %s264
      %p273 = scmp.eq.s32.totalorder %s40, 0
      %p274 = por %p272, %p273
      %p275 = scmp.ne.s32.totalorder %s263, %s264
      %p276 = scmp.eq.s32.totalorder %s41, 1
      %p277 = por %p275, %p276
      %p279 = scmp.ne.s32.totalorder %s264, %s278
      %p280 = scmp.eq.s32.totalorder %s41, 0
      %p281 = por %p279, %p280
      %s283 = sadd.s32 %s282, 1
      %p286 = scmp.eq.s32.totalorder %s35, 1
      %p287 = scmp.ne.s32.totalorder %s282, %s284
      %p288 = scmp.eq.s32.totalorder %s35, 0
      %p289 = por %p287, %p288
      %p290 = scmp.ne.s32.totalorder %s282, %s284
      %p291 = scmp.eq.s32.totalorder %s40, 1
      %p292 = por %p290, %p291
      %p293 = scmp.ne.s32.totalorder %s284, %s285
      %p294 = scmp.eq.s32.totalorder %s40, 0
      %p295 = por %p293, %p294
      %p296 = scmp.ne.s32.totalorder %s284, %s285
      %p297 = scmp.eq.s32.totalorder %s41, 1
      %p298 = por %p296, %p297
      %p300 = scmp.ne.s32.totalorder %s285, %s299
      %p301 = scmp.eq.s32.totalorder %s41, 0
      %p302 = por %p300, %p301
      %s304 = sadd.s32 %s303, 1
      %p307 = scmp.eq.s32.totalorder %s35, 1
      %p308 = scmp.ne.s32.totalorder %s303, %s305
      %p309 = scmp.eq.s32.totalorder %s35, 0
      %p310 = por %p308, %p309
      %p311 = scmp.ne.s32.totalorder %s303, %s305
      %p312 = scmp.eq.s32.totalorder %s40, 1
      %p313 = por %p311, %p312
      %p314 = scmp.ne.s32.totalorder %s305, %s306
      %p315 = scmp.eq.s32.totalorder %s40, 0
      %p316 = por %p314, %p315
      %p317 = scmp.ne.s32.totalorder %s305, %s306
      %p318 = scmp.eq.s32.totalorder %s41, 1
      %p319 = por %p317, %p318
      %p321 = scmp.ne.s32.totalorder %s306, %s320
      %p322 = scmp.eq.s32.totalorder %s41, 0
      %p323 = por %p321, %p322
      %s325 = sadd.s32 %s324, 1
      %p328 = scmp.eq.s32.totalorder %s35, 1
      %p329 = scmp.ne.s32.totalorder %s324, %s326
      %p330 = scmp.eq.s32.totalorder %s35, 0
      %p331 = por %p329, %p330
      %p332 = scmp.ne.s32.totalorder %s324, %s326
      %p333 = scmp.eq.s32.totalorder %s40, 1
      %p334 = por %p332, %p333
      %p335 = scmp.ne.s32.totalorder %s326, %s327
      %p336 = scmp.eq.s32.totalorder %s40, 0
      %p337 = por %p335, %p336
      %p338 = scmp.ne.s32.totalorder %s326, %s327
      %p339 = scmp.eq.s32.totalorder %s41, 1
      %p340 = por %p338, %p339
      %p342 = scmp.ne.s32.totalorder %s327, %s341
      %p343 = scmp.eq.s32.totalorder %s41, 0
      %p344 = por %p342, %p343
      %s346 = sadd.s32 %s345, 1
      %p349 = scmp.eq.s32.totalorder %s35, 1
      %p350 = scmp.ne.s32.totalorder %s345, %s347
      %p351 = scmp.eq.s32.totalorder %s35, 0
      %p352 = por %p350, %p351
      %p353 = scmp.ne.s32.totalorder %s345, %s347
      %p354 = scmp.eq.s32.totalorder %s40, 1
      %p355 = por %p353, %p354
      %p356 = scmp.ne.s32.totalorder %s347, %s348
      %p357 = scmp.eq.s32.totalorder %s40, 0
      %p358 = por %p356, %p357
      %p359 = scmp.ne.s32.totalorder %s347, %s348
      %p360 = scmp.eq.s32.totalorder %s41, 1
      %p361 = por %p359, %p360
      %p363 = scmp.ne.s32.totalorder %s348, %s362
      %p364 = scmp.eq.s32.totalorder %s41, 0
      %p365 = por %p363, %p364
      %s367 = sadd.s32 %s366, 1
      %p370 = scmp.eq.s32.totalorder %s35, 1
      %p371 = scmp.ne.s32.totalorder %s366, %s368
      %p372 = scmp.eq.s32.totalorder %s35, 0
      %p373 = por %p371, %p372
      %p374 = scmp.ne.s32.totalorder %s366, %s368
      %p375 = scmp.eq.s32.totalorder %s40, 1
      %p376 = por %p374, %p375
      %p377 = scmp.ne.s32.totalorder %s368, %s369
      %p378 = scmp.eq.s32.totalorder %s40, 0
      %p379 = por %p377, %p378
      %p380 = scmp.ne.s32.totalorder %s368, %s369
      %p381 = scmp.eq.s32.totalorder %s41, 1
      %p382 = por %p380, %p381
      %p384 = scmp.ne.s32.totalorder %s369, %s383
      %p385 = scmp.eq.s32.totalorder %s41, 0
      %p386 = por %p384, %p385
      %s388 = sadd.s32 %s387, 1
      %p391 = scmp.eq.s32.totalorder %s35, 1
      %p392 = scmp.ne.s32.totalorder %s387, %s389
      %p393 = scmp.eq.s32.totalorder %s35, 0
      %p394 = por %p392, %p393
      %p395 = scmp.ne.s32.totalorder %s387, %s389
      %p396 = scmp.eq.s32.totalorder %s40, 1
      %p397 = por %p395, %p396
      %p398 = scmp.ne.s32.totalorder %s389, %s390
      %p399 = scmp.eq.s32.totalorder %s40, 0
      %p400 = por %p398, %p399
      %p401 = scmp.ne.s32.totalorder %s389, %s390
      %p402 = scmp.eq.s32.totalorder %s41, 1
      %p403 = por %p401, %p402
      %p405 = scmp.ne.s32.totalorder %s390, %s404
      %p406 = scmp.eq.s32.totalorder %s41, 0
      %p407 = por %p405, %p406
      %s409 = sadd.s32 %s408, 1
      %p412 = scmp.eq.s32.totalorder %s35, 1
      %p413 = scmp.ne.s32.totalorder %s408, %s410
      %p414 = scmp.eq.s32.totalorder %s35, 0
      %p415 = por %p413, %p414
      %p416 = scmp.ne.s32.totalorder %s408, %s410
      %p417 = scmp.eq.s32.totalorder %s40, 1
      %p418 = por %p416, %p417
      %p419 = scmp.ne.s32.totalorder %s410, %s411
      %p420 = scmp.eq.s32.totalorder %s40, 0
      %p421 = por %p419, %p420
      %p422 = scmp.ne.s32.totalorder %s410, %s411
      %p423 = scmp.eq.s32.totalorder %s41, 1
      %p424 = por %p422, %p423
      %p426 = scmp.ne.s32.totalorder %s411, %s425
      %p427 = scmp.eq.s32.totalorder %s41, 0
      %p428 = por %p426, %p427
      %s430 = sadd.s32 %s429, 1
      %p433 = scmp.eq.s32.totalorder %s35, 1
      %p434 = scmp.ne.s32.totalorder %s429, %s431
      %p435 = scmp.eq.s32.totalorder %s35, 0
      %p436 = por %p434, %p435
      %p437 = scmp.ne.s32.totalorder %s429, %s431
      %p438 = scmp.eq.s32.totalorder %s40, 1
      %p439 = por %p437, %p438
      %p440 = scmp.ne.s32.totalorder %s431, %s432
      %p441 = scmp.eq.s32.totalorder %s40, 0
      %p442 = por %p440, %p441
      %p443 = scmp.ne.s32.totalorder %s431, %s432
      %p444 = scmp.eq.s32.totalorder %s41, 1
      %p445 = por %p443, %p444
      %p447 = scmp.ne.s32.totalorder %s432, %s446
      %p448 = scmp.eq.s32.totalorder %s41, 0
      %p449 = por %p447, %p448
      %s451 = sadd.s32 %s450, 1
      %p454 = scmp.eq.s32.totalorder %s35, 1
      %p455 = scmp.ne.s32.totalorder %s450, %s452
      %p456 = scmp.eq.s32.totalorder %s35, 0
      %p457 = por %p455, %p456
      %p458 = scmp.ne.s32.totalorder %s450, %s452
      %p459 = scmp.eq.s32.totalorder %s40, 1
      %p460 = por %p458, %p459
      %p461 = scmp.ne.s32.totalorder %s452, %s453
      %p462 = scmp.eq.s32.totalorder %s40, 0
      %p463 = por %p461, %p462
      %p464 = scmp.ne.s32.totalorder %s452, %s453
      %p465 = scmp.eq.s32.totalorder %s41, 1
      %p466 = por %p464, %p465
      %p468 = scmp.ne.s32.totalorder %s453, %s467
      %p469 = scmp.eq.s32.totalorder %s41, 0
      %p470 = por %p468, %p469
      %s471 = ssub.s32 %s42, %s54
      %s472 = ssub.s32 %s43, %s50
      %s473 = sor.u32 %s471, %s472
      %p474 = scmp.eq.s32.totalorder %s473, 0
      %s476 = sadd.s32 %s475, 1
      %s477 = scalar_select %p474, %s475, %s476
      %p480 = pneg %p474
      %p481 = scmp.eq.s32.totalorder %s35, 1
      %p482 = por %p480, %p481
      %p483 = scmp.ne.s32.totalorder %s475, %s478
      %p484 = scmp.eq.s32.totalorder %s35, 0
      %p485 = por %p483, %p484
      %p486 = scmp.ne.s32.totalorder %s475, %s478
      %p487 = scmp.eq.s32.totalorder %s40, 1
      %p488 = por %p486, %p487
      %p489 = scmp.ne.s32.totalorder %s478, %s479
      %p490 = scmp.eq.s32.totalorder %s40, 0
      %p491 = por %p489, %p490
      %p492 = scmp.ne.s32.totalorder %s478, %s479
      %p493 = scmp.eq.s32.totalorder %s41, 1
      %p494 = por %p492, %p493
      %p496 = scmp.ne.s32.totalorder %s479, %s495
      %p497 = scmp.eq.s32.totalorder %s41, 0
      %p498 = por %p496, %p497
      %p499 = scmp.le.s32.totalorder 1, %s35
      %p500 = scmp.lt.s32.totalorder %s35, 3
      %p501 = pnand %p499, %p500
      %p502 = pneg %p501
      // Predicated region
      $region9: #{tpu_custom_call.1} parent=5 // pred_check
        _
      $region10: #{tpu_custom_call.1} parent=5 // pred_check_branch
        %504 = sbr.rel (%p501) target = $region12
      $region11: #{tpu_custom_call.1} parent=5 // pred_region
        %s505 = ssub.s32 %s35, 1
        // Predicated region
        $region13: #{tpu_custom_call.1} parent=11 // pred_check
          %p506 = pneg %p148
        $region14: #{tpu_custom_call.1} parent=11 // pred_check_branch
          %508 = sbr.rel (%p506) target = $region16
        $region15: #{tpu_custom_call.1} parent=11 // pred_region
          _
        $region16: #{tpu_custom_call.1} parent=11 // pred_fallthru
          _
        // Predicated region
        $region17: #{tpu_custom_call.1} parent=11 // pred_check
          %p509 = pneg %p169
        $region18: #{tpu_custom_call.1} parent=11 // pred_check_branch
          %511 = sbr.rel (%p509) target = $region20
        $region19: #{tpu_custom_call.1} parent=11 // pred_region
          _
        $region20: #{tpu_custom_call.1} parent=11 // pred_fallthru
          _
        // Predicated region
        $region21: #{tpu_custom_call.1} parent=11 // pred_check
          %p512 = pneg %p190
        $region22: #{tpu_custom_call.1} parent=11 // pred_check_branch
          %514 = sbr.rel (%p512) target = $region24
        $region23: #{tpu_custom_call.1} parent=11 // pred_region
          %s516 = ssub.s32 256, 256
          %517 = vsyncadd [#allocation6], %s516
          %s518 = sshll.u32 [#allocation5], 4
          %s519 = int_to_ptr.vmem [resolvable:$true] %s518
          %524 = dma.hbm_to_vmem [thread:$0]  %s5, 256, %s519, [#allocation6], 64, 64, 4
        $region24: #{tpu_custom_call.1} parent=11 // pred_fallthru
          _
        // Predicated region
        $region25: #{tpu_custom_call.1} parent=11 // pred_check
          %p525 = pneg %p211
        $region26: #{tpu_custom_call.1} parent=11 // pred_check_branch
          %527 = sbr.rel (%p525) target = $region28
        $region27: #{tpu_custom_call.1} parent=11 // pred_region
          %s529 = ssub.s32 16, 16
          %530 = vsyncadd [#allocation6], %s529
          %s532 = sshll.u32 [#allocation7], 4
          %s533 = int_to_ptr.vmem [resolvable:$true] %s532
          %535 = dma.hbm_to_vmem [thread:$0]  %s6, 16, %s533, [#allocation6]
        $region28: #{tpu_custom_call.1} parent=11 // pred_fallthru
          _
        // Predicated region
        $region29: #{tpu_custom_call.1} parent=11 // pred_check
          %p536 = pneg %p232
        $region30: #{tpu_custom_call.1} parent=11 // pred_check_branch
          %538 = sbr.rel (%p536) target = $region32
        $region31: #{tpu_custom_call.1} parent=11 // pred_region
          %s540 = ssub.s32 256, 256
          %541 = vsyncadd [#allocation9], %s540
          %s542 = sshll.u32 [#allocation8], 4
          %s543 = int_to_ptr.vmem [resolvable:$true] %s542
          %548 = dma.hbm_to_vmem [thread:$0]  %s7, 256, %s543, [#allocation9], 64, 64, 4
        $region32: #{tpu_custom_call.1} parent=11 // pred_fallthru
          _
        // Predicated region
        $region33: #{tpu_custom_call.1} parent=11 // pred_check
          %p549 = pneg %p253
        $region34: #{tpu_custom_call.1} parent=11 // pred_check_branch
          %551 = sbr.rel (%p549) target = $region36
        $region35: #{tpu_custom_call.1} parent=11 // pred_region
          %s553 = ssub.s32 16, 16
          %554 = vsyncadd [#allocation9], %s553
          %s556 = sshll.u32 [#allocation10], 4
          %s557 = int_to_ptr.vmem [resolvable:$true] %s556
          %559 = dma.hbm_to_vmem [thread:$0]  %s8, 16, %s557, [#allocation9]
        $region36: #{tpu_custom_call.1} parent=11 // pred_fallthru
          _
        // Predicated region
        $region37: #{tpu_custom_call.1} parent=11 // pred_check
          %p560 = pneg %p274
        $region38: #{tpu_custom_call.1} parent=11 // pred_check_branch
          %562 = sbr.rel (%p560) target = $region40
        $region39: #{tpu_custom_call.1} parent=11 // pred_region
          _
        $region40: #{tpu_custom_call.1} parent=11 // pred_fallthru
          _
        // Predicated region
        $region41: #{tpu_custom_call.1} parent=11 // pred_check
          %p563 = pneg %p295
        $region42: #{tpu_custom_call.1} parent=11 // pred_check_branch
          %565 = sbr.rel (%p563) target = $region44
        $region43: #{tpu_custom_call.1} parent=11 // pred_region
          %s567 = ssub.s32 16, 16
          %568 = vsyncadd [#allocation12], %s567
          %s570 = sshll.u32 [#allocation11], 4
          %s571 = int_to_ptr.vmem [resolvable:$true] %s570
          %573 = dma.hbm_to_vmem [thread:$0]  %s10, 16, %s571, [#allocation12]
        $region44: #{tpu_custom_call.1} parent=11 // pred_fallthru
          _
        // Predicated region
        $region45: #{tpu_custom_call.1} parent=11 // pred_check
          %p574 = pneg %p316
        $region46: #{tpu_custom_call.1} parent=11 // pred_check_branch
          %576 = sbr.rel (%p574) target = $region48
        $region47: #{tpu_custom_call.1} parent=11 // pred_region
          %s578 = ssub.s32 16, 16
          %579 = vsyncadd [#allocation12], %s578
          %s581 = sshll.u32 [#allocation13], 4
          %s582 = int_to_ptr.vmem [resolvable:$true] %s581
          %584 = dma.hbm_to_vmem [thread:$0]  %s11, 16, %s582, [#allocation12]
        $region48: #{tpu_custom_call.1} parent=11 // pred_fallthru
          _
        // Predicated region
        $region49: #{tpu_custom_call.1} parent=11 // pred_check
          %p585 = pneg %p337
        $region50: #{tpu_custom_call.1} parent=11 // pred_check_branch
          %587 = sbr.rel (%p585) target = $region52
        $region51: #{tpu_custom_call.1} parent=11 // pred_region
          %s589 = ssub.s32 16, 16
          %590 = vsyncadd [#allocation15], %s589
          %s592 = sshll.u32 [#allocation14], 4
          %s593 = int_to_ptr.vmem [resolvable:$true] %s592
          %595 = dma.hbm_to_vmem [thread:$0]  %s12, 16, %s593, [#allocation15]
        $region52: #{tpu_custom_call.1} parent=11 // pred_fallthru
          _
        // Predicated region
        $region53: #{tpu_custom_call.1} parent=11 // pred_check
          %p596 = pneg %p358
        $region54: #{tpu_custom_call.1} parent=11 // pred_check_branch
          %598 = sbr.rel (%p596) target = $region56
        $region55: #{tpu_custom_call.1} parent=11 // pred_region
          _
        $region56: #{tpu_custom_call.1} parent=11 // pred_fallthru
          _
        // Predicated region
        $region57: #{tpu_custom_call.1} parent=11 // pred_check
          %p599 = pneg %p379
        $region58: #{tpu_custom_call.1} parent=11 // pred_check_branch
          %601 = sbr.rel (%p599) target = $region60
        $region59: #{tpu_custom_call.1} parent=11 // pred_region
          _
        $region60: #{tpu_custom_call.1} parent=11 // pred_fallthru
          _
        // Predicated region
        $region61: #{tpu_custom_call.1} parent=11 // pred_check
          %p602 = pneg %p400
        $region62: #{tpu_custom_call.1} parent=11 // pred_check_branch
          %604 = sbr.rel (%p602) target = $region64
        $region63: #{tpu_custom_call.1} parent=11 // pred_region
          _
        $region64: #{tpu_custom_call.1} parent=11 // pred_fallthru
          _
        // Predicated region
        $region65: #{tpu_custom_call.1} parent=11 // pred_check
          %p605 = pneg %p421
        $region66: #{tpu_custom_call.1} parent=11 // pred_check_branch
          %607 = sbr.rel (%p605) target = $region68
        $region67: #{tpu_custom_call.1} parent=11 // pred_region
          _
        $region68: #{tpu_custom_call.1} parent=11 // pred_fallthru
          _
        // Predicated region
        $region69: #{tpu_custom_call.1} parent=11 // pred_check
          %p608 = pneg %p442
        $region70: #{tpu_custom_call.1} parent=11 // pred_check_branch
          %610 = sbr.rel (%p608) target = $region72
        $region71: #{tpu_custom_call.1} parent=11 // pred_region
          _
        $region72: #{tpu_custom_call.1} parent=11 // pred_fallthru
          _
        // Predicated region
        $region73: #{tpu_custom_call.1} parent=11 // pred_check
          %p611 = pneg %p463
        $region74: #{tpu_custom_call.1} parent=11 // pred_check_branch
          %613 = sbr.rel (%p611) target = $region76
        $region75: #{tpu_custom_call.1} parent=11 // pred_region
          _
        $region76: #{tpu_custom_call.1} parent=11 // pred_fallthru
          _
      $region12: #{tpu_custom_call.1} parent=5 // pred_fallthru
        _
      %p614 = scmp.lt.s32.totalorder %s35, 2
      // Predicated region
      $region77: #{tpu_custom_call.1} parent=5 // pred_check
        %p615 = pneg %p614
      $region78: #{tpu_custom_call.1} parent=5 // pred_check_branch
        %617 = sbr.rel (%p615) target = $region80
      $region79: #{tpu_custom_call.1} parent=5 // pred_region
        // Predicated region
        $region81: #{tpu_custom_call.1} parent=79 // pred_check
          %p618 = pneg %p69
        $region82: #{tpu_custom_call.1} parent=79 // pred_check_branch
          %620 = sbr.rel (%p618) target = $region84
        $region83: #{tpu_custom_call.1} parent=79 // pred_region
          %p621 = scmp.lt.s32.totalorder %s42, 1
          %s622 = scalar_select %p621, %s42, 1
          %p623 = scmp.lt.s32.totalorder %s43, 0
          %s624 = scalar_select %p623, %s43, 0
          %s625 = sadd.s32 %s624, %s622
          %s626 = smul.addr %s625, 8
          %s627 = scalar_lea.vmem %s0, %s626
        $region84: #{tpu_custom_call.1} parent=79 // pred_fallthru
          _
        // Predicated region
        $region85: #{tpu_custom_call.1} parent=79 // pred_check
          %p628 = pneg %p95
        $region86: #{tpu_custom_call.1} parent=79 // pred_check_branch
          %630 = sbr.rel (%p628) target = $region88
        $region87: #{tpu_custom_call.1} parent=79 // pred_region
          %p631 = scmp.lt.s32.totalorder %s42, 1
          %s632 = scalar_select %p631, %s42, 1
          %s633 = smul.addr %s632, 8
          %s634 = scalar_lea.vmem %s1, %s633
        $region88: #{tpu_custom_call.1} parent=79 // pred_fallthru
          _
        // Predicated region
        $region89: #{tpu_custom_call.1} parent=79 // pred_check
          %p635 = pneg %p121
        $region90: #{tpu_custom_call.1} parent=79 // pred_check_branch
          %637 = sbr.rel (%p635) target = $region92
        $region91: #{tpu_custom_call.1} parent=79 // pred_region
          %s638 = sand.u32 %s111, 1
          %s639 = scalar_lea.sflag [#allocation3], %s638
          %s640 = sand.u32 %s111, 1
          %s641 = scalar_lea.vmem [#allocation2], %s640
          %s643 = ssub.s32 16, 16
          %644 = vsyncadd %s639, %s643
          %s645 = smul.addr %s42, 16
          %s646 = scalar_lea.hbm %s2, %s645
          %s648 = sshll.u32 %s641, 4
          %s649 = int_to_ptr.vmem [resolvable:$true] %s648
          %651 = dma.hbm_to_vmem [thread:$0]  %s646, 16, %s649, %s639
        $region92: #{tpu_custom_call.1} parent=79 // pred_fallthru
          _
      $region80: #{tpu_custom_call.1} parent=5 // pred_fallthru
        _
      %p652 = scmp.le.s32.totalorder 1, %s35
      %p653 = scmp.lt.s32.totalorder %s35, 3
      %p654 = pnand %p652, %p653
      %p655 = pneg %p654
      // Predicated region
      $region93: #{tpu_custom_call.1} parent=5 // pred_check
        _
      $region94: #{tpu_custom_call.1} parent=5 // pred_check_branch
        %657 = sbr.rel (%p654) target = $region96
      $region95: #{tpu_custom_call.1} parent=5 // pred_region
        %s658 = ssub.s32 %s35, 1
        %s659 = sand.u32 %s114, 1
        %s660 = scalar_lea.sflag [#allocation3], %s659
        %s661 = sand.u32 %s114, 1
        %s662 = scalar_lea.vmem [#allocation2], %s661
        // Predicated region
        $region97: #{tpu_custom_call.1} parent=95 // pred_check
          %p663 = pneg %p127
        $region98: #{tpu_custom_call.1} parent=95 // pred_check_branch
          %665 = sbr.rel (%p663) target = $region100
        $region99: #{tpu_custom_call.1} parent=95 // pred_region
          %666 = dma.done %s660, 16
        $region100: #{tpu_custom_call.1} parent=95 // pred_fallthru
          _
        // Predicated region
        $region101: #{tpu_custom_call.1} parent=95 // pred_check
          %p667 = pneg %p190
        $region102: #{tpu_custom_call.1} parent=95 // pred_check_branch
          %669 = sbr.rel (%p667) target = $region104
        $region103: #{tpu_custom_call.1} parent=95 // pred_region
          %670 = dma.done [#allocation6], 256
        $region104: #{tpu_custom_call.1} parent=95 // pred_fallthru
          _
        // Predicated region
        $region105: #{tpu_custom_call.1} parent=95 // pred_check
          %p671 = pneg %p211
        $region106: #{tpu_custom_call.1} parent=95 // pred_check_branch
          %673 = sbr.rel (%p671) target = $region108
        $region107: #{tpu_custom_call.1} parent=95 // pred_region
          %674 = dma.done [#allocation6], 16
        $region108: #{tpu_custom_call.1} parent=95 // pred_fallthru
          _
        // Predicated region
        $region109: #{tpu_custom_call.1} parent=95 // pred_check
          %p675 = pneg %p232
        $region110: #{tpu_custom_call.1} parent=95 // pred_check_branch
          %677 = sbr.rel (%p675) target = $region112
        $region111: #{tpu_custom_call.1} parent=95 // pred_region
          %678 = dma.done [#allocation9], 256
        $region112: #{tpu_custom_call.1} parent=95 // pred_fallthru
          _
        // Predicated region
        $region113: #{tpu_custom_call.1} parent=95 // pred_check
          %p679 = pneg %p253
        $region114: #{tpu_custom_call.1} parent=95 // pred_check_branch
          %681 = sbr.rel (%p679) target = $region116
        $region115: #{tpu_custom_call.1} parent=95 // pred_region
          %682 = dma.done [#allocation9], 16
        $region116: #{tpu_custom_call.1} parent=95 // pred_fallthru
          _
        // Predicated region
        $region117: #{tpu_custom_call.1} parent=95 // pred_check
          %p683 = pneg %p295
        $region118: #{tpu_custom_call.1} parent=95 // pred_check_branch
          %685 = sbr.rel (%p683) target = $region120
        $region119: #{tpu_custom_call.1} parent=95 // pred_region
          %686 = dma.done [#allocation12], 16
        $region120: #{tpu_custom_call.1} parent=95 // pred_fallthru
          _
        // Predicated region
        $region121: #{tpu_custom_call.1} parent=95 // pred_check
          %p687 = pneg %p316
        $region122: #{tpu_custom_call.1} parent=95 // pred_check_branch
          %689 = sbr.rel (%p687) target = $region124
        $region123: #{tpu_custom_call.1} parent=95 // pred_region
          %690 = dma.done [#allocation12], 16
        $region124: #{tpu_custom_call.1} parent=95 // pred_fallthru
          _
        // Predicated region
        $region125: #{tpu_custom_call.1} parent=95 // pred_check
          %p691 = pneg %p337
        $region126: #{tpu_custom_call.1} parent=95 // pred_check_branch
          %693 = sbr.rel (%p691) target = $region128
        $region127: #{tpu_custom_call.1} parent=95 // pred_region
          %694 = dma.done [#allocation15], 16
        $region128: #{tpu_custom_call.1} parent=95 // pred_fallthru
          _
        %p695 = scmp.lt.s32.totalorder %s44, 1
        %s696 = scalar_select %p695, %s44, 1
        %p697 = scmp.lt.s32.totalorder %s45, 0
        %s698 = scalar_select %p697, %s45, 0
        %s699 = sadd.s32 %s698, %s696
        %s700 = smul.addr %s699, 8
        %s701 = scalar_lea.vmem %s0, %s700
        %p702 = pneg %p75
        %p703 = pneg %p72
        %p704 = scmp.lt.s32.totalorder %s44, 1
        %s705 = scalar_select %p704, %s44, 1
        %s706 = smul.addr %s705, 8
        %s707 = scalar_lea.vmem %s1, %s706
        %p708 = pneg %p101
        %p709 = pneg %p98
        %s710 = sand.u32 %s114, 1
        %s711 = scalar_lea.sflag [#allocation3], %s710
        %s712 = sand.u32 %s114, 1
        %s713 = scalar_lea.vmem [#allocation2], %s712
        %p714 = pneg %p127
        %p715 = pneg %p124
        %p716 = pneg %p148
        %p717 = pneg %p145
        %p718 = pneg %p169
        %p719 = pneg %p166
        %p720 = pneg %p190
        %p721 = pneg %p187
        %p722 = pneg %p211
        %p723 = pneg %p208
        %p724 = pneg %p232
        %p725 = pneg %p229
        %p726 = pneg %p253
        %p727 = pneg %p250
        %p728 = pneg %p274
        %p729 = pneg %p271
        %p730 = pneg %p295
        %p731 = pneg %p292
        %p732 = pneg %p316
        %p733 = pneg %p313
        %p734 = pneg %p337
        %p735 = pneg %p334
        %p736 = pneg %p358
        %p737 = pneg %p355
        %p738 = pneg %p379
        %p739 = pneg %p376
        %p740 = pneg %p400
        %p741 = pneg %p397
        %p742 = pneg %p421
        %p743 = pneg %p418
        %p744 = pneg %p442
        %p745 = pneg %p439
        %p746 = pneg %p463
        %p747 = pneg %p460
        %p748 = pneg %p491
        %p749 = pneg %p488
        %s750 = sand.u32 %s478, 1
        %s751 = scalar_lea.sflag [#allocation4], %s750
        %s752 = sand.u32 %s478, 1
        %s753 = smul.addr %s752, 8
        %s754 = scalar_lea.vmem [#allocation16], %s753
        %p755 = scmp.lt.s32.totalorder %s44, 1
        %s756 = scalar_select %p755, %s44, 1
        %p757 = scmp.lt.s32.totalorder %s45, 0
        %s758 = scalar_select %p757, %s45, 0
        %s759 = sadd.s32 %s758, %s756
        %s760 = smul.addr %s759, 8
        %s761 = scalar_lea.vmem %s0, %s760
        %p762 = scmp.lt.s32.totalorder %s44, 1
        %s763 = scalar_select %p762, %s44, 1
        %s764 = smul.addr %s763, 8
        %s765 = scalar_lea.vmem %s1, %s764
        %v767 = vld [vmem:[%s761] sm:$0xff]
        %v768 = vld [vmem:[%s765] sm:$0xff]
        %v769 = vld [vmem:[%s662] sm:$0x1]
        %v770 = vsub.f32 %v769, 1.0
        %v771 = vmul.f32 %v770, 10000.0
        %v772 = vpack.c.bf16 %v767, %v767
        %v773 = vpack.c.bf16 %v768, %v768
        %v774 = vld [vmem:[%s3] sm:$0xf]
        %v775 = vld [vmem:[%s3 + $0x4] sm:$0xf]
        %v776 = vld [vmem:[%s3 + $0x8] sm:$0xf]
        %v777 = vld [vmem:[%s3 + $0xc] sm:$0xf]
        %v778 = vld [vmem:[%s4] sm:$0x1]
        %v780 = vlaneseq
        %v781 = vshrl.u32 %v780, 7
        %v782 = vsub.s32 0, %v781
        %v783 = vrot.slane %v778, %v782
        %v789 = vunpack.c.l.b16 %v774
        %v790 = vunpack.c.l.b16 %v775
        %v791 = vunpack.c.l.b16 %v776
        %v792 = vunpack.c.l.b16 %v777
        %v793 = vpack.c.b16 %v790, %v789
        %v794 = vpack.c.b16 %v792, %v791
        %vm797 = vcmask 261120
        %v799 = vsel %vm797, %v772, 0
        %801 = vmatprep.subr.bf16.mxu0 0
        %802 = vmatpush1.bf16.msra.mxu0 %v793
        %803 = vmatprep.subr.bf16.mxu0 0
        %804 = vmatpush1.bf16.msra.mxu0 %v794
        %805 = vmatprep.subr.bf16.mxu0 0
        %806 = vmatpush1.bf16.msra.mxu0 0
        %807 = vmatprep.subr.bf16.mxu0 0
        %808 = vmatpush1.bf16.msra.mxu0 0
        %809 = vmatprep.subr.bf16.mxu0 0
        %810 = vmatpush1.bf16.msra.mxu0 0
        %811 = vmatprep.subr.bf16.mxu0 0
        %812 = vmatpush1.bf16.msra.mxu0 0
        %813 = vmatprep.subr.bf16.mxu0 0
        %814 = vmatpush1.bf16.msra.mxu0 0
        %815 = vmatprep.subr.bf16.mxu0 0
        %816 = vmatpush1.bf16.msra.mxu0 0
        %817 = vmatprep.subr.bf16.mxu0 0
        %818 = vmatpush1.bf16.msra.mxu0 0
        %819 = vmatprep.subr.bf16.mxu0 0
        %820 = vmatpush1.bf16.msra.mxu0 0
        %821 = vmatprep.subr.bf16.mxu0 0
        %822 = vmatpush1.bf16.msra.mxu0 0
        %823 = vmatprep.subr.bf16.mxu0 0
        %824 = vmatpush1.bf16.msra.mxu0 0
        %825 = vmatprep.subr.bf16.mxu0 0
        %826 = vmatpush1.bf16.msra.mxu0 0
        %827 = vmatprep.subr.bf16.mxu0 0
        %828 = vmatpush1.bf16.msra.mxu0 0
        %829 = vmatprep.subr.bf16.mxu0 0
        %830 = vmatpush1.bf16.msra.mxu0 0
        %831 = vmatprep.subr.bf16.mxu0 0
        %832 = vmatpush1.bf16.msra.mxu0 0
        %833 = vmatprep.mubr.bf16.mxu0 0
        %834 = vmatmul.mubr.bf16.gmra.mrb[0].mxu0 %v799
        %v835 = vpop.f32.mrb[0].mxu0
        %v836 = vadd.f32 %v783, %v835
        %v837 = vpop.f32.mrb[0].mxu0
        %v838 = vpop.f32.mrb[0].mxu0
        %v839 = vpop.f32.mrb[0].mxu0
        %840 = vdwg.mxu0
        %v841 = vmul.f32 %v836, 0.35355338
        %v842 = vld [vmem:[#allocation5] sm:$0xf]
        %v843 = vld [vmem:[#allocation5 + $0x4] sm:$0xf]
        %v844 = vld [vmem:[#allocation5 + $0x8] sm:$0xf]
        %v845 = vld [vmem:[#allocation5 + $0xc] sm:$0xf]
        %v846 = vld [vmem:[#allocation7] sm:$0x1]
        %v848 = vlaneseq
        %v849 = vshrl.u32 %v848, 7
        %v850 = vsub.s32 0, %v849
        %v851 = vrot.slane %v846, %v850
        %v857 = vunpack.c.l.b16 %v842
        %v858 = vunpack.c.l.b16 %v843
        %v859 = vunpack.c.l.b16 %v844
        %v860 = vunpack.c.l.b16 %v845
        %v861 = vpack.c.b16 %v858, %v857
        %v862 = vpack.c.b16 %v860, %v859
        %v866 = vsel %vm797, %v773, 0
        %868 = vmatprep.subr.bf16.mxu0 0
        %869 = vmatpush1.bf16.msra.mxu0 %v861
        %870 = vmatprep.subr.bf16.mxu0 0
        %871 = vmatpush1.bf16.msra.mxu0 %v862
        %872 = vmatprep.subr.bf16.mxu0 0
        %873 = vmatpush1.bf16.msra.mxu0 0
        %874 = vmatprep.subr.bf16.mxu0 0
        %875 = vmatpush1.bf16.msra.mxu0 0
        %876 = vmatprep.subr.bf16.mxu0 0
        %877 = vmatpush1.bf16.msra.mxu0 0
        %878 = vmatprep.subr.bf16.mxu0 0
        %879 = vmatpush1.bf16.msra.mxu0 0
        %880 = vmatprep.subr.bf16.mxu0 0
        %881 = vmatpush1.bf16.msra.mxu0 0
        %882 = vmatprep.subr.bf16.mxu0 0
        %883 = vmatpush1.bf16.msra.mxu0 0
        %884 = vmatprep.subr.bf16.mxu0 0
        %885 = vmatpush1.bf16.msra.mxu0 0
        %886 = vmatprep.subr.bf16.mxu0 0
        %887 = vmatpush1.bf16.msra.mxu0 0
        %888 = vmatprep.subr.bf16.mxu0 0
        %889 = vmatpush1.bf16.msra.mxu0 0
        %890 = vmatprep.subr.bf16.mxu0 0
        %891 = vmatpush1.bf16.msra.mxu0 0
        %892 = vmatprep.subr.bf16.mxu0 0
        %893 = vmatpush1.bf16.msra.mxu0 0
        %894 = vmatprep.subr.bf16.mxu0 0
        %895 = vmatpush1.bf16.msra.mxu0 0
        %896 = vmatprep.subr.bf16.mxu0 0
        %897 = vmatpush1.bf16.msra.mxu0 0
        %898 = vmatprep.subr.bf16.mxu0 0
        %899 = vmatpush1.bf16.msra.mxu0 0
        %900 = vmatprep.mubr.bf16.mxu0 0
        %901 = vmatmul.mubr.bf16.gmra.mrb[0].mxu0 %v866
        %v902 = vpop.f32.mrb[0].mxu0
        %v903 = vadd.f32 %v851, %v902
        %v904 = vpop.f32.mrb[0].mxu0
        %v905 = vpop.f32.mrb[0].mxu0
        %v906 = vpop.f32.mrb[0].mxu0
        %907 = vdwg.mxu0
        %v908 = vld [vmem:[#allocation8] sm:$0xf]
        %v909 = vld [vmem:[#allocation8 + $0x4] sm:$0xf]
        %v910 = vld [vmem:[#allocation8 + $0x8] sm:$0xf]
        %v911 = vld [vmem:[#allocation8 + $0xc] sm:$0xf]
        %v912 = vld [vmem:[#allocation10] sm:$0x1]
        %v914 = vlaneseq
        %v915 = vshrl.u32 %v914, 7
        %v916 = vsub.s32 0, %v915
        %v917 = vrot.slane %v912, %v916
        %v923 = vunpack.c.l.b16 %v908
        %v924 = vunpack.c.l.b16 %v909
        %v925 = vunpack.c.l.b16 %v910
        %v926 = vunpack.c.l.b16 %v911
        %v927 = vpack.c.b16 %v924, %v923
        %v928 = vpack.c.b16 %v926, %v925
        %931 = vmatprep.subr.bf16.mxu0 0
        %932 = vmatpush1.bf16.msra.mxu0 %v927
        %933 = vmatprep.subr.bf16.mxu0 0
        %934 = vmatpush1.bf16.msra.mxu0 %v928
        %935 = vmatprep.subr.bf16.mxu0 0
        %936 = vmatpush1.bf16.msra.mxu0 0
        %937 = vmatprep.subr.bf16.mxu0 0
        %938 = vmatpush1.bf16.msra.mxu0 0
        %939 = vmatprep.subr.bf16.mxu0 0
        %940 = vmatpush1.bf16.msra.mxu0 0
        %941 = vmatprep.subr.bf16.mxu0 0
        %942 = vmatpush1.bf16.msra.mxu0 0
        %943 = vmatprep.subr.bf16.mxu0 0
        %944 = vmatpush1.bf16.msra.mxu0 0
        %945 = vmatprep.subr.bf16.mxu0 0
        %946 = vmatpush1.bf16.msra.mxu0 0
        %947 = vmatprep.subr.bf16.mxu0 0
        %948 = vmatpush1.bf16.msra.mxu0 0
        %949 = vmatprep.subr.bf16.mxu0 0
        %950 = vmatpush1.bf16.msra.mxu0 0
        %951 = vmatprep.subr.bf16.mxu0 0
        %952 = vmatpush1.bf16.msra.mxu0 0
        %953 = vmatprep.subr.bf16.mxu0 0
        %954 = vmatpush1.bf16.msra.mxu0 0
        %955 = vmatprep.subr.bf16.mxu0 0
        %956 = vmatpush1.bf16.msra.mxu0 0
        %957 = vmatprep.subr.bf16.mxu0 0
        %958 = vmatpush1.bf16.msra.mxu0 0
        %959 = vmatprep.subr.bf16.mxu0 0
        %960 = vmatpush1.bf16.msra.mxu0 0
        %961 = vmatprep.subr.bf16.mxu0 0
        %962 = vmatpush1.bf16.msra.mxu0 0
        %963 = vmatprep.mubr.bf16.mxu0 0
        %964 = vmatmul.mubr.bf16.gmra.mrb[0].mxu0 %v866
        %v965 = vpop.f32.mrb[0].mxu0
        %v966 = vadd.f32 %v917, %v965
        %v967 = vpop.f32.mrb[0].mxu0
        %v968 = vpop.f32.mrb[0].mxu0
        %v969 = vpop.f32.mrb[0].mxu0
        %970 = vdwg.mxu0
        %v971 = vpack.c.bf16 %v841, %v841
        %v972 = vpack.c.bf16 %v903, %v903
        %v973 = vpack.c.bf16 %v966, %v966
        %v975 = vlaneseq
        %v976 = vshrl.u32 %v975, 7
        %v977 = vsub.s32 0, %v976
        %v978 = vrot.slane %v771, %v977
        %vm980 = vcmask 64512
        %v982 = vsel %vm980, %v971, 0
        %v985 = vsel %vm980, %v972, 0
        %987 = vmatprep.subr.bf16.mxu0 0
        %988 = vmatpush1.bf16.xpose.msra.mxu0 %v985
        %989 = vmatprep.subr.bf16.mxu0 0
        %990 = vmatpush1.bf16.xpose.msra.mxu0 0
        %991 = vmatprep.subr.bf16.mxu0 0
        %992 = vmatpush1.bf16.xpose.msra.mxu0 0
        %993 = vmatprep.subr.bf16.mxu0 0
        %994 = vmatpush1.bf16.xpose.msra.mxu0 0
        %995 = vmatprep.subr.bf16.mxu0 0
        %996 = vmatpush1.bf16.xpose.msra.mxu0 0
        %997 = vmatprep.subr.bf16.mxu0 0
        %998 = vmatpush1.bf16.xpose.msra.mxu0 0
        %999 = vmatprep.subr.bf16.mxu0 0
        %1000 = vmatpush1.bf16.xpose.msra.mxu0 0
        %1001 = vmatprep.subr.bf16.mxu0 0
        %1002 = vmatpush1.bf16.xpose.msra.mxu0 0
        %1003 = vmatprep.subr.bf16.mxu0 0
        %1004 = vmatpush1.bf16.xpose.msra.mxu0 0
        %1005 = vmatprep.subr.bf16.mxu0 0
        %1006 = vmatpush1.bf16.xpose.msra.mxu0 0
        %1007 = vmatprep.subr.bf16.mxu0 0
        %1008 = vmatpush1.bf16.xpose.msra.mxu0 0
        %1009 = vmatprep.subr.bf16.mxu0 0
        %1010 = vmatpush1.bf16.xpose.msra.mxu0 0
        %1011 = vmatprep.subr.bf16.mxu0 0
        %1012 = vmatpush1.bf16.xpose.msra.mxu0 0
        %1013 = vmatprep.subr.bf16.mxu0 0
        %1014 = vmatpush1.bf16.xpose.msra.mxu0 0
        %1015 = vmatprep.subr.bf16.mxu0 0
        %1016 = vmatpush1.bf16.xpose.msra.mxu0 0
        %1017 = vmatprep.subr.bf16.mxu0 0
        %1018 = vmatpush1.bf16.xpose.msra.mxu0 0
        %1019 = vmatprep.mubr.bf16.mxu0 0
        %1020 = vmatmul.mubr.bf16.gmra.mrb[0].mxu0 %v982
        %v1021 = vpop.f32.mrb[0].mxu0
        %v1022 = vadd.f32 %v978, %v1021
        %v1023 = vpop.f32.mrb[0].mxu0
        %v1024 = vpop.f32.mrb[0].mxu0
        %v1025 = vpop.f32.mrb[0].mxu0
        %1026 = vdwg.mxu0
        %v1027 = vsel %vm980, %v1022, -inf
        %1028 = vmax.xlane.f32.xlu0 %v1027
        %v1029 = vpop.xlane.xlu0 %1028
        %v1030 = vsub.f32 %v1022, %v1029
        %v1031 = vmul.f32 %v1030, 1.442695
        %v1032 = vpow.pop %v1031
        %v1033 = vsel %vm980, %v1032, 0.0
        %1034 = vadd.xlane.f32.xlu0 %v1033
        %v1035 = vpop.xlane.xlu0 %1034
        %v1036 = vrcp.pop %v1035
        %v1037 = vmul.f32 %v1032, %v1036
        %v1038 = vpack.c.bf16 %v1037, %v1037
        %v1040 = vsel %vm980, %v1038, 0
        %vm1042 = vcmask 1043456
        %v1044 = vsel %vm1042, %v973, 0
        %1046 = vmatprep.subr.bf16.mxu0 0
        %1047 = vmatpush1.bf16.msra.mxu0 %v1044
        %1048 = vmatprep.subr.bf16.mxu0 0
        %1049 = vmatpush1.bf16.msra.mxu0 0
        %1050 = vmatprep.subr.bf16.mxu0 0
        %1051 = vmatpush1.bf16.msra.mxu0 0
        %1052 = vmatprep.subr.bf16.mxu0 0
        %1053 = vmatpush1.bf16.msra.mxu0 0
        %1054 = vmatprep.subr.bf16.mxu0 0
        %1055 = vmatpush1.bf16.msra.mxu0 0
        %1056 = vmatprep.subr.bf16.mxu0 0
        %1057 = vmatpush1.bf16.msra.mxu0 0
        %1058 = vmatprep.subr.bf16.mxu0 0
        %1059 = vmatpush1.bf16.msra.mxu0 0
        %1060 = vmatprep.subr.bf16.mxu0 0
        %1061 = vmatpush1.bf16.msra.mxu0 0
        %1062 = vmatprep.subr.bf16.mxu0 0
        %1063 = vmatpush1.bf16.msra.mxu0 0
        %1064 = vmatprep.subr.bf16.mxu0 0
        %1065 = vmatpush1.bf16.msra.mxu0 0
        %1066 = vmatprep.subr.bf16.mxu0 0
        %1067 = vmatpush1.bf16.msra.mxu0 0
        %1068 = vmatprep.subr.bf16.mxu0 0
        %1069 = vmatpush1.bf16.msra.mxu0 0
        %1070 = vmatprep.subr.bf16.mxu0 0
        %1071 = vmatpush1.bf16.msra.mxu0 0
        %1072 = vmatprep.subr.bf16.mxu0 0
        %1073 = vmatpush1.bf16.msra.mxu0 0
        %1074 = vmatprep.subr.bf16.mxu0 0
        %1075 = vmatpush1.bf16.msra.mxu0 0
        %1076 = vmatprep.subr.bf16.mxu0 0
        %1077 = vmatpush1.bf16.msra.mxu0 0
        %1078 = vmatprep.mubr.bf16.mxu0 0
        %1079 = vmatmul.mubr.bf16.gmra.mrb[0].mxu0 %v1040
        %v1080 = vpop.f32.mrb[0].mxu0
        %v1081 = vadd.f32 0.0, %v1080
        %v1082 = vpop.f32.mrb[0].mxu0
        %v1083 = vpop.f32.mrb[0].mxu0
        %v1084 = vpop.f32.mrb[0].mxu0
        %1085 = vdwg.mxu0
        %1087 = vrot.lane.b32.xlu0 %v971, 120
        %v1088 = vpop.permute.xlu0 %1087
        %1090 = vrot.lane.b32.xlu0 %v972, 120
        %v1091 = vpop.permute.xlu0 %1090
        %v1093 = vsel %vm980, %v1088, 0
        %v1096 = vsel %vm980, %v1091, 0
        %1098 = vmatprep.subr.bf16.mxu0 0
        %1099 = vmatpush1.bf16.xpose.msra.mxu0 %v1096
        %1100 = vmatprep.subr.bf16.mxu0 0
        %1101 = vmatpush1.bf16.xpose.msra.mxu0 0
        %1102 = vmatprep.subr.bf16.mxu0 0
        %1103 = vmatpush1.bf16.xpose.msra.mxu0 0
        %1104 = vmatprep.subr.bf16.mxu0 0
        %1105 = vmatpush1.bf16.xpose.msra.mxu0 0
        %1106 = vmatprep.subr.bf16.mxu0 0
        %1107 = vmatpush1.bf16.xpose.msra.mxu0 0
        %1108 = vmatprep.subr.bf16.mxu0 0
        %1109 = vmatpush1.bf16.xpose.msra.mxu0 0
        %1110 = vmatprep.subr.bf16.mxu0 0
        %1111 = vmatpush1.bf16.xpose.msra.mxu0 0
        %1112 = vmatprep.subr.bf16.mxu0 0
        %1113 = vmatpush1.bf16.xpose.msra.mxu0 0
        %1114 = vmatprep.subr.bf16.mxu0 0
        %1115 = vmatpush1.bf16.xpose.msra.mxu0 0
        %1116 = vmatprep.subr.bf16.mxu0 0
        %1117 = vmatpush1.bf16.xpose.msra.mxu0 0
        %1118 = vmatprep.subr.bf16.mxu0 0
        %1119 = vmatpush1.bf16.xpose.msra.mxu0 0
        %1120 = vmatprep.subr.bf16.mxu0 0
        %1121 = vmatpush1.bf16.xpose.msra.mxu0 0
        %1122 = vmatprep.subr.bf16.mxu0 0
        %1123 = vmatpush1.bf16.xpose.msra.mxu0 0
        %1124 = vmatprep.subr.bf16.mxu0 0
        %1125 = vmatpush1.bf16.xpose.msra.mxu0 0
        %1126 = vmatprep.subr.bf16.mxu0 0
        %1127 = vmatpush1.bf16.xpose.msra.mxu0 0
        %1128 = vmatprep.subr.bf16.mxu0 0
        %1129 = vmatpush1.bf16.xpose.msra.mxu0 0
        %1130 = vmatprep.mubr.bf16.mxu0 0
        %1131 = vmatmul.mubr.bf16.gmra.mrb[0].mxu0 %v1093
        %v1132 = vpop.f32.mrb[0].mxu0
        %v1133 = vadd.f32 %v978, %v1132
        %v1134 = vpop.f32.mrb[0].mxu0
        %v1135 = vpop.f32.mrb[0].mxu0
        %v1136 = vpop.f32.mrb[0].mxu0
        %1137 = vdwg.mxu0
        %v1138 = vsel %vm980, %v1133, -inf
        %1139 = vmax.xlane.f32.xlu0 %v1138
        %v1140 = vpop.xlane.xlu0 %1139
        %v1141 = vsub.f32 %v1133, %v1140
        %v1142 = vmul.f32 %v1141, 1.442695
        %v1143 = vpow.pop %v1142
        %v1144 = vsel %vm980, %v1143, 0.0
        %1145 = vadd.xlane.f32.xlu0 %v1144
        %v1146 = vpop.xlane.xlu0 %1145
        %v1147 = vrcp.pop %v1146
        %v1148 = vmul.f32 %v1143, %v1147
        %v1149 = vpack.c.bf16 %v1148, %v1148
        %1151 = vrot.lane.b32.xlu0 %v973, 120
        %v1152 = vpop.permute.xlu0 %1151
        %v1154 = vsel %vm980, %v1149, 0
        %v1157 = vsel %vm1042, %v1152, 0
        %1159 = vmatprep.subr.bf16.mxu0 0
        %1160 = vmatpush1.bf16.msra.mxu0 %v1157
        %1161 = vmatprep.subr.bf16.mxu0 0
        %1162 = vmatpush1.bf16.msra.mxu0 0
        %1163 = vmatprep.subr.bf16.mxu0 0
        %1164 = vmatpush1.bf16.msra.mxu0 0
        %1165 = vmatprep.subr.bf16.mxu0 0
        %1166 = vmatpush1.bf16.msra.mxu0 0
        %1167 = vmatprep.subr.bf16.mxu0 0
        %1168 = vmatpush1.bf16.msra.mxu0 0
        %1169 = vmatprep.subr.bf16.mxu0 0
        %1170 = vmatpush1.bf16.msra.mxu0 0
        %1171 = vmatprep.subr.bf16.mxu0 0
        %1172 = vmatpush1.bf16.msra.mxu0 0
        %1173 = vmatprep.subr.bf16.mxu0 0
        %1174 = vmatpush1.bf16.msra.mxu0 0
        %1175 = vmatprep.subr.bf16.mxu0 0
        %1176 = vmatpush1.bf16.msra.mxu0 0
        %1177 = vmatprep.subr.bf16.mxu0 0
        %1178 = vmatpush1.bf16.msra.mxu0 0
        %1179 = vmatprep.subr.bf16.mxu0 0
        %1180 = vmatpush1.bf16.msra.mxu0 0
        %1181 = vmatprep.subr.bf16.mxu0 0
        %1182 = vmatpush1.bf16.msra.mxu0 0
        %1183 = vmatprep.subr.bf16.mxu0 0
        %1184 = vmatpush1.bf16.msra.mxu0 0
        %1185 = vmatprep.subr.bf16.mxu0 0
        %1186 = vmatpush1.bf16.msra.mxu0 0
        %1187 = vmatprep.subr.bf16.mxu0 0
        %1188 = vmatpush1.bf16.msra.mxu0 0
        %1189 = vmatprep.subr.bf16.mxu0 0
        %1190 = vmatpush1.bf16.msra.mxu0 0
        %1191 = vmatprep.mubr.bf16.mxu0 0
        %1192 = vmatmul.mubr.bf16.gmra.mrb[0].mxu0 %v1154
        %v1193 = vpop.f32.mrb[0].mxu0
        %v1194 = vadd.f32 0.0, %v1193
        %v1195 = vpop.f32.mrb[0].mxu0
        %v1196 = vpop.f32.mrb[0].mxu0
        %v1197 = vpop.f32.mrb[0].mxu0
        %1198 = vdwg.mxu0
        %1199 = vrot.lane.b32.xlu0 %v971, 112
        %v1200 = vpop.permute.xlu0 %1199
        %1201 = vrot.lane.b32.xlu0 %v972, 112
        %v1202 = vpop.permute.xlu0 %1201
        %v1204 = vsel %vm980, %v1200, 0
        %v1207 = vsel %vm980, %v1202, 0
        %1209 = vmatprep.subr.bf16.mxu0 0
        %1210 = vmatpush1.bf16.xpose.msra.mxu0 %v1207
        %1211 = vmatprep.subr.bf16.mxu0 0
        %1212 = vmatpush1.bf16.xpose.msra.mxu0 0
        %1213 = vmatprep.subr.bf16.mxu0 0
        %1214 = vmatpush1.bf16.xpose.msra.mxu0 0
        %1215 = vmatprep.subr.bf16.mxu0 0
        %1216 = vmatpush1.bf16.xpose.msra.mxu0 0
        %1217 = vmatprep.subr.bf16.mxu0 0
        %1218 = vmatpush1.bf16.xpose.msra.mxu0 0
        %1219 = vmatprep.subr.bf16.mxu0 0
        %1220 = vmatpush1.bf16.xpose.msra.mxu0 0
        %1221 = vmatprep.subr.bf16.mxu0 0
        %1222 = vmatpush1.bf16.xpose.msra.mxu0 0
        %1223 = vmatprep.subr.bf16.mxu0 0
        %1224 = vmatpush1.bf16.xpose.msra.mxu0 0
        %1225 = vmatprep.subr.bf16.mxu0 0
        %1226 = vmatpush1.bf16.xpose.msra.mxu0 0
        %1227 = vmatprep.subr.bf16.mxu0 0
        %1228 = vmatpush1.bf16.xpose.msra.mxu0 0
        %1229 = vmatprep.subr.bf16.mxu0 0
        %1230 = vmatpush1.bf16.xpose.msra.mxu0 0
        %1231 = vmatprep.subr.bf16.mxu0 0
        %1232 = vmatpush1.bf16.xpose.msra.mxu0 0
        %1233 = vmatprep.subr.bf16.mxu0 0
        %1234 = vmatpush1.bf16.xpose.msra.mxu0 0
        %1235 = vmatprep.subr.bf16.mxu0 0
        %1236 = vmatpush1.bf16.xpose.msra.mxu0 0
        %1237 = vmatprep.subr.bf16.mxu0 0
        %1238 = vmatpush1.bf16.xpose.msra.mxu0 0
        %1239 = vmatprep.subr.bf16.mxu0 0
        %1240 = vmatpush1.bf16.xpose.msra.mxu0 0
        %1241 = vmatprep.mubr.bf16.mxu0 0
        %1242 = vmatmul.mubr.bf16.gmra.mrb[0].mxu0 %v1204
        %v1243 = vpop.f32.mrb[0].mxu0
        %v1244 = vadd.f32 %v978, %v1243
        %v1245 = vpop.f32.mrb[0].mxu0
        %v1246 = vpop.f32.mrb[0].mxu0
        %v1247 = vpop.f32.mrb[0].mxu0
        %1248 = vdwg.mxu0
        %v1249 = vsel %vm980, %v1244, -inf
        %1250 = vmax.xlane.f32.xlu0 %v1249
        %v1251 = vpop.xlane.xlu0 %1250
        %v1252 = vsub.f32 %v1244, %v1251
        %v1253 = vmul.f32 %v1252, 1.442695
        %v1254 = vpow.pop %v1253
        %v1255 = vsel %vm980, %v1254, 0.0
        %1256 = vadd.xlane.f32.xlu0 %v1255
        %v1257 = vpop.xlane.xlu0 %1256
        %v1258 = vrcp.pop %v1257
        %v1259 = vmul.f32 %v1254, %v1258
        %v1260 = vpack.c.bf16 %v1259, %v1259
        %1261 = vrot.lane.b32.xlu0 %v973, 112
        %v1262 = vpop.permute.xlu0 %1261
        %v1264 = vsel %vm980, %v1260, 0
        %v1267 = vsel %vm1042, %v1262, 0
        %1269 = vmatprep.subr.bf16.mxu0 0
        %1270 = vmatpush1.bf16.msra.mxu0 %v1267
        %1271 = vmatprep.subr.bf16.mxu0 0
        %1272 = vmatpush1.bf16.msra.mxu0 0
        %1273 = vmatprep.subr.bf16.mxu0 0
        %1274 = vmatpush1.bf16.msra.mxu0 0
        %1275 = vmatprep.subr.bf16.mxu0 0
        %1276 = vmatpush1.bf16.msra.mxu0 0
        %1277 = vmatprep.subr.bf16.mxu0 0
        %1278 = vmatpush1.bf16.msra.mxu0 0
        %1279 = vmatprep.subr.bf16.mxu0 0
        %1280 = vmatpush1.bf16.msra.mxu0 0
        %1281 = vmatprep.subr.bf16.mxu0 0
        %1282 = vmatpush1.bf16.msra.mxu0 0
        %1283 = vmatprep.subr.bf16.mxu0 0
        %1284 = vmatpush1.bf16.msra.mxu0 0
        %1285 = vmatprep.subr.bf16.mxu0 0
        %1286 = vmatpush1.bf16.msra.mxu0 0
        %1287 = vmatprep.subr.bf16.mxu0 0
        %1288 = vmatpush1.bf16.msra.mxu0 0
        %1289 = vmatprep.subr.bf16.mxu0 0
        %1290 = vmatpush1.bf16.msra.mxu0 0
        %1291 = vmatprep.subr.bf16.mxu0 0
        %1292 = vmatpush1.bf16.msra.mxu0 0
        %1293 = vmatprep.subr.bf16.mxu0 0
        %1294 = vmatpush1.bf16.msra.mxu0 0
        %1295 = vmatprep.subr.bf16.mxu0 0
        %1296 = vmatpush1.bf16.msra.mxu0 0
        %1297 = vmatprep.subr.bf16.mxu0 0
        %1298 = vmatpush1.bf16.msra.mxu0 0
        %1299 = vmatprep.subr.bf16.mxu0 0
        %1300 = vmatpush1.bf16.msra.mxu0 0
        %1301 = vmatprep.mubr.bf16.mxu0 0
        %1302 = vmatmul.mubr.bf16.gmra.mrb[0].mxu0 %v1264
        %v1303 = vpop.f32.mrb[0].mxu0
        %v1304 = vadd.f32 0.0, %v1303
        %v1305 = vpop.f32.mrb[0].mxu0
        %v1306 = vpop.f32.mrb[0].mxu0
        %v1307 = vpop.f32.mrb[0].mxu0
        %1308 = vdwg.mxu0
        %1309 = vrot.lane.b32.xlu0 %v971, 104
        %v1310 = vpop.permute.xlu0 %1309
        %1311 = vrot.lane.b32.xlu0 %v972, 104
        %v1312 = vpop.permute.xlu0 %1311
        %v1314 = vsel %vm980, %v1310, 0
        %v1317 = vsel %vm980, %v1312, 0
        %1319 = vmatprep.subr.bf16.mxu0 0
        %1320 = vmatpush1.bf16.xpose.msra.mxu0 %v1317
        %1321 = vmatprep.subr.bf16.mxu0 0
        %1322 = vmatpush1.bf16.xpose.msra.mxu0 0
        %1323 = vmatprep.subr.bf16.mxu0 0
        %1324 = vmatpush1.bf16.xpose.msra.mxu0 0
        %1325 = vmatprep.subr.bf16.mxu0 0
        %1326 = vmatpush1.bf16.xpose.msra.mxu0 0
        %1327 = vmatprep.subr.bf16.mxu0 0
        %1328 = vmatpush1.bf16.xpose.msra.mxu0 0
        %1329 = vmatprep.subr.bf16.mxu0 0
        %1330 = vmatpush1.bf16.xpose.msra.mxu0 0
        %1331 = vmatprep.subr.bf16.mxu0 0
        %1332 = vmatpush1.bf16.xpose.msra.mxu0 0
        %1333 = vmatprep.subr.bf16.mxu0 0
        %1334 = vmatpush1.bf16.xpose.msra.mxu0 0
        %1335 = vmatprep.subr.bf16.mxu0 0
        %1336 = vmatpush1.bf16.xpose.msra.mxu0 0
        %1337 = vmatprep.subr.bf16.mxu0 0
        %1338 = vmatpush1.bf16.xpose.msra.mxu0 0
        %1339 = vmatprep.subr.bf16.mxu0 0
        %1340 = vmatpush1.bf16.xpose.msra.mxu0 0
        %1341 = vmatprep.subr.bf16.mxu0 0
        %1342 = vmatpush1.bf16.xpose.msra.mxu0 0
        %1343 = vmatprep.subr.bf16.mxu0 0
        %1344 = vmatpush1.bf16.xpose.msra.mxu0 0
        %1345 = vmatprep.subr.bf16.mxu0 0
        %1346 = vmatpush1.bf16.xpose.msra.mxu0 0
        %1347 = vmatprep.subr.bf16.mxu0 0
        %1348 = vmatpush1.bf16.xpose.msra.mxu0 0
        %1349 = vmatprep.subr.bf16.mxu0 0
        %1350 = vmatpush1.bf16.xpose.msra.mxu0 0
        %1351 = vmatprep.mubr.bf16.mxu0 0
        %1352 = vmatmul.mubr.bf16.gmra.mrb[0].mxu0 %v1314
        %v1353 = vpop.f32.mrb[0].mxu0
        %v1354 = vadd.f32 %v978, %v1353
        %v1355 = vpop.f32.mrb[0].mxu0
        %v1356 = vpop.f32.mrb[0].mxu0
        %v1357 = vpop.f32.mrb[0].mxu0
        %1358 = vdwg.mxu0
        %v1359 = vsel %vm980, %v1354, -inf
        %1360 = vmax.xlane.f32.xlu0 %v1359
        %v1361 = vpop.xlane.xlu0 %1360
        %v1362 = vsub.f32 %v1354, %v1361
        %v1363 = vmul.f32 %v1362, 1.442695
        %v1364 = vpow.pop %v1363
        %v1365 = vsel %vm980, %v1364, 0.0
        %1366 = vadd.xlane.f32.xlu0 %v1365
        %v1367 = vpop.xlane.xlu0 %1366
        %v1368 = vrcp.pop %v1367
        %v1369 = vmul.f32 %v1364, %v1368
        %v1370 = vpack.c.bf16 %v1369, %v1369
        %1371 = vrot.lane.b32.xlu0 %v973, 104
        %v1372 = vpop.permute.xlu0 %1371
        %v1374 = vsel %vm980, %v1370, 0
        %v1377 = vsel %vm1042, %v1372, 0
        %1379 = vmatprep.subr.bf16.mxu0 0
        %1380 = vmatpush1.bf16.msra.mxu0 %v1377
        %1381 = vmatprep.subr.bf16.mxu0 0
        %1382 = vmatpush1.bf16.msra.mxu0 0
        %1383 = vmatprep.subr.bf16.mxu0 0
        %1384 = vmatpush1.bf16.msra.mxu0 0
        %1385 = vmatprep.subr.bf16.mxu0 0
        %1386 = vmatpush1.bf16.msra.mxu0 0
        %1387 = vmatprep.subr.bf16.mxu0 0
        %1388 = vmatpush1.bf16.msra.mxu0 0
        %1389 = vmatprep.subr.bf16.mxu0 0
        %1390 = vmatpush1.bf16.msra.mxu0 0
        %1391 = vmatprep.subr.bf16.mxu0 0
        %1392 = vmatpush1.bf16.msra.mxu0 0
        %1393 = vmatprep.subr.bf16.mxu0 0
        %1394 = vmatpush1.bf16.msra.mxu0 0
        %1395 = vmatprep.subr.bf16.mxu0 0
        %1396 = vmatpush1.bf16.msra.mxu0 0
        %1397 = vmatprep.subr.bf16.mxu0 0
        %1398 = vmatpush1.bf16.msra.mxu0 0
        %1399 = vmatprep.subr.bf16.mxu0 0
        %1400 = vmatpush1.bf16.msra.mxu0 0
        %1401 = vmatprep.subr.bf16.mxu0 0
        %1402 = vmatpush1.bf16.msra.mxu0 0
        %1403 = vmatprep.subr.bf16.mxu0 0
        %1404 = vmatpush1.bf16.msra.mxu0 0
        %1405 = vmatprep.subr.bf16.mxu0 0
        %1406 = vmatpush1.bf16.msra.mxu0 0
        %1407 = vmatprep.subr.bf16.mxu0 0
        %1408 = vmatpush1.bf16.msra.mxu0 0
        %1409 = vmatprep.subr.bf16.mxu0 0
        %1410 = vmatpush1.bf16.msra.mxu0 0
        %1411 = vmatprep.mubr.bf16.mxu0 0
        %1412 = vmatmul.mubr.bf16.gmra.mrb[0].mxu0 %v1374
        %v1413 = vpop.f32.mrb[0].mxu0
        %v1414 = vadd.f32 0.0, %v1413
        %v1415 = vpop.f32.mrb[0].mxu0
        %v1416 = vpop.f32.mrb[0].mxu0
        %v1417 = vpop.f32.mrb[0].mxu0
        %1418 = vdwg.mxu0
        %1420 = vrot.lane.b32.xlu0 %v1194, 8
        %v1421 = vpop.permute.xlu0 %1420
        %1424 = vrot.lane.b32.xlu0 %v1304, 16
        %v1425 = vpop.permute.xlu0 %1424
        %1428 = vrot.lane.b32.xlu0 %v1414, 24
        %v1429 = vpop.permute.xlu0 %1428
        %v1431 = vsel %vm980, %v1081, %v1421
        %vm1432 = vcmask 130048
        %v1433 = vsel %vm1432, %v1431, %v1425
        %vm1434 = vcmask 195584
        %v1435 = vsel %vm1434, %v1433, %v1429
        %v1436 = vpack.c.bf16 %v1435, %v1435
        %v1437 = vld [vmem:[%s9] sm:$0xf]
        %v1438 = vld [vmem:[%s9 + $0x4] sm:$0xf]
        %v1439 = vld [vmem:[%s9 + $0x8] sm:$0xf]
        %v1440 = vld [vmem:[%s9 + $0xc] sm:$0xf]
        %v1441 = vld [vmem:[#allocation11] sm:$0x1]
        %v1443 = vlaneseq
        %v1444 = vshrl.u32 %v1443, 7
        %v1445 = vsub.s32 0, %v1444
        %v1446 = vrot.slane %v1441, %v1445
        %v1452 = vunpack.c.l.b16 %v1437
        %v1453 = vunpack.c.l.b16 %v1438
        %v1454 = vunpack.c.l.b16 %v1439
        %v1455 = vunpack.c.l.b16 %v1440
        %v1456 = vpack.c.b16 %v1453, %v1452
        %v1457 = vpack.c.b16 %v1455, %v1454
        %v1461 = vsel %vm797, %v1436, 0
        %1463 = vmatprep.subr.bf16.mxu0 0
        %1464 = vmatpush1.bf16.msra.mxu0 %v1456
        %1465 = vmatprep.subr.bf16.mxu0 0
        %1466 = vmatpush1.bf16.msra.mxu0 %v1457
        %1467 = vmatprep.subr.bf16.mxu0 0
        %1468 = vmatpush1.bf16.msra.mxu0 0
        %1469 = vmatprep.subr.bf16.mxu0 0
        %1470 = vmatpush1.bf16.msra.mxu0 0
        %1471 = vmatprep.subr.bf16.mxu0 0
        %1472 = vmatpush1.bf16.msra.mxu0 0
        %1473 = vmatprep.subr.bf16.mxu0 0
        %1474 = vmatpush1.bf16.msra.mxu0 0
        %1475 = vmatprep.subr.bf16.mxu0 0
        %1476 = vmatpush1.bf16.msra.mxu0 0
        %1477 = vmatprep.subr.bf16.mxu0 0
        %1478 = vmatpush1.bf16.msra.mxu0 0
        %1479 = vmatprep.subr.bf16.mxu0 0
        %1480 = vmatpush1.bf16.msra.mxu0 0
        %1481 = vmatprep.subr.bf16.mxu0 0
        %1482 = vmatpush1.bf16.msra.mxu0 0
        %1483 = vmatprep.subr.bf16.mxu0 0
        %1484 = vmatpush1.bf16.msra.mxu0 0
        %1485 = vmatprep.subr.bf16.mxu0 0
        %1486 = vmatpush1.bf16.msra.mxu0 0
        %1487 = vmatprep.subr.bf16.mxu0 0
        %1488 = vmatpush1.bf16.msra.mxu0 0
        %1489 = vmatprep.subr.bf16.mxu0 0
        %1490 = vmatpush1.bf16.msra.mxu0 0
        %1491 = vmatprep.subr.bf16.mxu0 0
        %1492 = vmatpush1.bf16.msra.mxu0 0
        %1493 = vmatprep.subr.bf16.mxu0 0
        %1494 = vmatpush1.bf16.msra.mxu0 0
        %1495 = vmatprep.mubr.bf16.mxu0 0
        %1496 = vmatmul.mubr.bf16.gmra.mrb[0].mxu0 %v1461
        %v1497 = vpop.f32.mrb[0].mxu0
        %v1498 = vadd.f32 %v1446, %v1497
        %v1499 = vpop.f32.mrb[0].mxu0
        %v1500 = vpop.f32.mrb[0].mxu0
        %v1501 = vpop.f32.mrb[0].mxu0
        %1502 = vdwg.mxu0
        %v1503 = vadd.f32 %v767, %v1498
        %v1504 = vsel %vm797, %v1503, 0.0
        %1505 = vadd.xlane.f32.xlu0 %v1504
        %v1506 = vpop.xlane.xlu0 %1505
        %v1507 = vrcp.pop 32.0
        %v1508 = vmul.f32 %v1506, %v1507
        %v1509 = vmul.f32 %v1503, %v1503
        %v1510 = vsel %vm797, %v1509, 0.0
        %1511 = vadd.xlane.f32.xlu0 %v1510
        %v1512 = vpop.xlane.xlu0 %1511
        %v1513 = vmul.f32 %v1512, %v1507
        %v1514 = vmul.f32 %v1508, %v1508
        %v1515 = vsub.f32 %v1513, %v1514
        %v1516 = vmax.f32 %v1515, 0.0
        %v1517 = vsub.f32 %v1503, %v1508
        %v1518 = vadd.f32 %v1516, 1e-12
        %v1519 = vrsqrt.pop %v1518
        %v1520 = vmul.f32 %v1517, %v1519
        %v1521 = vld [vmem:[#allocation13] sm:$0x1]
        %v1523 = vlaneseq
        %v1524 = vshrl.u32 %v1523, 7
        %v1525 = vsub.s32 0, %v1524
        %v1526 = vrot.slane %v1521, %v1525
        %v1528 = vmul.f32 %v1520, %v1526
        %v1529 = vld [vmem:[#allocation14] sm:$0x1]
        %v1531 = vlaneseq
        %v1532 = vshrl.u32 %v1531, 7
        %v1533 = vsub.s32 0, %v1532
        %v1534 = vrot.slane %v1529, %v1533
        %v1536 = vadd.f32 %v1528, %v1534
        %v1537 = vpack.c.bf16 %v1536, %v1536
        %v1538 = vld [vmem:[%s13] sm:$0xf]
        %v1539 = vld [vmem:[%s13 + $0x4] sm:$0xf]
        %v1540 = vld [vmem:[%s13 + $0x8] sm:$0xf]
        %v1541 = vld [vmem:[%s13 + $0xc] sm:$0xf]
        %v1542 = vld [vmem:[%s14] sm:$0x1]
        %v1544 = vlaneseq
        %v1545 = vshrl.u32 %v1544, 7
        %v1546 = vsub.s32 0, %v1545
        %v1547 = vrot.slane %v1542, %v1546
        %v1553 = vunpack.c.l.b16 %v1538
        %v1554 = vunpack.c.l.b16 %v1539
        %v1555 = vunpack.c.l.b16 %v1540
        %v1556 = vunpack.c.l.b16 %v1541
        %v1557 = vpack.c.b16 %v1554, %v1553
        %v1558 = vpack.c.b16 %v1556, %v1555
        %v1562 = vsel %vm797, %v1537, 0
        %1564 = vmatprep.subr.bf16.mxu0 0
        %1565 = vmatpush1.bf16.msra.mxu0 %v1557
        %1566 = vmatprep.subr.bf16.mxu0 0
        %1567 = vmatpush1.bf16.msra.mxu0 %v1558
        %1568 = vmatprep.subr.bf16.mxu0 0
        %1569 = vmatpush1.bf16.msra.mxu0 0
        %1570 = vmatprep.subr.bf16.mxu0 0
        %1571 = vmatpush1.bf16.msra.mxu0 0
        %1572 = vmatprep.subr.bf16.mxu0 0
        %1573 = vmatpush1.bf16.msra.mxu0 0
        %1574 = vmatprep.subr.bf16.mxu0 0
        %1575 = vmatpush1.bf16.msra.mxu0 0
        %1576 = vmatprep.subr.bf16.mxu0 0
        %1577 = vmatpush1.bf16.msra.mxu0 0
        %1578 = vmatprep.subr.bf16.mxu0 0
        %1579 = vmatpush1.bf16.msra.mxu0 0
        %1580 = vmatprep.subr.bf16.mxu0 0
        %1581 = vmatpush1.bf16.msra.mxu0 0
        %1582 = vmatprep.subr.bf16.mxu0 0
        %1583 = vmatpush1.bf16.msra.mxu0 0
        %1584 = vmatprep.subr.bf16.mxu0 0
        %1585 = vmatpush1.bf16.msra.mxu0 0
        %1586 = vmatprep.subr.bf16.mxu0 0
        %1587 = vmatpush1.bf16.msra.mxu0 0
        %1588 = vmatprep.subr.bf16.mxu0 0
        %1589 = vmatpush1.bf16.msra.mxu0 0
        %1590 = vmatprep.subr.bf16.mxu0 0
        %1591 = vmatpush1.bf16.msra.mxu0 0
        %1592 = vmatprep.subr.bf16.mxu0 0
        %1593 = vmatpush1.bf16.msra.mxu0 0
        %1594 = vmatprep.subr.bf16.mxu0 0
        %1595 = vmatpush1.bf16.msra.mxu0 0
        %1596 = vmatprep.mubr.bf16.mxu0 0
        %1597 = vmatmul.mubr.bf16.gmra.mrb[0].mxu0 %v1562
        %v1598 = vpop.f32.mrb[0].mxu0
        %v1599 = vadd.f32 %v1547, %v1598
        %v1600 = vpop.f32.mrb[0].mxu0
        %v1601 = vpop.f32.mrb[0].mxu0
        %v1602 = vpop.f32.mrb[0].mxu0
        %1603 = vdwg.mxu0
        %v1604 = vmax.f32 %v1599, 0.0
        %v1605 = vpack.c.bf16 %v1604, %v1604
        %v1606 = vld [vmem:[%s15] sm:$0xf]
        %v1607 = vld [vmem:[%s15 + $0x4] sm:$0xf]
        %v1608 = vld [vmem:[%s15 + $0x8] sm:$0xf]
        %v1609 = vld [vmem:[%s15 + $0xc] sm:$0xf]
        %v1610 = vld [vmem:[%s15 + $0x10] sm:$0xf]
        %v1611 = vld [vmem:[%s15 + $0x14] sm:$0xf]
        %v1612 = vld [vmem:[%s15 + $0x18] sm:$0xf]
        %v1613 = vld [vmem:[%s15 + $0x1c] sm:$0xf]
        %v1614 = vld [vmem:[%s16] sm:$0x1]
        %v1616 = vlaneseq
        %v1617 = vshrl.u32 %v1616, 7
        %v1618 = vsub.s32 0, %v1617
        %v1619 = vrot.slane %v1614, %v1618
        %v1629 = vunpack.c.l.b16 %v1606
        %v1630 = vunpack.c.l.b16 %v1607
        %v1631 = vunpack.c.l.b16 %v1608
        %v1632 = vunpack.c.l.b16 %v1609
        %v1633 = vunpack.c.l.b16 %v1610
        %v1634 = vunpack.c.l.b16 %v1611
        %v1635 = vunpack.c.l.b16 %v1612
        %v1636 = vunpack.c.l.b16 %v1613
        %v1637 = vpack.c.b16 %v1630, %v1629
        %v1638 = vpack.c.b16 %v1632, %v1631
        %v1639 = vpack.c.b16 %v1634, %v1633
        %v1640 = vpack.c.b16 %v1636, %v1635
        %vm1645 = vcmask 523264
        %v1647 = vsel %vm1645, %v1605, 0
        %1649 = vmatprep.subr.bf16.mxu0 0
        %1650 = vmatpush1.bf16.msra.mxu0 %v1637
        %1651 = vmatprep.subr.bf16.mxu0 0
        %1652 = vmatpush1.bf16.msra.mxu0 %v1638
        %1653 = vmatprep.subr.bf16.mxu0 0
        %1654 = vmatpush1.bf16.msra.mxu0 %v1639
        %1655 = vmatprep.subr.bf16.mxu0 0
        %1656 = vmatpush1.bf16.msra.mxu0 %v1640
        %1657 = vmatprep.subr.bf16.mxu0 0
        %1658 = vmatpush1.bf16.msra.mxu0 0
        %1659 = vmatprep.subr.bf16.mxu0 0
        %1660 = vmatpush1.bf16.msra.mxu0 0
        %1661 = vmatprep.subr.bf16.mxu0 0
        %1662 = vmatpush1.bf16.msra.mxu0 0
        %1663 = vmatprep.subr.bf16.mxu0 0
        %1664 = vmatpush1.bf16.msra.mxu0 0
        %1665 = vmatprep.subr.bf16.mxu0 0
        %1666 = vmatpush1.bf16.msra.mxu0 0
        %1667 = vmatprep.subr.bf16.mxu0 0
        %1668 = vmatpush1.bf16.msra.mxu0 0
        %1669 = vmatprep.subr.bf16.mxu0 0
        %1670 = vmatpush1.bf16.msra.mxu0 0
        %1671 = vmatprep.subr.bf16.mxu0 0
        %1672 = vmatpush1.bf16.msra.mxu0 0
        %1673 = vmatprep.subr.bf16.mxu0 0
        %1674 = vmatpush1.bf16.msra.mxu0 0
        %1675 = vmatprep.subr.bf16.mxu0 0
        %1676 = vmatpush1.bf16.msra.mxu0 0
        %1677 = vmatprep.subr.bf16.mxu0 0
        %1678 = vmatpush1.bf16.msra.mxu0 0
        %1679 = vmatprep.subr.bf16.mxu0 0
        %1680 = vmatpush1.bf16.msra.mxu0 0
        %1681 = vmatprep.mubr.bf16.mxu0 0
        %1682 = vmatmul.mubr.bf16.gmra.mrb[0].mxu0 %v1647
        %v1683 = vpop.f32.mrb[0].mxu0
        %v1684 = vadd.f32 %v1619, %v1683
        %v1685 = vpop.f32.mrb[0].mxu0
        %v1686 = vpop.f32.mrb[0].mxu0
        %v1687 = vpop.f32.mrb[0].mxu0
        %1688 = vdwg.mxu0
        %v1689 = vadd.f32 %v1536, %v1684
        %v1690 = vsel %vm797, %v1689, 0.0
        %1691 = vadd.xlane.f32.xlu0 %v1690
        %v1692 = vpop.xlane.xlu0 %1691
        %v1693 = vmul.f32 %v1692, %v1507
        %v1694 = vmul.f32 %v1689, %v1689
        %v1695 = vsel %vm797, %v1694, 0.0
        %1696 = vadd.xlane.f32.xlu0 %v1695
        %v1697 = vpop.xlane.xlu0 %1696
        %v1698 = vmul.f32 %v1697, %v1507
        %v1699 = vmul.f32 %v1693, %v1693
        %v1700 = vsub.f32 %v1698, %v1699
        %v1701 = vmax.f32 %v1700, 0.0
        %v1702 = vsub.f32 %v1689, %v1693
        %v1703 = vadd.f32 %v1701, 1e-12
        %v1704 = vrsqrt.pop %v1703
        %v1705 = vmul.f32 %v1702, %v1704
        %v1706 = vld [vmem:[%s17] sm:$0x1]
        %v1708 = vlaneseq
        %v1709 = vshrl.u32 %v1708, 7
        %v1710 = vsub.s32 0, %v1709
        %v1711 = vrot.slane %v1706, %v1710
        %v1713 = vmul.f32 %v1705, %v1711
        %v1714 = vld [vmem:[%s18] sm:$0x1]
        %v1716 = vlaneseq
        %v1717 = vshrl.u32 %v1716, 7
        %v1718 = vsub.s32 0, %v1717
        %v1719 = vrot.slane %v1714, %v1718
        %v1721 = vadd.f32 %v1713, %v1719
        %1722 = vst.msk [vmem:[%s754] sm:$0xff] %vm797, %v1721
        %s1723 = sand.u32 %s478, 1
        %s1724 = scalar_lea.sflag [#allocation4], %s1723
        %s1725 = sand.u32 %s478, 1
        %s1726 = smul.addr %s1725, 8
        %s1727 = scalar_lea.vmem [#allocation16], %s1726
        // Predicated region
        $region129: #{tpu_custom_call.1} parent=95 // pred_check
          %p1728 = pneg %p488
        $region130: #{tpu_custom_call.1} parent=95 // pred_check_branch
          %1730 = sbr.rel (%p1728) target = $region132
        $region131: #{tpu_custom_call.1} parent=95 // pred_region
          %s1732 = ssub.s32 128, 128
          %1733 = vsyncadd %s1724, %s1732
          %s1734 = sadd.s32 %s45, %s44
          %s1735 = smul.addr %s1734, 128
          %s1736 = scalar_lea.hbm %s19, %s1735
          %s1738 = sshll.u32 %s1727, 4
          %s1739 = int_to_ptr.vmem [resolvable:$true] %s1738
          %1741 = dma.vmem_to_hbm [thread:$0]  %s1739, 128, %s1736, %s1724
        $region132: #{tpu_custom_call.1} parent=95 // pred_fallthru
          _
      $region96: #{tpu_custom_call.1} parent=5 // pred_fallthru
        _
      %p1742 = scmp.le.s32.totalorder 2, %s35
      // Predicated region
      $region133: #{tpu_custom_call.1} parent=5 // pred_check
        %p1743 = pneg %p1742
      $region134: #{tpu_custom_call.1} parent=5 // pred_check_branch
        %1745 = sbr.rel (%p1743) target = $region136
      $region135: #{tpu_custom_call.1} parent=5 // pred_region
        %s1746 = ssub.s32 %s35, 2
        // Predicated region
        $region137: #{tpu_custom_call.1} parent=135 // pred_check
          %p1747 = pneg %p494
        $region138: #{tpu_custom_call.1} parent=135 // pred_check_branch
          %1749 = sbr.rel (%p1747) target = $region140
        $region139: #{tpu_custom_call.1} parent=135 // pred_region
          %s1750 = sand.u32 %s479, 1
          %s1751 = scalar_lea.sflag [#allocation4], %s1750
          %s1752 = sand.u32 %s479, 1
          %s1753 = smul.addr %s1752, 8
          %s1754 = scalar_lea.vmem [#allocation16], %s1753
          %1755 = dma.done %s1751, 128
        $region140: #{tpu_custom_call.1} parent=135 // pred_fallthru
          _
      $region136: #{tpu_custom_call.1} parent=5 // pred_fallthru
        _
    $region6: #{tpu_custom_call.1} parent=1 // loop_footer
      %s39 = sadd.s32 1, %s35
    $region7: #{tpu_custom_call.1} parent=1 // loop_footer_branch
      %34 = sbr.rel target = $region3
    $region8: #{tpu_custom_call.1} parent=1 // loop_exit
      _
    %1756 = vsyncpa [#allocation3], 1
    %s1757 = scalar_lea.sflag [#allocation3], 1
    %1758 = vsyncpa %s1757, 1
    %1759 = vsyncpa [#allocation6], 1
    %1760 = vsyncpa [#allocation9], 1
    %1761 = vsyncpa [#allocation12], 1
    %1762 = vsyncpa [#allocation15], 1
    %1763 = vsyncpa [#allocation4], 1
    %s1764 = scalar_lea.sflag [#allocation4], 1
    %1765 = vsyncpa %s1764, 1

</llo_original>
